<compile_context>
chip_gen: v7x
topology: tpu7x:2x2x1
jax: 0.10.0
libtpu: 0.0.40
codegen_flags: <defaults>
</compile_context>

<pallas_src>
import numpy as np
import jax
import jax.numpy as jnp
from jax import lax
from jax.experimental import pallas as pl
from jax.experimental.pallas import tpu as pltpu

DT = 1.0e-3   # time step [s]
DH = 5.0      # grid spacing [m]


def _make_wave_kernel(B, H, W, R, t_inner):
    def kernel(srow_ref, rbat_ref, rrow_ref,           # SMEM scalar prefetch
               amp_ref, c2_ref, scol_ref, rcol_ref,    # VMEM inputs
               out_ref,                                # VMEM output block
               field_ref):                             # scratch (2*B, H, W)
        c = pl.program_id(0)

        @pl.when(c == 0)
        def _():
            field_ref[...] = jnp.zeros_like(field_ref)

        # ---- loop invariants (loaded / built once per chunk) ----
        c2 = c2_ref[...]                                 # (H, W)
        scol = scol_ref[...]                             # (B, W) src lane one-hot
        rcol = rcol_ref[...]                             # (R, W) rec lane one-hot
        rows = lax.broadcasted_iota(jnp.int32, (H, W), 0)
        cols = lax.broadcasted_iota(jnp.int32, (H, W), 1)
        m_up = (rows > 0).astype(jnp.float32)            # zero wrapped row 0
        m_dn = (rows < H - 1).astype(jnp.float32)        # zero wrapped row H-1
        m_lf = (cols > 0).astype(jnp.float32)            # zero wrapped col 0
        m_rt = (cols < W - 1).astype(jnp.float32)        # zero wrapped col W-1
        srow = [srow_ref[b] for b in range(B)]
        rbat = [rbat_ref[r] for r in range(R)]
        rrow = [rrow_ref[r] for r in range(R)]

        t0 = c * t_inner

        def step(i, carry):
            cur = (t0 + i) % 2           # ping-pong slot holding u^{t}
            nxt = 1 - cur                # slot holding u^{t-1}; receives u^{t+1}

            for b in range(B):           # B is small & static
                u_t = field_ref[cur * B + b]             # (H, W)
                u_tm1 = field_ref[nxt * B + b]           # (H, W)
                # 5-point Laplacian: XLU rotates + Dirichlet boundary masks.
                lap = (m_up * pltpu.roll(u_t, 1, 0)          # u[i-1, j]
                       + m_dn * pltpu.roll(u_t, H - 1, 0)    # u[i+1, j]
                       + m_lf * pltpu.roll(u_t, 1, 1)        # u[i, j-1]
                       + m_rt * pltpu.roll(u_t, W - 1, 1)    # u[i, j+1]
                       - 4.0 * u_t)
                u_new = 2.0 * u_t - u_tm1 + c2 * lap
                field_ref[nxt * B + b] = u_new           # overwrite old u^{t-1}

                # super_source: point injection == single-row read-modify-write
                amp = amp_ref[pl.ds(i, 1), pl.ds(b, 1)]              # (1, 1)
                src_row = field_ref[nxt * B + b, pl.ds(srow[b], 1), :]
                field_ref[nxt * B + b, pl.ds(srow[b], 1), :] = (
                    src_row + amp * scol[b:b + 1, :])

            # super_probes: gather receiver rows (dynamic sublane index),
            # reduce against the (R, W) lane one-hots.
            gathered = jnp.concatenate(
                [field_ref[nxt * B + rbat[r], pl.ds(rrow[r], 1), :]
                 for r in range(R)], axis=0)                          # (R, W)
            rec = jnp.sum(gathered * rcol, axis=1)                    # (R,)
            out_ref[pl.ds(i, 1), :] = rec.reshape(1, R)
            return carry

        lax.fori_loop(0, t_inner, step, 0, unroll=True)

    return kernel


def wave_rnn_forward(x, vp, src_yx, rec_yx, *, t_inner=8):
    """x: (B, nt) wavelets; vp: (H, W); src_yx: [(sy, sx)] per shot;
    rec_yx: per-shot list of (ry, rx).  Returns per-shot (nt, nrec_b, 1)."""
    x = jnp.asarray(x, jnp.float32)
    vp = jnp.asarray(vp, jnp.float32)
    B, nt = x.shape
    H, W = vp.shape
    if H % 8 or W % 128:
        raise ValueError("domain (H, W) must be (8, 128)-aligned")
    if nt % t_inner:
        raise ValueError("nt must be a multiple of t_inner")

    reccounts = [len(rc) for rc in rec_yx]
    R = int(sum(reccounts))

    # acquisition geometry -> SMEM scalars + tiny lane one-hots
    srow = np.asarray([sy for sy, _ in src_yx], np.int32)             # (B,)
    scol_oh = np.zeros((B, W), np.float32)
    for b, (_, sx) in enumerate(src_yx):
        scol_oh[b, sx] = 1.0
    rbat = np.zeros((R,), np.int32)
    rrow = np.zeros((R,), np.int32)
    rcol_oh = np.zeros((R, W), np.float32)
    r = 0
    for b in range(B):
        for ry, rx in rec_yx[b]:
            rbat[r], rrow[r] = b, ry
            rcol_oh[r, rx] = 1.0
            r += 1

    c2 = (vp * (DT / DH)) ** 2                    # hoisted out of the kernel
    amp = jnp.transpose(x, (1, 0))                # (nt, B): time on sublanes

    kernel = _make_wave_kernel(B, H, W, R, t_inner)
    out = pl.pallas_call(
        kernel,
        out_shape=jax.ShapeDtypeStruct((nt, R), jnp.float32),
        grid_spec=pltpu.PrefetchScalarGridSpec(
            num_scalar_prefetch=3,
            grid=(nt // t_inner,),
            in_specs=[
                pl.BlockSpec((t_inner, B), lambda c, *_: (c, 0)),   # amp chunk
                pl.BlockSpec((H, W), lambda c, *_: (0, 0)),         # c2
                pl.BlockSpec((B, W), lambda c, *_: (0, 0)),         # src one-hot
                pl.BlockSpec((R, W), lambda c, *_: (0, 0)),         # rec one-hot
            ],
            out_specs=pl.BlockSpec((t_inner, R), lambda c, *_: (c, 0)),
            scratch_shapes=[pltpu.VMEM((2 * B, H, W), jnp.float32)],
        ),
        compiler_params=pltpu.CompilerParams(
            dimension_semantics=("arbitrary",)),      # hard time recurrence
    )(jnp.asarray(srow), jnp.asarray(rbat), jnp.asarray(rrow),
      amp, c2, jnp.asarray(scol_oh), jnp.asarray(rcol_oh))

    # torch: stacked_data (nt, R, n_receiver_types=1); split by reccounts (dim=1)
    stacked = out[..., None]
    split_points = np.cumsum(reccounts)[:-1].tolist()
    return list(jnp.split(stacked, split_points, axis=1))


def wave_rnn_reference(x, vp, smask, rmask):
    """Pure-JAX reference (zero-halo padded Laplacian, same math)."""
    B, nt = x.shape
    H, W = vp.shape
    c2 = (vp * (DT / DH)) ** 2
    h1 = jnp.zeros((B, H, W), jnp.float32)
    h2 = jnp.zeros((B, H, W), jnp.float32)
    recs = []
    for t in range(nt):
        p = jnp.pad(h1, ((0, 0), (1, 1), (1, 1)))
        lap = (p[:, 0:H, 1:W + 1] + p[:, 2:H + 2, 1:W + 1]
               + p[:, 1:H + 1, 0:W] + p[:, 1:H + 1, 2:W + 2] - 4.0 * h1)
        amp = x[:, t][:, None, None]
        h_new = 2.0 * h1 - h2 + c2[None, :, :] * lap + smask * amp
        h2, h1 = h1, h_new
        recs.append(jnp.einsum('brhw,bhw->r', rmask, h_new))
    return jnp.stack(recs, axis=0)


if __name__ == "__main__":
    key = jax.random.PRNGKey(0)
    B, H, W, nt = 2, 16, 128, 16        # 2 shots, 16x128 domain, 16 time steps
    T_INNER = 8

    src_yx = [(2, 4), (2, 100)]                                   # (sy, sx)/shot
    rec_yx = [[(3, 3), (3, 40), (3, 90)], [(5, 2), (5, 64), (5, 120)]]
    reccounts = [len(rc) for rc in rec_yx]
    R = sum(reccounts)

    k1, k2 = jax.random.split(key)
    x = jax.random.normal(k1, (B, nt), dtype=jnp.float32)          # wavelets
    vp = 1500.0 + 100.0 * jax.random.uniform(k2, (H, W), dtype=jnp.float32)

    y = wave_rnn_forward(x, vp, src_yx, rec_yx, t_inner=T_INNER)
    y = [jax.block_until_ready(t) for t in y]

    assert [tuple(t.shape) for t in y] == [(nt, 3, 1), (nt, 3, 1)]

    # reference built from the same geometry (one-hot masks, host side)
    smask_np = np.zeros((B, H, W), np.float32)
    for b, (sy, sx) in enumerate(src_yx):
        smask_np[b, sy, sx] = 1.0
    rmask_np = np.zeros((B, R, H, W), np.float32)
    r = 0
    for b in range(B):
        for (ry, rx) in rec_yx[b]:
            rmask_np[b, r, ry, rx] = 1.0
            r += 1

    ref = wave_rnn_reference(x, vp, jnp.asarray(smask_np), jnp.asarray(rmask_np))
    got = jnp.concatenate([t[..., 0] for t in y], axis=1)
    np.testing.assert_allclose(np.asarray(got), np.asarray(ref),
                               rtol=1e-4, atol=1e-4)
    assert not np.any(np.isnan(np.asarray(got)))     # y.has_nan()
    print("KERNEL_OK")
</pallas_src>

<mosaic_0001>
module attributes {stable_mosaic.version = 11 : i64} {
  func.func @kernel(%arg0: i32, %arg1: memref<2xi32, #tpu.memory_space<smem>>, %arg2: memref<6xi32, #tpu.memory_space<smem>>, %arg3: memref<6xi32, #tpu.memory_space<smem>>, %arg4: memref<8x2xf32, #tpu.memory_space<vmem>>, %arg5: memref<16x128xf32, #tpu.memory_space<vmem>>, %arg6: memref<2x128xf32, #tpu.memory_space<vmem>>, %arg7: memref<6x128xf32, #tpu.memory_space<vmem>>, %arg8: memref<8x6xf32, #tpu.memory_space<vmem>>, %arg9: memref<4x16x128xf32, #tpu.memory_space<vmem>>) attributes {dimension_semantics = [#tpu.dimension_semantics<arbitrary>], iteration_bounds = array<i64: 2>, scalar_prefetch = 3 : i64, scratch_operands = 1 : i64, tpu.core_type = #tpu.core_type<tc>, window_params = [{transform_indices = @transform_0, window_bounds = array<i64: 8, 2>}, {pipeline_mode = #tpu.pipeline_mode<synchronous>, transform_indices = @transform_1, window_bounds = array<i64: 16, 128>}, {pipeline_mode = #tpu.pipeline_mode<synchronous>, transform_indices = @transform_2, window_bounds = array<i64: 2, 128>}, {pipeline_mode = #tpu.pipeline_mode<synchronous>, transform_indices = @transform_3, window_bounds = array<i64: 6, 128>}, {transform_indices = @transform_4, window_bounds = array<i64: 8, 6>}]} {
    %c0_i32 = arith.constant 0 : i32
    %0 = arith.cmpi eq, %arg0, %c0_i32 : i32
    %1 = arith.extui %0 : i1 to i32
    %c0_i32_0 = arith.constant 0 : i32
    %2 = arith.cmpi ne, %1, %c0_i32_0 : i32
    scf.if %2 {
      %cst_586 = arith.constant 0.000000e+00 : f32
      %1335 = vector.broadcast %cst_586 : f32 to vector<4x16x128xf32>
      %c0_587 = arith.constant 0 : index
      %c0_588 = arith.constant 0 : index
      %c0_589 = arith.constant 0 : index
      %1336 = vector.load %arg9[%c0_587, %c0_588, %c0_589] : memref<4x16x128xf32, #tpu.memory_space<vmem>>, vector<4x16x128xf32>
      tpu.vector_store %arg9[%c0_587, %c0_588, %c0_589], %1335 {strides = array<i32>} : memref<4x16x128xf32, #tpu.memory_space<vmem>>, vector<4x16x128xf32>,
    } else {
    }
    %c0 = arith.constant 0 : index
    %c0_1 = arith.constant 0 : index
    %3 = vector.load %arg5[%c0, %c0_1] : memref<16x128xf32, #tpu.memory_space<vmem>>, vector<16x128xf32>
    %c0_2 = arith.constant 0 : index
    %c0_3 = arith.constant 0 : index
    %4 = vector.load %arg6[%c0_2, %c0_3] : memref<2x128xf32, #tpu.memory_space<vmem>>, vector<2x128xf32>
    %c0_4 = arith.constant 0 : index
    %c0_5 = arith.constant 0 : index
    %5 = vector.load %arg7[%c0_4, %c0_5] : memref<6x128xf32, #tpu.memory_space<vmem>>, vector<6x128xf32>
    %6 = tpu.iota {dimensions = array<i32: 0>} : vector<16x128xi32>
    %7 = tpu.iota {dimensions = array<i32: 1>} : vector<16x128xi32>
    %c0_i32_6 = arith.constant 0 : i32
    %8 = vector.broadcast %c0_i32_6 : i32 to vector<16x128xi32>
    %9 = arith.cmpi sgt, %6, %8 : vector<16x128xi32>
    %10 = arith.extui %9 : vector<16x128xi1> to vector<16x128xi32>
    %11 = arith.sitofp %10 : vector<16x128xi32> to vector<16x128xf32>
    %c15_i32 = arith.constant 15 : i32
    %12 = vector.broadcast %c15_i32 : i32 to vector<16x128xi32>
    %13 = arith.cmpi slt, %6, %12 : vector<16x128xi32>
    %14 = arith.extui %13 : vector<16x128xi1> to vector<16x128xi32>
    %15 = arith.sitofp %14 : vector<16x128xi32> to vector<16x128xf32>
    %c0_i32_7 = arith.constant 0 : i32
    %16 = vector.broadcast %c0_i32_7 : i32 to vector<16x128xi32>
    %17 = arith.cmpi sgt, %7, %16 : vector<16x128xi32>
    %18 = arith.extui %17 : vector<16x128xi1> to vector<16x128xi32>
    %19 = arith.sitofp %18 : vector<16x128xi32> to vector<16x128xf32>
    %c127_i32 = arith.constant 127 : i32
    %20 = vector.broadcast %c127_i32 : i32 to vector<16x128xi32>
    %21 = arith.cmpi slt, %7, %20 : vector<16x128xi32>
    %22 = arith.extui %21 : vector<16x128xi1> to vector<16x128xi32>
    %23 = arith.sitofp %22 : vector<16x128xi32> to vector<16x128xf32>
    %c0_8 = arith.constant 0 : index
    %24 = memref.load %arg1[%c0_8] : memref<2xi32, #tpu.memory_space<smem>>
    %c1 = arith.constant 1 : index
    %25 = memref.load %arg1[%c1] : memref<2xi32, #tpu.memory_space<smem>>
    %c0_9 = arith.constant 0 : index
    %26 = memref.load %arg2[%c0_9] : memref<6xi32, #tpu.memory_space<smem>>
    %c1_10 = arith.constant 1 : index
    %27 = memref.load %arg2[%c1_10] : memref<6xi32, #tpu.memory_space<smem>>
    %c2 = arith.constant 2 : index
    %28 = memref.load %arg2[%c2] : memref<6xi32, #tpu.memory_space<smem>>
    %c3 = arith.constant 3 : index
    %29 = memref.load %arg2[%c3] : memref<6xi32, #tpu.memory_space<smem>>
    %c4 = arith.constant 4 : index
    %30 = memref.load %arg2[%c4] : memref<6xi32, #tpu.memory_space<smem>>
    %c5 = arith.constant 5 : index
    %31 = memref.load %arg2[%c5] : memref<6xi32, #tpu.memory_space<smem>>
    %c0_11 = arith.constant 0 : index
    %32 = memref.load %arg3[%c0_11] : memref<6xi32, #tpu.memory_space<smem>>
    %c1_12 = arith.constant 1 : index
    %33 = memref.load %arg3[%c1_12] : memref<6xi32, #tpu.memory_space<smem>>
    %c2_13 = arith.constant 2 : index
    %34 = memref.load %arg3[%c2_13] : memref<6xi32, #tpu.memory_space<smem>>
    %c3_14 = arith.constant 3 : index
    %35 = memref.load %arg3[%c3_14] : memref<6xi32, #tpu.memory_space<smem>>
    %c4_15 = arith.constant 4 : index
    %36 = memref.load %arg3[%c4_15] : memref<6xi32, #tpu.memory_space<smem>>
    %c5_16 = arith.constant 5 : index
    %37 = memref.load %arg3[%c5_16] : memref<6xi32, #tpu.memory_space<smem>>
    %c8_i32 = arith.constant 8 : i32
    %38 = arith.muli %arg0, %c8_i32 : i32
    %c0_i32_17 = arith.constant 0 : i32
    %39 = arith.addi %38, %c0_i32_17 : i32
    %c2_i32 = arith.constant 2 : i32
    %c0_i32_18 = arith.constant 0 : i32
    %40 = arith.cmpi eq, %c2_i32, %c0_i32_18 : i32
    %c1_i32 = arith.constant 1 : i32
    %41 = arith.select %40, %c1_i32, %c2_i32 : i32
    %42 = arith.remsi %39, %41 : i32
    %c0_i32_19 = arith.constant 0 : i32
    %43 = arith.cmpi ne, %42, %c0_i32_19 : i32
    %c0_i32_20 = arith.constant 0 : i32
    %44 = arith.cmpi slt, %42, %c0_i32_20 : i32
    %c0_i32_21 = arith.constant 0 : i32
    %45 = arith.cmpi slt, %41, %c0_i32_21 : i32
    %46 = arith.xori %44, %45 : i1
    %47 = arith.andi %46, %43 : i1
    %48 = arith.addi %42, %41 : i32
    %49 = arith.select %47, %48, %42 : i32
    %c1_i32_22 = arith.constant 1 : i32
    %50 = arith.subi %c1_i32_22, %49 : i32
    %c2_i32_23 = arith.constant 2 : i32
    %51 = arith.muli %49, %c2_i32_23 : i32
    %c0_i32_24 = arith.constant 0 : i32
    %52 = arith.addi %51, %c0_i32_24 : i32
    %53 = arith.index_cast %52 : i32 to index
    %c0_25 = arith.constant 0 : index
    %c0_26 = arith.constant 0 : index
    %54 = vector.load %arg9[%53, %c0_25, %c0_26] : memref<4x16x128xf32, #tpu.memory_space<vmem>>, vector<1x16x128xf32>
    %55 = vector.shape_cast %54 : vector<1x16x128xf32> to vector<16x128xf32>
    %c2_i32_27 = arith.constant 2 : i32
    %56 = arith.muli %50, %c2_i32_27 : i32
    %c0_i32_28 = arith.constant 0 : i32
    %57 = arith.addi %56, %c0_i32_28 : i32
    %58 = arith.index_cast %57 : i32 to index
    %c0_29 = arith.constant 0 : index
    %c0_30 = arith.constant 0 : index
    %59 = vector.load %arg9[%58, %c0_29, %c0_30] : memref<4x16x128xf32, #tpu.memory_space<vmem>>, vector<1x16x128xf32>
    %60 = vector.shape_cast %59 : vector<1x16x128xf32> to vector<16x128xf32>
    %c1_i32_31 = arith.constant 1 : i32
    %61 = tpu.dynamic_rotate %55 by %c1_i32_31 dim 0 : vector<16x128xf32>, i32 -> vector<16x128xf32>
    %62 = arith.mulf %11, %61 : vector<16x128xf32>
    %c15_i32_32 = arith.constant 15 : i32
    %63 = tpu.dynamic_rotate %55 by %c15_i32_32 dim 0 : vector<16x128xf32>, i32 -> vector<16x128xf32>
    %64 = arith.mulf %15, %63 : vector<16x128xf32>
    %65 = arith.addf %62, %64 : vector<16x128xf32>
    %c1_i32_33 = arith.constant 1 : i32
    %66 = tpu.dynamic_rotate %55 by %c1_i32_33 dim 1 : vector<16x128xf32>, i32 -> vector<16x128xf32>
    %67 = arith.mulf %19, %66 : vector<16x128xf32>
    %68 = arith.addf %65, %67 : vector<16x128xf32>
    %c127_i32_34 = arith.constant 127 : i32
    %69 = tpu.dynamic_rotate %55 by %c127_i32_34 dim 1 : vector<16x128xf32>, i32 -> vector<16x128xf32>
    %70 = arith.mulf %23, %69 : vector<16x128xf32>
    %71 = arith.addf %68, %70 : vector<16x128xf32>
    %cst = arith.constant 4.000000e+00 : f32
    %72 = vector.broadcast %cst : f32 to vector<16x128xf32>
    %73 = arith.mulf %72, %55 : vector<16x128xf32>
    %74 = arith.subf %71, %73 : vector<16x128xf32>
    %cst_35 = arith.constant 2.000000e+00 : f32
    %75 = vector.broadcast %cst_35 : f32 to vector<16x128xf32>
    %76 = arith.mulf %75, %55 : vector<16x128xf32>
    %77 = arith.subf %76, %60 : vector<16x128xf32>
    %78 = arith.mulf %3, %74 : vector<16x128xf32>
    %79 = arith.addf %77, %78 : vector<16x128xf32>
    %c2_i32_36 = arith.constant 2 : i32
    %80 = arith.muli %50, %c2_i32_36 : i32
    %c0_i32_37 = arith.constant 0 : i32
    %81 = arith.addi %80, %c0_i32_37 : i32
    %82 = arith.index_cast %81 : i32 to index
    %c0_38 = arith.constant 0 : index
    %c0_39 = arith.constant 0 : index
    %83 = vector.load %arg9[%82, %c0_38, %c0_39] : memref<4x16x128xf32, #tpu.memory_space<vmem>>, vector<1x16x128xf32>
    %84 = vector.shape_cast %83 : vector<1x16x128xf32> to vector<16x128xf32>
    %85 = vector.shape_cast %79 : vector<16x128xf32> to vector<1x16x128xf32>
    tpu.vector_store %arg9[%82, %c0_38, %c0_39], %85 {strides = array<i32>} : memref<4x16x128xf32, #tpu.memory_space<vmem>>, vector<1x16x128xf32>,
    %86 = arith.index_cast %c0_i32_17 : i32 to index
    %c0_40 = arith.constant 0 : index
    %87 = vector.load %arg4[%86, %c0_40] : memref<8x2xf32, #tpu.memory_space<vmem>>, vector<1x1xf32>
    %c2_i32_41 = arith.constant 2 : i32
    %88 = arith.muli %50, %c2_i32_41 : i32
    %c0_i32_42 = arith.constant 0 : i32
    %89 = arith.addi %88, %c0_i32_42 : i32
    %90 = arith.index_cast %89 : i32 to index
    %91 = arith.index_cast %24 : i32 to index
    %c0_43 = arith.constant 0 : index
    %92 = vector.load %arg9[%90, %91, %c0_43] : memref<4x16x128xf32, #tpu.memory_space<vmem>>, vector<1x1x128xf32>
    %93 = vector.shape_cast %92 : vector<1x1x128xf32> to vector<1x128xf32>
    %94 = vector.extract_strided_slice %4 {offsets = [0, 0], sizes = [1, 128], strides = [1, 1]} : vector<2x128xf32> to vector<1x128xf32>
    %95 = vector.broadcast %87 : vector<1x1xf32> to vector<1x128xf32>
    %96 = arith.mulf %95, %94 : vector<1x128xf32>
    %97 = arith.addf %93, %96 : vector<1x128xf32>
    %c2_i32_44 = arith.constant 2 : i32
    %98 = arith.muli %50, %c2_i32_44 : i32
    %c0_i32_45 = arith.constant 0 : i32
    %99 = arith.addi %98, %c0_i32_45 : i32
    %100 = arith.index_cast %99 : i32 to index
    %101 = arith.index_cast %24 : i32 to index
    %c0_46 = arith.constant 0 : index
    %102 = vector.load %arg9[%100, %101, %c0_46] : memref<4x16x128xf32, #tpu.memory_space<vmem>>, vector<1x1x128xf32>
    %103 = vector.shape_cast %102 : vector<1x1x128xf32> to vector<1x128xf32>
    %104 = vector.shape_cast %97 : vector<1x128xf32> to vector<1x1x128xf32>
    tpu.vector_store %arg9[%100, %101, %c0_46], %104 {strides = array<i32>} : memref<4x16x128xf32, #tpu.memory_space<vmem>>, vector<1x1x128xf32>,
    %c2_i32_47 = arith.constant 2 : i32
    %105 = arith.muli %49, %c2_i32_47 : i32
    %c1_i32_48 = arith.constant 1 : i32
    %106 = arith.addi %105, %c1_i32_48 : i32
    %107 = arith.index_cast %106 : i32 to index
    %c0_49 = arith.constant 0 : index
    %c0_50 = arith.constant 0 : index
    %108 = vector.load %arg9[%107, %c0_49, %c0_50] : memref<4x16x128xf32, #tpu.memory_space<vmem>>, vector<1x16x128xf32>
    %109 = vector.shape_cast %108 : vector<1x16x128xf32> to vector<16x128xf32>
    %c2_i32_51 = arith.constant 2 : i32
    %110 = arith.muli %50, %c2_i32_51 : i32
    %c1_i32_52 = arith.constant 1 : i32
    %111 = arith.addi %110, %c1_i32_52 : i32
    %112 = arith.index_cast %111 : i32 to index
    %c0_53 = arith.constant 0 : index
    %c0_54 = arith.constant 0 : index
    %113 = vector.load %arg9[%112, %c0_53, %c0_54] : memref<4x16x128xf32, #tpu.memory_space<vmem>>, vector<1x16x128xf32>
    %114 = vector.shape_cast %113 : vector<1x16x128xf32> to vector<16x128xf32>
    %c1_i32_55 = arith.constant 1 : i32
    %115 = tpu.dynamic_rotate %109 by %c1_i32_55 dim 0 : vector<16x128xf32>, i32 -> vector<16x128xf32>
    %116 = arith.mulf %11, %115 : vector<16x128xf32>
    %c15_i32_56 = arith.constant 15 : i32
    %117 = tpu.dynamic_rotate %109 by %c15_i32_56 dim 0 : vector<16x128xf32>, i32 -> vector<16x128xf32>
    %118 = arith.mulf %15, %117 : vector<16x128xf32>
    %119 = arith.addf %116, %118 : vector<16x128xf32>
    %c1_i32_57 = arith.constant 1 : i32
    %120 = tpu.dynamic_rotate %109 by %c1_i32_57 dim 1 : vector<16x128xf32>, i32 -> vector<16x128xf32>
    %121 = arith.mulf %19, %120 : vector<16x128xf32>
    %122 = arith.addf %119, %121 : vector<16x128xf32>
    %c127_i32_58 = arith.constant 127 : i32
    %123 = tpu.dynamic_rotate %109 by %c127_i32_58 dim 1 : vector<16x128xf32>, i32 -> vector<16x128xf32>
    %124 = arith.mulf %23, %123 : vector<16x128xf32>
    %125 = arith.addf %122, %124 : vector<16x128xf32>
    %cst_59 = arith.constant 4.000000e+00 : f32
    %126 = vector.broadcast %cst_59 : f32 to vector<16x128xf32>
    %127 = arith.mulf %126, %109 : vector<16x128xf32>
    %128 = arith.subf %125, %127 : vector<16x128xf32>
    %cst_60 = arith.constant 2.000000e+00 : f32
    %129 = vector.broadcast %cst_60 : f32 to vector<16x128xf32>
    %130 = arith.mulf %129, %109 : vector<16x128xf32>
    %131 = arith.subf %130, %114 : vector<16x128xf32>
    %132 = arith.mulf %3, %128 : vector<16x128xf32>
    %133 = arith.addf %131, %132 : vector<16x128xf32>
    %c2_i32_61 = arith.constant 2 : i32
    %134 = arith.muli %50, %c2_i32_61 : i32
    %c1_i32_62 = arith.constant 1 : i32
    %135 = arith.addi %134, %c1_i32_62 : i32
    %136 = arith.index_cast %135 : i32 to index
    %c0_63 = arith.constant 0 : index
    %c0_64 = arith.constant 0 : index
    %137 = vector.load %arg9[%136, %c0_63, %c0_64] : memref<4x16x128xf32, #tpu.memory_space<vmem>>, vector<1x16x128xf32>
    %138 = vector.shape_cast %137 : vector<1x16x128xf32> to vector<16x128xf32>
    %139 = vector.shape_cast %133 : vector<16x128xf32> to vector<1x16x128xf32>
    tpu.vector_store %arg9[%136, %c0_63, %c0_64], %139 {strides = array<i32>} : memref<4x16x128xf32, #tpu.memory_space<vmem>>, vector<1x16x128xf32>,
    %140 = arith.index_cast %c0_i32_17 : i32 to index
    %c1_65 = arith.constant 1 : index
    %141 = vector.load %arg4[%140, %c1_65] : memref<8x2xf32, #tpu.memory_space<vmem>>, vector<1x1xf32>
    %c2_i32_66 = arith.constant 2 : i32
    %142 = arith.muli %50, %c2_i32_66 : i32
    %c1_i32_67 = arith.constant 1 : i32
    %143 = arith.addi %142, %c1_i32_67 : i32
    %144 = arith.index_cast %143 : i32 to index
    %145 = arith.index_cast %25 : i32 to index
    %c0_68 = arith.constant 0 : index
    %146 = vector.load %arg9[%144, %145, %c0_68] : memref<4x16x128xf32, #tpu.memory_space<vmem>>, vector<1x1x128xf32>
    %147 = vector.shape_cast %146 : vector<1x1x128xf32> to vector<1x128xf32>
    %148 = vector.extract_strided_slice %4 {offsets = [1, 0], sizes = [1, 128], strides = [1, 1]} : vector<2x128xf32> to vector<1x128xf32>
    %149 = vector.broadcast %141 : vector<1x1xf32> to vector<1x128xf32>
    %150 = arith.mulf %149, %148 : vector<1x128xf32>
    %151 = arith.addf %147, %150 : vector<1x128xf32>
    %c2_i32_69 = arith.constant 2 : i32
    %152 = arith.muli %50, %c2_i32_69 : i32
    %c1_i32_70 = arith.constant 1 : i32
    %153 = arith.addi %152, %c1_i32_70 : i32
    %154 = arith.index_cast %153 : i32 to index
    %155 = arith.index_cast %25 : i32 to index
    %c0_71 = arith.constant 0 : index
    %156 = vector.load %arg9[%154, %155, %c0_71] : memref<4x16x128xf32, #tpu.memory_space<vmem>>, vector<1x1x128xf32>
    %157 = vector.shape_cast %156 : vector<1x1x128xf32> to vector<1x128xf32>
    %158 = vector.shape_cast %151 : vector<1x128xf32> to vector<1x1x128xf32>
    tpu.vector_store %arg9[%154, %155, %c0_71], %158 {strides = array<i32>} : memref<4x16x128xf32, #tpu.memory_space<vmem>>, vector<1x1x128xf32>,
    %c2_i32_72 = arith.constant 2 : i32
    %159 = arith.muli %50, %c2_i32_72 : i32
    %160 = arith.addi %159, %26 : i32
    %161 = arith.index_cast %160 : i32 to index
    %162 = arith.index_cast %32 : i32 to index
    %c0_73 = arith.constant 0 : index
    %163 = vector.load %arg9[%161, %162, %c0_73] : memref<4x16x128xf32, #tpu.memory_space<vmem>>, vector<1x1x128xf32>
    %164 = vector.shape_cast %163 : vector<1x1x128xf32> to vector<1x128xf32>
    %c2_i32_74 = arith.constant 2 : i32
    %165 = arith.muli %50, %c2_i32_74 : i32
    %166 = arith.addi %165, %27 : i32
    %167 = arith.index_cast %166 : i32 to index
    %168 = arith.index_cast %33 : i32 to index
    %c0_75 = arith.constant 0 : index
    %169 = vector.load %arg9[%167, %168, %c0_75] : memref<4x16x128xf32, #tpu.memory_space<vmem>>, vector<1x1x128xf32>
    %170 = vector.shape_cast %169 : vector<1x1x128xf32> to vector<1x128xf32>
    %c2_i32_76 = arith.constant 2 : i32
    %171 = arith.muli %50, %c2_i32_76 : i32
    %172 = arith.addi %171, %28 : i32
    %173 = arith.index_cast %172 : i32 to index
    %174 = arith.index_cast %34 : i32 to index
    %c0_77 = arith.constant 0 : index
    %175 = vector.load %arg9[%173, %174, %c0_77] : memref<4x16x128xf32, #tpu.memory_space<vmem>>, vector<1x1x128xf32>
    %176 = vector.shape_cast %175 : vector<1x1x128xf32> to vector<1x128xf32>
    %c2_i32_78 = arith.constant 2 : i32
    %177 = arith.muli %50, %c2_i32_78 : i32
    %178 = arith.addi %177, %29 : i32
    %179 = arith.index_cast %178 : i32 to index
    %180 = arith.index_cast %35 : i32 to index
    %c0_79 = arith.constant 0 : index
    %181 = vector.load %arg9[%179, %180, %c0_79] : memref<4x16x128xf32, #tpu.memory_space<vmem>>, vector<1x1x128xf32>
    %182 = vector.shape_cast %181 : vector<1x1x128xf32> to vector<1x128xf32>
    %c2_i32_80 = arith.constant 2 : i32
    %183 = arith.muli %50, %c2_i32_80 : i32
    %184 = arith.addi %183, %30 : i32
    %185 = arith.index_cast %184 : i32 to index
    %186 = arith.index_cast %36 : i32 to index
    %c0_81 = arith.constant 0 : index
    %187 = vector.load %arg9[%185, %186, %c0_81] : memref<4x16x128xf32, #tpu.memory_space<vmem>>, vector<1x1x128xf32>
    %188 = vector.shape_cast %187 : vector<1x1x128xf32> to vector<1x128xf32>
    %c2_i32_82 = arith.constant 2 : i32
    %189 = arith.muli %50, %c2_i32_82 : i32
    %190 = arith.addi %189, %31 : i32
    %191 = arith.index_cast %190 : i32 to index
    %192 = arith.index_cast %37 : i32 to index
    %c0_83 = arith.constant 0 : index
    %193 = vector.load %arg9[%191, %192, %c0_83] : memref<4x16x128xf32, #tpu.memory_space<vmem>>, vector<1x1x128xf32>
    %194 = vector.shape_cast %193 : vector<1x1x128xf32> to vector<1x128xf32>
    %195 = tpu.concatenate %164, %170, %176, %182, %188, %194 in 0 : vector<1x128xf32>, vector<1x128xf32>, vector<1x128xf32>, vector<1x128xf32>, vector<1x128xf32>, vector<1x128xf32> -> vector<6x128xf32>
    %196 = arith.mulf %195, %5 : vector<6x128xf32>
    %cst_84 = arith.constant dense<0.000000e+00> : vector<6xf32>
    %197 = vector.multi_reduction <add>, %196, %cst_84 [1] : vector<6x128xf32> to vector<6xf32>
    %198 = vector.shape_cast %197 : vector<6xf32> to vector<1x6xf32>
    %199 = arith.index_cast %c0_i32_17 : i32 to index
    %c0_85 = arith.constant 0 : index
    %200 = vector.load %arg8[%199, %c0_85] : memref<8x6xf32, #tpu.memory_space<vmem>>, vector<1x6xf32>
    tpu.vector_store %arg8[%199, %c0_85], %198 {strides = array<i32>} : memref<8x6xf32, #tpu.memory_space<vmem>>, vector<1x6xf32>,
    %c1_i32_86 = arith.constant 1 : i32
    %201 = arith.addi %38, %c1_i32_86 : i32
    %c2_i32_87 = arith.constant 2 : i32
    %c0_i32_88 = arith.constant 0 : i32
    %202 = arith.cmpi eq, %c2_i32_87, %c0_i32_88 : i32
    %c1_i32_89 = arith.constant 1 : i32
    %203 = arith.select %202, %c1_i32_89, %c2_i32_87 : i32
    %204 = arith.remsi %201, %203 : i32
    %c0_i32_90 = arith.constant 0 : i32
    %205 = arith.cmpi ne, %204, %c0_i32_90 : i32
    %c0_i32_91 = arith.constant 0 : i32
    %206 = arith.cmpi slt, %204, %c0_i32_91 : i32
    %c0_i32_92 = arith.constant 0 : i32
    %207 = arith.cmpi slt, %203, %c0_i32_92 : i32
    %208 = arith.xori %206, %207 : i1
    %209 = arith.andi %208, %205 : i1
    %210 = arith.addi %204, %203 : i32
    %211 = arith.select %209, %210, %204 : i32
    %c1_i32_93 = arith.constant 1 : i32
    %212 = arith.subi %c1_i32_93, %211 : i32
    %c2_i32_94 = arith.constant 2 : i32
    %213 = arith.muli %211, %c2_i32_94 : i32
    %c0_i32_95 = arith.constant 0 : i32
    %214 = arith.addi %213, %c0_i32_95 : i32
    %215 = arith.index_cast %214 : i32 to index
    %c0_96 = arith.constant 0 : index
    %c0_97 = arith.constant 0 : index
    %216 = vector.load %arg9[%215, %c0_96, %c0_97] : memref<4x16x128xf32, #tpu.memory_space<vmem>>, vector<1x16x128xf32>
    %217 = vector.shape_cast %216 : vector<1x16x128xf32> to vector<16x128xf32>
    %c2_i32_98 = arith.constant 2 : i32
    %218 = arith.muli %212, %c2_i32_98 : i32
    %c0_i32_99 = arith.constant 0 : i32
    %219 = arith.addi %218, %c0_i32_99 : i32
    %220 = arith.index_cast %219 : i32 to index
    %c0_100 = arith.constant 0 : index
    %c0_101 = arith.constant 0 : index
    %221 = vector.load %arg9[%220, %c0_100, %c0_101] : memref<4x16x128xf32, #tpu.memory_space<vmem>>, vector<1x16x128xf32>
    %222 = vector.shape_cast %221 : vector<1x16x128xf32> to vector<16x128xf32>
    %c1_i32_102 = arith.constant 1 : i32
    %223 = tpu.dynamic_rotate %217 by %c1_i32_102 dim 0 : vector<16x128xf32>, i32 -> vector<16x128xf32>
    %224 = arith.mulf %11, %223 : vector<16x128xf32>
    %c15_i32_103 = arith.constant 15 : i32
    %225 = tpu.dynamic_rotate %217 by %c15_i32_103 dim 0 : vector<16x128xf32>, i32 -> vector<16x128xf32>
    %226 = arith.mulf %15, %225 : vector<16x128xf32>
    %227 = arith.addf %224, %226 : vector<16x128xf32>
    %c1_i32_104 = arith.constant 1 : i32
    %228 = tpu.dynamic_rotate %217 by %c1_i32_104 dim 1 : vector<16x128xf32>, i32 -> vector<16x128xf32>
    %229 = arith.mulf %19, %228 : vector<16x128xf32>
    %230 = arith.addf %227, %229 : vector<16x128xf32>
    %c127_i32_105 = arith.constant 127 : i32
    %231 = tpu.dynamic_rotate %217 by %c127_i32_105 dim 1 : vector<16x128xf32>, i32 -> vector<16x128xf32>
    %232 = arith.mulf %23, %231 : vector<16x128xf32>
    %233 = arith.addf %230, %232 : vector<16x128xf32>
    %cst_106 = arith.constant 4.000000e+00 : f32
    %234 = vector.broadcast %cst_106 : f32 to vector<16x128xf32>
    %235 = arith.mulf %234, %217 : vector<16x128xf32>
    %236 = arith.subf %233, %235 : vector<16x128xf32>
    %cst_107 = arith.constant 2.000000e+00 : f32
    %237 = vector.broadcast %cst_107 : f32 to vector<16x128xf32>
    %238 = arith.mulf %237, %217 : vector<16x128xf32>
    %239 = arith.subf %238, %222 : vector<16x128xf32>
    %240 = arith.mulf %3, %236 : vector<16x128xf32>
    %241 = arith.addf %239, %240 : vector<16x128xf32>
    %c2_i32_108 = arith.constant 2 : i32
    %242 = arith.muli %212, %c2_i32_108 : i32
    %c0_i32_109 = arith.constant 0 : i32
    %243 = arith.addi %242, %c0_i32_109 : i32
    %244 = arith.index_cast %243 : i32 to index
    %c0_110 = arith.constant 0 : index
    %c0_111 = arith.constant 0 : index
    %245 = vector.load %arg9[%244, %c0_110, %c0_111] : memref<4x16x128xf32, #tpu.memory_space<vmem>>, vector<1x16x128xf32>
    %246 = vector.shape_cast %245 : vector<1x16x128xf32> to vector<16x128xf32>
    %247 = vector.shape_cast %241 : vector<16x128xf32> to vector<1x16x128xf32>
    tpu.vector_store %arg9[%244, %c0_110, %c0_111], %247 {strides = array<i32>} : memref<4x16x128xf32, #tpu.memory_space<vmem>>, vector<1x16x128xf32>,
    %248 = arith.index_cast %c1_i32_86 : i32 to index
    %c0_112 = arith.constant 0 : index
    %249 = vector.load %arg4[%248, %c0_112] : memref<8x2xf32, #tpu.memory_space<vmem>>, vector<1x1xf32>
    %c2_i32_113 = arith.constant 2 : i32
    %250 = arith.muli %212, %c2_i32_113 : i32
    %c0_i32_114 = arith.constant 0 : i32
    %251 = arith.addi %250, %c0_i32_114 : i32
    %252 = arith.index_cast %251 : i32 to index
    %253 = arith.index_cast %24 : i32 to index
    %c0_115 = arith.constant 0 : index
    %254 = vector.load %arg9[%252, %253, %c0_115] : memref<4x16x128xf32, #tpu.memory_space<vmem>>, vector<1x1x128xf32>
    %255 = vector.shape_cast %254 : vector<1x1x128xf32> to vector<1x128xf32>
    %256 = vector.extract_strided_slice %4 {offsets = [0, 0], sizes = [1, 128], strides = [1, 1]} : vector<2x128xf32> to vector<1x128xf32>
    %257 = vector.broadcast %249 : vector<1x1xf32> to vector<1x128xf32>
    %258 = arith.mulf %257, %256 : vector<1x128xf32>
    %259 = arith.addf %255, %258 : vector<1x128xf32>
    %c2_i32_116 = arith.constant 2 : i32
    %260 = arith.muli %212, %c2_i32_116 : i32
    %c0_i32_117 = arith.constant 0 : i32
    %261 = arith.addi %260, %c0_i32_117 : i32
    %262 = arith.index_cast %261 : i32 to index
    %263 = arith.index_cast %24 : i32 to index
    %c0_118 = arith.constant 0 : index
    %264 = vector.load %arg9[%262, %263, %c0_118] : memref<4x16x128xf32, #tpu.memory_space<vmem>>, vector<1x1x128xf32>
    %265 = vector.shape_cast %264 : vector<1x1x128xf32> to vector<1x128xf32>
    %266 = vector.shape_cast %259 : vector<1x128xf32> to vector<1x1x128xf32>
    tpu.vector_store %arg9[%262, %263, %c0_118], %266 {strides = array<i32>} : memref<4x16x128xf32, #tpu.memory_space<vmem>>, vector<1x1x128xf32>,
    %c2_i32_119 = arith.constant 2 : i32
    %267 = arith.muli %211, %c2_i32_119 : i32
    %c1_i32_120 = arith.constant 1 : i32
    %268 = arith.addi %267, %c1_i32_120 : i32
    %269 = arith.index_cast %268 : i32 to index
    %c0_121 = arith.constant 0 : index
    %c0_122 = arith.constant 0 : index
    %270 = vector.load %arg9[%269, %c0_121, %c0_122] : memref<4x16x128xf32, #tpu.memory_space<vmem>>, vector<1x16x128xf32>
    %271 = vector.shape_cast %270 : vector<1x16x128xf32> to vector<16x128xf32>
    %c2_i32_123 = arith.constant 2 : i32
    %272 = arith.muli %212, %c2_i32_123 : i32
    %c1_i32_124 = arith.constant 1 : i32
    %273 = arith.addi %272, %c1_i32_124 : i32
    %274 = arith.index_cast %273 : i32 to index
    %c0_125 = arith.constant 0 : index
    %c0_126 = arith.constant 0 : index
    %275 = vector.load %arg9[%274, %c0_125, %c0_126] : memref<4x16x128xf32, #tpu.memory_space<vmem>>, vector<1x16x128xf32>
    %276 = vector.shape_cast %275 : vector<1x16x128xf32> to vector<16x128xf32>
    %c1_i32_127 = arith.constant 1 : i32
    %277 = tpu.dynamic_rotate %271 by %c1_i32_127 dim 0 : vector<16x128xf32>, i32 -> vector<16x128xf32>
    %278 = arith.mulf %11, %277 : vector<16x128xf32>
    %c15_i32_128 = arith.constant 15 : i32
    %279 = tpu.dynamic_rotate %271 by %c15_i32_128 dim 0 : vector<16x128xf32>, i32 -> vector<16x128xf32>
    %280 = arith.mulf %15, %279 : vector<16x128xf32>
    %281 = arith.addf %278, %280 : vector<16x128xf32>
    %c1_i32_129 = arith.constant 1 : i32
    %282 = tpu.dynamic_rotate %271 by %c1_i32_129 dim 1 : vector<16x128xf32>, i32 -> vector<16x128xf32>
    %283 = arith.mulf %19, %282 : vector<16x128xf32>
    %284 = arith.addf %281, %283 : vector<16x128xf32>
    %c127_i32_130 = arith.constant 127 : i32
    %285 = tpu.dynamic_rotate %271 by %c127_i32_130 dim 1 : vector<16x128xf32>, i32 -> vector<16x128xf32>
    %286 = arith.mulf %23, %285 : vector<16x128xf32>
    %287 = arith.addf %284, %286 : vector<16x128xf32>
    %cst_131 = arith.constant 4.000000e+00 : f32
    %288 = vector.broadcast %cst_131 : f32 to vector<16x128xf32>
    %289 = arith.mulf %288, %271 : vector<16x128xf32>
    %290 = arith.subf %287, %289 : vector<16x128xf32>
    %cst_132 = arith.constant 2.000000e+00 : f32
    %291 = vector.broadcast %cst_132 : f32 to vector<16x128xf32>
    %292 = arith.mulf %291, %271 : vector<16x128xf32>
    %293 = arith.subf %292, %276 : vector<16x128xf32>
    %294 = arith.mulf %3, %290 : vector<16x128xf32>
    %295 = arith.addf %293, %294 : vector<16x128xf32>
    %c2_i32_133 = arith.constant 2 : i32
    %296 = arith.muli %212, %c2_i32_133 : i32
    %c1_i32_134 = arith.constant 1 : i32
    %297 = arith.addi %296, %c1_i32_134 : i32
    %298 = arith.index_cast %297 : i32 to index
    %c0_135 = arith.constant 0 : index
    %c0_136 = arith.constant 0 : index
    %299 = vector.load %arg9[%298, %c0_135, %c0_136] : memref<4x16x128xf32, #tpu.memory_space<vmem>>, vector<1x16x128xf32>
    %300 = vector.shape_cast %299 : vector<1x16x128xf32> to vector<16x128xf32>
    %301 = vector.shape_cast %295 : vector<16x128xf32> to vector<1x16x128xf32>
    tpu.vector_store %arg9[%298, %c0_135, %c0_136], %301 {strides = array<i32>} : memref<4x16x128xf32, #tpu.memory_space<vmem>>, vector<1x16x128xf32>,
    %302 = arith.index_cast %c1_i32_86 : i32 to index
    %c1_137 = arith.constant 1 : index
    %303 = vector.load %arg4[%302, %c1_137] : memref<8x2xf32, #tpu.memory_space<vmem>>, vector<1x1xf32>
    %c2_i32_138 = arith.constant 2 : i32
    %304 = arith.muli %212, %c2_i32_138 : i32
    %c1_i32_139 = arith.constant 1 : i32
    %305 = arith.addi %304, %c1_i32_139 : i32
    %306 = arith.index_cast %305 : i32 to index
    %307 = arith.index_cast %25 : i32 to index
    %c0_140 = arith.constant 0 : index
    %308 = vector.load %arg9[%306, %307, %c0_140] : memref<4x16x128xf32, #tpu.memory_space<vmem>>, vector<1x1x128xf32>
    %309 = vector.shape_cast %308 : vector<1x1x128xf32> to vector<1x128xf32>
    %310 = vector.extract_strided_slice %4 {offsets = [1, 0], sizes = [1, 128], strides = [1, 1]} : vector<2x128xf32> to vector<1x128xf32>
    %311 = vector.broadcast %303 : vector<1x1xf32> to vector<1x128xf32>
    %312 = arith.mulf %311, %310 : vector<1x128xf32>
    %313 = arith.addf %309, %312 : vector<1x128xf32>
    %c2_i32_141 = arith.constant 2 : i32
    %314 = arith.muli %212, %c2_i32_141 : i32
    %c1_i32_142 = arith.constant 1 : i32
    %315 = arith.addi %314, %c1_i32_142 : i32
    %316 = arith.index_cast %315 : i32 to index
    %317 = arith.index_cast %25 : i32 to index
    %c0_143 = arith.constant 0 : index
    %318 = vector.load %arg9[%316, %317, %c0_143] : memref<4x16x128xf32, #tpu.memory_space<vmem>>, vector<1x1x128xf32>
    %319 = vector.shape_cast %318 : vector<1x1x128xf32> to vector<1x128xf32>
    %320 = vector.shape_cast %313 : vector<1x128xf32> to vector<1x1x128xf32>
    tpu.vector_store %arg9[%316, %317, %c0_143], %320 {strides = array<i32>} : memref<4x16x128xf32, #tpu.memory_space<vmem>>, vector<1x1x128xf32>,
    %c2_i32_144 = arith.constant 2 : i32
    %321 = arith.muli %212, %c2_i32_144 : i32
    %322 = arith.addi %321, %26 : i32
    %323 = arith.index_cast %322 : i32 to index
    %324 = arith.index_cast %32 : i32 to index
    %c0_145 = arith.constant 0 : index
    %325 = vector.load %arg9[%323, %324, %c0_145] : memref<4x16x128xf32, #tpu.memory_space<vmem>>, vector<1x1x128xf32>
    %326 = vector.shape_cast %325 : vector<1x1x128xf32> to vector<1x128xf32>
    %c2_i32_146 = arith.constant 2 : i32
    %327 = arith.muli %212, %c2_i32_146 : i32
    %328 = arith.addi %327, %27 : i32
    %329 = arith.index_cast %328 : i32 to index
    %330 = arith.index_cast %33 : i32 to index
    %c0_147 = arith.constant 0 : index
    %331 = vector.load %arg9[%329, %330, %c0_147] : memref<4x16x128xf32, #tpu.memory_space<vmem>>, vector<1x1x128xf32>
    %332 = vector.shape_cast %331 : vector<1x1x128xf32> to vector<1x128xf32>
    %c2_i32_148 = arith.constant 2 : i32
    %333 = arith.muli %212, %c2_i32_148 : i32
    %334 = arith.addi %333, %28 : i32
    %335 = arith.index_cast %334 : i32 to index
    %336 = arith.index_cast %34 : i32 to index
    %c0_149 = arith.constant 0 : index
    %337 = vector.load %arg9[%335, %336, %c0_149] : memref<4x16x128xf32, #tpu.memory_space<vmem>>, vector<1x1x128xf32>
    %338 = vector.shape_cast %337 : vector<1x1x128xf32> to vector<1x128xf32>
    %c2_i32_150 = arith.constant 2 : i32
    %339 = arith.muli %212, %c2_i32_150 : i32
    %340 = arith.addi %339, %29 : i32
    %341 = arith.index_cast %340 : i32 to index
    %342 = arith.index_cast %35 : i32 to index
    %c0_151 = arith.constant 0 : index
    %343 = vector.load %arg9[%341, %342, %c0_151] : memref<4x16x128xf32, #tpu.memory_space<vmem>>, vector<1x1x128xf32>
    %344 = vector.shape_cast %343 : vector<1x1x128xf32> to vector<1x128xf32>
    %c2_i32_152 = arith.constant 2 : i32
    %345 = arith.muli %212, %c2_i32_152 : i32
    %346 = arith.addi %345, %30 : i32
    %347 = arith.index_cast %346 : i32 to index
    %348 = arith.index_cast %36 : i32 to index
    %c0_153 = arith.constant 0 : index
    %349 = vector.load %arg9[%347, %348, %c0_153] : memref<4x16x128xf32, #tpu.memory_space<vmem>>, vector<1x1x128xf32>
    %350 = vector.shape_cast %349 : vector<1x1x128xf32> to vector<1x128xf32>
    %c2_i32_154 = arith.constant 2 : i32
    %351 = arith.muli %212, %c2_i32_154 : i32
    %352 = arith.addi %351, %31 : i32
    %353 = arith.index_cast %352 : i32 to index
    %354 = arith.index_cast %37 : i32 to index
    %c0_155 = arith.constant 0 : index
    %355 = vector.load %arg9[%353, %354, %c0_155] : memref<4x16x128xf32, #tpu.memory_space<vmem>>, vector<1x1x128xf32>
    %356 = vector.shape_cast %355 : vector<1x1x128xf32> to vector<1x128xf32>
    %357 = tpu.concatenate %326, %332, %338, %344, %350, %356 in 0 : vector<1x128xf32>, vector<1x128xf32>, vector<1x128xf32>, vector<1x128xf32>, vector<1x128xf32>, vector<1x128xf32> -> vector<6x128xf32>
    %358 = arith.mulf %357, %5 : vector<6x128xf32>
    %cst_156 = arith.constant dense<0.000000e+00> : vector<6xf32>
    %359 = vector.multi_reduction <add>, %358, %cst_156 [1] : vector<6x128xf32> to vector<6xf32>
    %360 = vector.shape_cast %359 : vector<6xf32> to vector<1x6xf32>
    %361 = arith.index_cast %c1_i32_86 : i32 to index
    %c0_157 = arith.constant 0 : index
    %362 = vector.load %arg8[%361, %c0_157] : memref<8x6xf32, #tpu.memory_space<vmem>>, vector<1x6xf32>
    tpu.vector_store %arg8[%361, %c0_157], %360 {strides = array<i32>} : memref<8x6xf32, #tpu.memory_space<vmem>>, vector<1x6xf32>,
    %c2_i32_158 = arith.constant 2 : i32
    %363 = arith.addi %38, %c2_i32_158 : i32
    %c2_i32_159 = arith.constant 2 : i32
    %c0_i32_160 = arith.constant 0 : i32
    %364 = arith.cmpi eq, %c2_i32_159, %c0_i32_160 : i32
    %c1_i32_161 = arith.constant 1 : i32
    %365 = arith.select %364, %c1_i32_161, %c2_i32_159 : i32
    %366 = arith.remsi %363, %365 : i32
    %c0_i32_162 = arith.constant 0 : i32
    %367 = arith.cmpi ne, %366, %c0_i32_162 : i32
    %c0_i32_163 = arith.constant 0 : i32
    %368 = arith.cmpi slt, %366, %c0_i32_163 : i32
    %c0_i32_164 = arith.constant 0 : i32
    %369 = arith.cmpi slt, %365, %c0_i32_164 : i32
    %370 = arith.xori %368, %369 : i1
    %371 = arith.andi %370, %367 : i1
    %372 = arith.addi %366, %365 : i32
    %373 = arith.select %371, %372, %366 : i32
    %c1_i32_165 = arith.constant 1 : i32
    %374 = arith.subi %c1_i32_165, %373 : i32
    %c2_i32_166 = arith.constant 2 : i32
    %375 = arith.muli %373, %c2_i32_166 : i32
    %c0_i32_167 = arith.constant 0 : i32
    %376 = arith.addi %375, %c0_i32_167 : i32
    %377 = arith.index_cast %376 : i32 to index
    %c0_168 = arith.constant 0 : index
    %c0_169 = arith.constant 0 : index
    %378 = vector.load %arg9[%377, %c0_168, %c0_169] : memref<4x16x128xf32, #tpu.memory_space<vmem>>, vector<1x16x128xf32>
    %379 = vector.shape_cast %378 : vector<1x16x128xf32> to vector<16x128xf32>
    %c2_i32_170 = arith.constant 2 : i32
    %380 = arith.muli %374, %c2_i32_170 : i32
    %c0_i32_171 = arith.constant 0 : i32
    %381 = arith.addi %380, %c0_i32_171 : i32
    %382 = arith.index_cast %381 : i32 to index
    %c0_172 = arith.constant 0 : index
    %c0_173 = arith.constant 0 : index
    %383 = vector.load %arg9[%382, %c0_172, %c0_173] : memref<4x16x128xf32, #tpu.memory_space<vmem>>, vector<1x16x128xf32>
    %384 = vector.shape_cast %383 : vector<1x16x128xf32> to vector<16x128xf32>
    %c1_i32_174 = arith.constant 1 : i32
    %385 = tpu.dynamic_rotate %379 by %c1_i32_174 dim 0 : vector<16x128xf32>, i32 -> vector<16x128xf32>
    %386 = arith.mulf %11, %385 : vector<16x128xf32>
    %c15_i32_175 = arith.constant 15 : i32
    %387 = tpu.dynamic_rotate %379 by %c15_i32_175 dim 0 : vector<16x128xf32>, i32 -> vector<16x128xf32>
    %388 = arith.mulf %15, %387 : vector<16x128xf32>
    %389 = arith.addf %386, %388 : vector<16x128xf32>
    %c1_i32_176 = arith.constant 1 : i32
    %390 = tpu.dynamic_rotate %379 by %c1_i32_176 dim 1 : vector<16x128xf32>, i32 -> vector<16x128xf32>
    %391 = arith.mulf %19, %390 : vector<16x128xf32>
    %392 = arith.addf %389, %391 : vector<16x128xf32>
    %c127_i32_177 = arith.constant 127 : i32
    %393 = tpu.dynamic_rotate %379 by %c127_i32_177 dim 1 : vector<16x128xf32>, i32 -> vector<16x128xf32>
    %394 = arith.mulf %23, %393 : vector<16x128xf32>
    %395 = arith.addf %392, %394 : vector<16x128xf32>
    %cst_178 = arith.constant 4.000000e+00 : f32
    %396 = vector.broadcast %cst_178 : f32 to vector<16x128xf32>
    %397 = arith.mulf %396, %379 : vector<16x128xf32>
    %398 = arith.subf %395, %397 : vector<16x128xf32>
    %cst_179 = arith.constant 2.000000e+00 : f32
    %399 = vector.broadcast %cst_179 : f32 to vector<16x128xf32>
    %400 = arith.mulf %399, %379 : vector<16x128xf32>
    %401 = arith.subf %400, %384 : vector<16x128xf32>
    %402 = arith.mulf %3, %398 : vector<16x128xf32>
    %403 = arith.addf %401, %402 : vector<16x128xf32>
    %c2_i32_180 = arith.constant 2 : i32
    %404 = arith.muli %374, %c2_i32_180 : i32
    %c0_i32_181 = arith.constant 0 : i32
    %405 = arith.addi %404, %c0_i32_181 : i32
    %406 = arith.index_cast %405 : i32 to index
    %c0_182 = arith.constant 0 : index
    %c0_183 = arith.constant 0 : index
    %407 = vector.load %arg9[%406, %c0_182, %c0_183] : memref<4x16x128xf32, #tpu.memory_space<vmem>>, vector<1x16x128xf32>
    %408 = vector.shape_cast %407 : vector<1x16x128xf32> to vector<16x128xf32>
    %409 = vector.shape_cast %403 : vector<16x128xf32> to vector<1x16x128xf32>
    tpu.vector_store %arg9[%406, %c0_182, %c0_183], %409 {strides = array<i32>} : memref<4x16x128xf32, #tpu.memory_space<vmem>>, vector<1x16x128xf32>,
    %410 = arith.index_cast %c2_i32_158 : i32 to index
    %c0_184 = arith.constant 0 : index
    %411 = vector.load %arg4[%410, %c0_184] : memref<8x2xf32, #tpu.memory_space<vmem>>, vector<1x1xf32>
    %c2_i32_185 = arith.constant 2 : i32
    %412 = arith.muli %374, %c2_i32_185 : i32
    %c0_i32_186 = arith.constant 0 : i32
    %413 = arith.addi %412, %c0_i32_186 : i32
    %414 = arith.index_cast %413 : i32 to index
    %415 = arith.index_cast %24 : i32 to index
    %c0_187 = arith.constant 0 : index
    %416 = vector.load %arg9[%414, %415, %c0_187] : memref<4x16x128xf32, #tpu.memory_space<vmem>>, vector<1x1x128xf32>
    %417 = vector.shape_cast %416 : vector<1x1x128xf32> to vector<1x128xf32>
    %418 = vector.extract_strided_slice %4 {offsets = [0, 0], sizes = [1, 128], strides = [1, 1]} : vector<2x128xf32> to vector<1x128xf32>
    %419 = vector.broadcast %411 : vector<1x1xf32> to vector<1x128xf32>
    %420 = arith.mulf %419, %418 : vector<1x128xf32>
    %421 = arith.addf %417, %420 : vector<1x128xf32>
    %c2_i32_188 = arith.constant 2 : i32
    %422 = arith.muli %374, %c2_i32_188 : i32
    %c0_i32_189 = arith.constant 0 : i32
    %423 = arith.addi %422, %c0_i32_189 : i32
    %424 = arith.index_cast %423 : i32 to index
    %425 = arith.index_cast %24 : i32 to index
    %c0_190 = arith.constant 0 : index
    %426 = vector.load %arg9[%424, %425, %c0_190] : memref<4x16x128xf32, #tpu.memory_space<vmem>>, vector<1x1x128xf32>
    %427 = vector.shape_cast %426 : vector<1x1x128xf32> to vector<1x128xf32>
    %428 = vector.shape_cast %421 : vector<1x128xf32> to vector<1x1x128xf32>
    tpu.vector_store %arg9[%424, %425, %c0_190], %428 {strides = array<i32>} : memref<4x16x128xf32, #tpu.memory_space<vmem>>, vector<1x1x128xf32>,
    %c2_i32_191 = arith.constant 2 : i32
    %429 = arith.muli %373, %c2_i32_191 : i32
    %c1_i32_192 = arith.constant 1 : i32
    %430 = arith.addi %429, %c1_i32_192 : i32
    %431 = arith.index_cast %430 : i32 to index
    %c0_193 = arith.constant 0 : index
    %c0_194 = arith.constant 0 : index
    %432 = vector.load %arg9[%431, %c0_193, %c0_194] : memref<4x16x128xf32, #tpu.memory_space<vmem>>, vector<1x16x128xf32>
    %433 = vector.shape_cast %432 : vector<1x16x128xf32> to vector<16x128xf32>
    %c2_i32_195 = arith.constant 2 : i32
    %434 = arith.muli %374, %c2_i32_195 : i32
    %c1_i32_196 = arith.constant 1 : i32
    %435 = arith.addi %434, %c1_i32_196 : i32
    %436 = arith.index_cast %435 : i32 to index
    %c0_197 = arith.constant 0 : index
    %c0_198 = arith.constant 0 : index
    %437 = vector.load %arg9[%436, %c0_197, %c0_198] : memref<4x16x128xf32, #tpu.memory_space<vmem>>, vector<1x16x128xf32>
    %438 = vector.shape_cast %437 : vector<1x16x128xf32> to vector<16x128xf32>
    %c1_i32_199 = arith.constant 1 : i32
    %439 = tpu.dynamic_rotate %433 by %c1_i32_199 dim 0 : vector<16x128xf32>, i32 -> vector<16x128xf32>
    %440 = arith.mulf %11, %439 : vector<16x128xf32>
    %c15_i32_200 = arith.constant 15 : i32
    %441 = tpu.dynamic_rotate %433 by %c15_i32_200 dim 0 : vector<16x128xf32>, i32 -> vector<16x128xf32>
    %442 = arith.mulf %15, %441 : vector<16x128xf32>
    %443 = arith.addf %440, %442 : vector<16x128xf32>
    %c1_i32_201 = arith.constant 1 : i32
    %444 = tpu.dynamic_rotate %433 by %c1_i32_201 dim 1 : vector<16x128xf32>, i32 -> vector<16x128xf32>
    %445 = arith.mulf %19, %444 : vector<16x128xf32>
    %446 = arith.addf %443, %445 : vector<16x128xf32>
    %c127_i32_202 = arith.constant 127 : i32
    %447 = tpu.dynamic_rotate %433 by %c127_i32_202 dim 1 : vector<16x128xf32>, i32 -> vector<16x128xf32>
    %448 = arith.mulf %23, %447 : vector<16x128xf32>
    %449 = arith.addf %446, %448 : vector<16x128xf32>
    %cst_203 = arith.constant 4.000000e+00 : f32
    %450 = vector.broadcast %cst_203 : f32 to vector<16x128xf32>
    %451 = arith.mulf %450, %433 : vector<16x128xf32>
    %452 = arith.subf %449, %451 : vector<16x128xf32>
    %cst_204 = arith.constant 2.000000e+00 : f32
    %453 = vector.broadcast %cst_204 : f32 to vector<16x128xf32>
    %454 = arith.mulf %453, %433 : vector<16x128xf32>
    %455 = arith.subf %454, %438 : vector<16x128xf32>
    %456 = arith.mulf %3, %452 : vector<16x128xf32>
    %457 = arith.addf %455, %456 : vector<16x128xf32>
    %c2_i32_205 = arith.constant 2 : i32
    %458 = arith.muli %374, %c2_i32_205 : i32
    %c1_i32_206 = arith.constant 1 : i32
    %459 = arith.addi %458, %c1_i32_206 : i32
    %460 = arith.index_cast %459 : i32 to index
    %c0_207 = arith.constant 0 : index
    %c0_208 = arith.constant 0 : index
    %461 = vector.load %arg9[%460, %c0_207, %c0_208] : memref<4x16x128xf32, #tpu.memory_space<vmem>>, vector<1x16x128xf32>
    %462 = vector.shape_cast %461 : vector<1x16x128xf32> to vector<16x128xf32>
    %463 = vector.shape_cast %457 : vector<16x128xf32> to vector<1x16x128xf32>
    tpu.vector_store %arg9[%460, %c0_207, %c0_208], %463 {strides = array<i32>} : memref<4x16x128xf32, #tpu.memory_space<vmem>>, vector<1x16x128xf32>,
    %464 = arith.index_cast %c2_i32_158 : i32 to index
    %c1_209 = arith.constant 1 : index
    %465 = vector.load %arg4[%464, %c1_209] : memref<8x2xf32, #tpu.memory_space<vmem>>, vector<1x1xf32>
    %c2_i32_210 = arith.constant 2 : i32
    %466 = arith.muli %374, %c2_i32_210 : i32
    %c1_i32_211 = arith.constant 1 : i32
    %467 = arith.addi %466, %c1_i32_211 : i32
    %468 = arith.index_cast %467 : i32 to index
    %469 = arith.index_cast %25 : i32 to index
    %c0_212 = arith.constant 0 : index
    %470 = vector.load %arg9[%468, %469, %c0_212] : memref<4x16x128xf32, #tpu.memory_space<vmem>>, vector<1x1x128xf32>
    %471 = vector.shape_cast %470 : vector<1x1x128xf32> to vector<1x128xf32>
    %472 = vector.extract_strided_slice %4 {offsets = [1, 0], sizes = [1, 128], strides = [1, 1]} : vector<2x128xf32> to vector<1x128xf32>
    %473 = vector.broadcast %465 : vector<1x1xf32> to vector<1x128xf32>
    %474 = arith.mulf %473, %472 : vector<1x128xf32>
    %475 = arith.addf %471, %474 : vector<1x128xf32>
    %c2_i32_213 = arith.constant 2 : i32
    %476 = arith.muli %374, %c2_i32_213 : i32
    %c1_i32_214 = arith.constant 1 : i32
    %477 = arith.addi %476, %c1_i32_214 : i32
    %478 = arith.index_cast %477 : i32 to index
    %479 = arith.index_cast %25 : i32 to index
    %c0_215 = arith.constant 0 : index
    %480 = vector.load %arg9[%478, %479, %c0_215] : memref<4x16x128xf32, #tpu.memory_space<vmem>>, vector<1x1x128xf32>
    %481 = vector.shape_cast %480 : vector<1x1x128xf32> to vector<1x128xf32>
    %482 = vector.shape_cast %475 : vector<1x128xf32> to vector<1x1x128xf32>
    tpu.vector_store %arg9[%478, %479, %c0_215], %482 {strides = array<i32>} : memref<4x16x128xf32, #tpu.memory_space<vmem>>, vector<1x1x128xf32>,
    %c2_i32_216 = arith.constant 2 : i32
    %483 = arith.muli %374, %c2_i32_216 : i32
    %484 = arith.addi %483, %26 : i32
    %485 = arith.index_cast %484 : i32 to index
    %486 = arith.index_cast %32 : i32 to index
    %c0_217 = arith.constant 0 : index
    %487 = vector.load %arg9[%485, %486, %c0_217] : memref<4x16x128xf32, #tpu.memory_space<vmem>>, vector<1x1x128xf32>
    %488 = vector.shape_cast %487 : vector<1x1x128xf32> to vector<1x128xf32>
    %c2_i32_218 = arith.constant 2 : i32
    %489 = arith.muli %374, %c2_i32_218 : i32
    %490 = arith.addi %489, %27 : i32
    %491 = arith.index_cast %490 : i32 to index
    %492 = arith.index_cast %33 : i32 to index
    %c0_219 = arith.constant 0 : index
    %493 = vector.load %arg9[%491, %492, %c0_219] : memref<4x16x128xf32, #tpu.memory_space<vmem>>, vector<1x1x128xf32>
    %494 = vector.shape_cast %493 : vector<1x1x128xf32> to vector<1x128xf32>
    %c2_i32_220 = arith.constant 2 : i32
    %495 = arith.muli %374, %c2_i32_220 : i32
    %496 = arith.addi %495, %28 : i32
    %497 = arith.index_cast %496 : i32 to index
    %498 = arith.index_cast %34 : i32 to index
    %c0_221 = arith.constant 0 : index
    %499 = vector.load %arg9[%497, %498, %c0_221] : memref<4x16x128xf32, #tpu.memory_space<vmem>>, vector<1x1x128xf32>
    %500 = vector.shape_cast %499 : vector<1x1x128xf32> to vector<1x128xf32>
    %c2_i32_222 = arith.constant 2 : i32
    %501 = arith.muli %374, %c2_i32_222 : i32
    %502 = arith.addi %501, %29 : i32
    %503 = arith.index_cast %502 : i32 to index
    %504 = arith.index_cast %35 : i32 to index
    %c0_223 = arith.constant 0 : index
    %505 = vector.load %arg9[%503, %504, %c0_223] : memref<4x16x128xf32, #tpu.memory_space<vmem>>, vector<1x1x128xf32>
    %506 = vector.shape_cast %505 : vector<1x1x128xf32> to vector<1x128xf32>
    %c2_i32_224 = arith.constant 2 : i32
    %507 = arith.muli %374, %c2_i32_224 : i32
    %508 = arith.addi %507, %30 : i32
    %509 = arith.index_cast %508 : i32 to index
    %510 = arith.index_cast %36 : i32 to index
    %c0_225 = arith.constant 0 : index
    %511 = vector.load %arg9[%509, %510, %c0_225] : memref<4x16x128xf32, #tpu.memory_space<vmem>>, vector<1x1x128xf32>
    %512 = vector.shape_cast %511 : vector<1x1x128xf32> to vector<1x128xf32>
    %c2_i32_226 = arith.constant 2 : i32
    %513 = arith.muli %374, %c2_i32_226 : i32
    %514 = arith.addi %513, %31 : i32
    %515 = arith.index_cast %514 : i32 to index
    %516 = arith.index_cast %37 : i32 to index
    %c0_227 = arith.constant 0 : index
    %517 = vector.load %arg9[%515, %516, %c0_227] : memref<4x16x128xf32, #tpu.memory_space<vmem>>, vector<1x1x128xf32>
    %518 = vector.shape_cast %517 : vector<1x1x128xf32> to vector<1x128xf32>
    %519 = tpu.concatenate %488, %494, %500, %506, %512, %518 in 0 : vector<1x128xf32>, vector<1x128xf32>, vector<1x128xf32>, vector<1x128xf32>, vector<1x128xf32>, vector<1x128xf32> -> vector<6x128xf32>
    %520 = arith.mulf %519, %5 : vector<6x128xf32>
    %cst_228 = arith.constant dense<0.000000e+00> : vector<6xf32>
    %521 = vector.multi_reduction <add>, %520, %cst_228 [1] : vector<6x128xf32> to vector<6xf32>
    %522 = vector.shape_cast %521 : vector<6xf32> to vector<1x6xf32>
    %523 = arith.index_cast %c2_i32_158 : i32 to index
    %c0_229 = arith.constant 0 : index
    %524 = vector.load %arg8[%523, %c0_229] : memref<8x6xf32, #tpu.memory_space<vmem>>, vector<1x6xf32>
    tpu.vector_store %arg8[%523, %c0_229], %522 {strides = array<i32>} : memref<8x6xf32, #tpu.memory_space<vmem>>, vector<1x6xf32>,
    %c3_i32 = arith.constant 3 : i32
    %525 = arith.addi %38, %c3_i32 : i32
    %c2_i32_230 = arith.constant 2 : i32
    %c0_i32_231 = arith.constant 0 : i32
    %526 = arith.cmpi eq, %c2_i32_230, %c0_i32_231 : i32
    %c1_i32_232 = arith.constant 1 : i32
    %527 = arith.select %526, %c1_i32_232, %c2_i32_230 : i32
    %528 = arith.remsi %525, %527 : i32
    %c0_i32_233 = arith.constant 0 : i32
    %529 = arith.cmpi ne, %528, %c0_i32_233 : i32
    %c0_i32_234 = arith.constant 0 : i32
    %530 = arith.cmpi slt, %528, %c0_i32_234 : i32
    %c0_i32_235 = arith.constant 0 : i32
    %531 = arith.cmpi slt, %527, %c0_i32_235 : i32
    %532 = arith.xori %530, %531 : i1
    %533 = arith.andi %532, %529 : i1
    %534 = arith.addi %528, %527 : i32
    %535 = arith.select %533, %534, %528 : i32
    %c1_i32_236 = arith.constant 1 : i32
    %536 = arith.subi %c1_i32_236, %535 : i32
    %c2_i32_237 = arith.constant 2 : i32
    %537 = arith.muli %535, %c2_i32_237 : i32
    %c0_i32_238 = arith.constant 0 : i32
    %538 = arith.addi %537, %c0_i32_238 : i32
    %539 = arith.index_cast %538 : i32 to index
    %c0_239 = arith.constant 0 : index
    %c0_240 = arith.constant 0 : index
    %540 = vector.load %arg9[%539, %c0_239, %c0_240] : memref<4x16x128xf32, #tpu.memory_space<vmem>>, vector<1x16x128xf32>
    %541 = vector.shape_cast %540 : vector<1x16x128xf32> to vector<16x128xf32>
    %c2_i32_241 = arith.constant 2 : i32
    %542 = arith.muli %536, %c2_i32_241 : i32
    %c0_i32_242 = arith.constant 0 : i32
    %543 = arith.addi %542, %c0_i32_242 : i32
    %544 = arith.index_cast %543 : i32 to index
    %c0_243 = arith.constant 0 : index
    %c0_244 = arith.constant 0 : index
    %545 = vector.load %arg9[%544, %c0_243, %c0_244] : memref<4x16x128xf32, #tpu.memory_space<vmem>>, vector<1x16x128xf32>
    %546 = vector.shape_cast %545 : vector<1x16x128xf32> to vector<16x128xf32>
    %c1_i32_245 = arith.constant 1 : i32
    %547 = tpu.dynamic_rotate %541 by %c1_i32_245 dim 0 : vector<16x128xf32>, i32 -> vector<16x128xf32>
    %548 = arith.mulf %11, %547 : vector<16x128xf32>
    %c15_i32_246 = arith.constant 15 : i32
    %549 = tpu.dynamic_rotate %541 by %c15_i32_246 dim 0 : vector<16x128xf32>, i32 -> vector<16x128xf32>
    %550 = arith.mulf %15, %549 : vector<16x128xf32>
    %551 = arith.addf %548, %550 : vector<16x128xf32>
    %c1_i32_247 = arith.constant 1 : i32
    %552 = tpu.dynamic_rotate %541 by %c1_i32_247 dim 1 : vector<16x128xf32>, i32 -> vector<16x128xf32>
    %553 = arith.mulf %19, %552 : vector<16x128xf32>
    %554 = arith.addf %551, %553 : vector<16x128xf32>
    %c127_i32_248 = arith.constant 127 : i32
    %555 = tpu.dynamic_rotate %541 by %c127_i32_248 dim 1 : vector<16x128xf32>, i32 -> vector<16x128xf32>
    %556 = arith.mulf %23, %555 : vector<16x128xf32>
    %557 = arith.addf %554, %556 : vector<16x128xf32>
    %cst_249 = arith.constant 4.000000e+00 : f32
    %558 = vector.broadcast %cst_249 : f32 to vector<16x128xf32>
    %559 = arith.mulf %558, %541 : vector<16x128xf32>
    %560 = arith.subf %557, %559 : vector<16x128xf32>
    %cst_250 = arith.constant 2.000000e+00 : f32
    %561 = vector.broadcast %cst_250 : f32 to vector<16x128xf32>
    %562 = arith.mulf %561, %541 : vector<16x128xf32>
    %563 = arith.subf %562, %546 : vector<16x128xf32>
    %564 = arith.mulf %3, %560 : vector<16x128xf32>
    %565 = arith.addf %563, %564 : vector<16x128xf32>
    %c2_i32_251 = arith.constant 2 : i32
    %566 = arith.muli %536, %c2_i32_251 : i32
    %c0_i32_252 = arith.constant 0 : i32
    %567 = arith.addi %566, %c0_i32_252 : i32
    %568 = arith.index_cast %567 : i32 to index
    %c0_253 = arith.constant 0 : index
    %c0_254 = arith.constant 0 : index
    %569 = vector.load %arg9[%568, %c0_253, %c0_254] : memref<4x16x128xf32, #tpu.memory_space<vmem>>, vector<1x16x128xf32>
    %570 = vector.shape_cast %569 : vector<1x16x128xf32> to vector<16x128xf32>
    %571 = vector.shape_cast %565 : vector<16x128xf32> to vector<1x16x128xf32>
    tpu.vector_store %arg9[%568, %c0_253, %c0_254], %571 {strides = array<i32>} : memref<4x16x128xf32, #tpu.memory_space<vmem>>, vector<1x16x128xf32>,
    %572 = arith.index_cast %c3_i32 : i32 to index
    %c0_255 = arith.constant 0 : index
    %573 = vector.load %arg4[%572, %c0_255] : memref<8x2xf32, #tpu.memory_space<vmem>>, vector<1x1xf32>
    %c2_i32_256 = arith.constant 2 : i32
    %574 = arith.muli %536, %c2_i32_256 : i32
    %c0_i32_257 = arith.constant 0 : i32
    %575 = arith.addi %574, %c0_i32_257 : i32
    %576 = arith.index_cast %575 : i32 to index
    %577 = arith.index_cast %24 : i32 to index
    %c0_258 = arith.constant 0 : index
    %578 = vector.load %arg9[%576, %577, %c0_258] : memref<4x16x128xf32, #tpu.memory_space<vmem>>, vector<1x1x128xf32>
    %579 = vector.shape_cast %578 : vector<1x1x128xf32> to vector<1x128xf32>
    %580 = vector.extract_strided_slice %4 {offsets = [0, 0], sizes = [1, 128], strides = [1, 1]} : vector<2x128xf32> to vector<1x128xf32>
    %581 = vector.broadcast %573 : vector<1x1xf32> to vector<1x128xf32>
    %582 = arith.mulf %581, %580 : vector<1x128xf32>
    %583 = arith.addf %579, %582 : vector<1x128xf32>
    %c2_i32_259 = arith.constant 2 : i32
    %584 = arith.muli %536, %c2_i32_259 : i32
    %c0_i32_260 = arith.constant 0 : i32
    %585 = arith.addi %584, %c0_i32_260 : i32
    %586 = arith.index_cast %585 : i32 to index
    %587 = arith.index_cast %24 : i32 to index
    %c0_261 = arith.constant 0 : index
    %588 = vector.load %arg9[%586, %587, %c0_261] : memref<4x16x128xf32, #tpu.memory_space<vmem>>, vector<1x1x128xf32>
    %589 = vector.shape_cast %588 : vector<1x1x128xf32> to vector<1x128xf32>
    %590 = vector.shape_cast %583 : vector<1x128xf32> to vector<1x1x128xf32>
    tpu.vector_store %arg9[%586, %587, %c0_261], %590 {strides = array<i32>} : memref<4x16x128xf32, #tpu.memory_space<vmem>>, vector<1x1x128xf32>,
    %c2_i32_262 = arith.constant 2 : i32
    %591 = arith.muli %535, %c2_i32_262 : i32
    %c1_i32_263 = arith.constant 1 : i32
    %592 = arith.addi %591, %c1_i32_263 : i32
    %593 = arith.index_cast %592 : i32 to index
    %c0_264 = arith.constant 0 : index
    %c0_265 = arith.constant 0 : index
    %594 = vector.load %arg9[%593, %c0_264, %c0_265] : memref<4x16x128xf32, #tpu.memory_space<vmem>>, vector<1x16x128xf32>
    %595 = vector.shape_cast %594 : vector<1x16x128xf32> to vector<16x128xf32>
    %c2_i32_266 = arith.constant 2 : i32
    %596 = arith.muli %536, %c2_i32_266 : i32
    %c1_i32_267 = arith.constant 1 : i32
    %597 = arith.addi %596, %c1_i32_267 : i32
    %598 = arith.index_cast %597 : i32 to index
    %c0_268 = arith.constant 0 : index
    %c0_269 = arith.constant 0 : index
    %599 = vector.load %arg9[%598, %c0_268, %c0_269] : memref<4x16x128xf32, #tpu.memory_space<vmem>>, vector<1x16x128xf32>
    %600 = vector.shape_cast %599 : vector<1x16x128xf32> to vector<16x128xf32>
    %c1_i32_270 = arith.constant 1 : i32
    %601 = tpu.dynamic_rotate %595 by %c1_i32_270 dim 0 : vector<16x128xf32>, i32 -> vector<16x128xf32>
    %602 = arith.mulf %11, %601 : vector<16x128xf32>
    %c15_i32_271 = arith.constant 15 : i32
    %603 = tpu.dynamic_rotate %595 by %c15_i32_271 dim 0 : vector<16x128xf32>, i32 -> vector<16x128xf32>
    %604 = arith.mulf %15, %603 : vector<16x128xf32>
    %605 = arith.addf %602, %604 : vector<16x128xf32>
    %c1_i32_272 = arith.constant 1 : i32
    %606 = tpu.dynamic_rotate %595 by %c1_i32_272 dim 1 : vector<16x128xf32>, i32 -> vector<16x128xf32>
    %607 = arith.mulf %19, %606 : vector<16x128xf32>
    %608 = arith.addf %605, %607 : vector<16x128xf32>
    %c127_i32_273 = arith.constant 127 : i32
    %609 = tpu.dynamic_rotate %595 by %c127_i32_273 dim 1 : vector<16x128xf32>, i32 -> vector<16x128xf32>
    %610 = arith.mulf %23, %609 : vector<16x128xf32>
    %611 = arith.addf %608, %610 : vector<16x128xf32>
    %cst_274 = arith.constant 4.000000e+00 : f32
    %612 = vector.broadcast %cst_274 : f32 to vector<16x128xf32>
    %613 = arith.mulf %612, %595 : vector<16x128xf32>
    %614 = arith.subf %611, %613 : vector<16x128xf32>
    %cst_275 = arith.constant 2.000000e+00 : f32
    %615 = vector.broadcast %cst_275 : f32 to vector<16x128xf32>
    %616 = arith.mulf %615, %595 : vector<16x128xf32>
    %617 = arith.subf %616, %600 : vector<16x128xf32>
    %618 = arith.mulf %3, %614 : vector<16x128xf32>
    %619 = arith.addf %617, %618 : vector<16x128xf32>
    %c2_i32_276 = arith.constant 2 : i32
    %620 = arith.muli %536, %c2_i32_276 : i32
    %c1_i32_277 = arith.constant 1 : i32
    %621 = arith.addi %620, %c1_i32_277 : i32
    %622 = arith.index_cast %621 : i32 to index
    %c0_278 = arith.constant 0 : index
    %c0_279 = arith.constant 0 : index
    %623 = vector.load %arg9[%622, %c0_278, %c0_279] : memref<4x16x128xf32, #tpu.memory_space<vmem>>, vector<1x16x128xf32>
    %624 = vector.shape_cast %623 : vector<1x16x128xf32> to vector<16x128xf32>
    %625 = vector.shape_cast %619 : vector<16x128xf32> to vector<1x16x128xf32>
    tpu.vector_store %arg9[%622, %c0_278, %c0_279], %625 {strides = array<i32>} : memref<4x16x128xf32, #tpu.memory_space<vmem>>, vector<1x16x128xf32>,
    %626 = arith.index_cast %c3_i32 : i32 to index
    %c1_280 = arith.constant 1 : index
    %627 = vector.load %arg4[%626, %c1_280] : memref<8x2xf32, #tpu.memory_space<vmem>>, vector<1x1xf32>
    %c2_i32_281 = arith.constant 2 : i32
    %628 = arith.muli %536, %c2_i32_281 : i32
    %c1_i32_282 = arith.constant 1 : i32
    %629 = arith.addi %628, %c1_i32_282 : i32
    %630 = arith.index_cast %629 : i32 to index
    %631 = arith.index_cast %25 : i32 to index
    %c0_283 = arith.constant 0 : index
    %632 = vector.load %arg9[%630, %631, %c0_283] : memref<4x16x128xf32, #tpu.memory_space<vmem>>, vector<1x1x128xf32>
    %633 = vector.shape_cast %632 : vector<1x1x128xf32> to vector<1x128xf32>
    %634 = vector.extract_strided_slice %4 {offsets = [1, 0], sizes = [1, 128], strides = [1, 1]} : vector<2x128xf32> to vector<1x128xf32>
    %635 = vector.broadcast %627 : vector<1x1xf32> to vector<1x128xf32>
    %636 = arith.mulf %635, %634 : vector<1x128xf32>
    %637 = arith.addf %633, %636 : vector<1x128xf32>
    %c2_i32_284 = arith.constant 2 : i32
    %638 = arith.muli %536, %c2_i32_284 : i32
    %c1_i32_285 = arith.constant 1 : i32
    %639 = arith.addi %638, %c1_i32_285 : i32
    %640 = arith.index_cast %639 : i32 to index
    %641 = arith.index_cast %25 : i32 to index
    %c0_286 = arith.constant 0 : index
    %642 = vector.load %arg9[%640, %641, %c0_286] : memref<4x16x128xf32, #tpu.memory_space<vmem>>, vector<1x1x128xf32>
    %643 = vector.shape_cast %642 : vector<1x1x128xf32> to vector<1x128xf32>
    %644 = vector.shape_cast %637 : vector<1x128xf32> to vector<1x1x128xf32>
    tpu.vector_store %arg9[%640, %641, %c0_286], %644 {strides = array<i32>} : memref<4x16x128xf32, #tpu.memory_space<vmem>>, vector<1x1x128xf32>,
    %c2_i32_287 = arith.constant 2 : i32
    %645 = arith.muli %536, %c2_i32_287 : i32
    %646 = arith.addi %645, %26 : i32
    %647 = arith.index_cast %646 : i32 to index
    %648 = arith.index_cast %32 : i32 to index
    %c0_288 = arith.constant 0 : index
    %649 = vector.load %arg9[%647, %648, %c0_288] : memref<4x16x128xf32, #tpu.memory_space<vmem>>, vector<1x1x128xf32>
    %650 = vector.shape_cast %649 : vector<1x1x128xf32> to vector<1x128xf32>
    %c2_i32_289 = arith.constant 2 : i32
    %651 = arith.muli %536, %c2_i32_289 : i32
    %652 = arith.addi %651, %27 : i32
    %653 = arith.index_cast %652 : i32 to index
    %654 = arith.index_cast %33 : i32 to index
    %c0_290 = arith.constant 0 : index
    %655 = vector.load %arg9[%653, %654, %c0_290] : memref<4x16x128xf32, #tpu.memory_space<vmem>>, vector<1x1x128xf32>
    %656 = vector.shape_cast %655 : vector<1x1x128xf32> to vector<1x128xf32>
    %c2_i32_291 = arith.constant 2 : i32
    %657 = arith.muli %536, %c2_i32_291 : i32
    %658 = arith.addi %657, %28 : i32
    %659 = arith.index_cast %658 : i32 to index
    %660 = arith.index_cast %34 : i32 to index
    %c0_292 = arith.constant 0 : index
    %661 = vector.load %arg9[%659, %660, %c0_292] : memref<4x16x128xf32, #tpu.memory_space<vmem>>, vector<1x1x128xf32>
    %662 = vector.shape_cast %661 : vector<1x1x128xf32> to vector<1x128xf32>
    %c2_i32_293 = arith.constant 2 : i32
    %663 = arith.muli %536, %c2_i32_293 : i32
    %664 = arith.addi %663, %29 : i32
    %665 = arith.index_cast %664 : i32 to index
    %666 = arith.index_cast %35 : i32 to index
    %c0_294 = arith.constant 0 : index
    %667 = vector.load %arg9[%665, %666, %c0_294] : memref<4x16x128xf32, #tpu.memory_space<vmem>>, vector<1x1x128xf32>
    %668 = vector.shape_cast %667 : vector<1x1x128xf32> to vector<1x128xf32>
    %c2_i32_295 = arith.constant 2 : i32
    %669 = arith.muli %536, %c2_i32_295 : i32
    %670 = arith.addi %669, %30 : i32
    %671 = arith.index_cast %670 : i32 to index
    %672 = arith.index_cast %36 : i32 to index
    %c0_296 = arith.constant 0 : index
    %673 = vector.load %arg9[%671, %672, %c0_296] : memref<4x16x128xf32, #tpu.memory_space<vmem>>, vector<1x1x128xf32>
    %674 = vector.shape_cast %673 : vector<1x1x128xf32> to vector<1x128xf32>
    %c2_i32_297 = arith.constant 2 : i32
    %675 = arith.muli %536, %c2_i32_297 : i32
    %676 = arith.addi %675, %31 : i32
    %677 = arith.index_cast %676 : i32 to index
    %678 = arith.index_cast %37 : i32 to index
    %c0_298 = arith.constant 0 : index
    %679 = vector.load %arg9[%677, %678, %c0_298] : memref<4x16x128xf32, #tpu.memory_space<vmem>>, vector<1x1x128xf32>
    %680 = vector.shape_cast %679 : vector<1x1x128xf32> to vector<1x128xf32>
    %681 = tpu.concatenate %650, %656, %662, %668, %674, %680 in 0 : vector<1x128xf32>, vector<1x128xf32>, vector<1x128xf32>, vector<1x128xf32>, vector<1x128xf32>, vector<1x128xf32> -> vector<6x128xf32>
    %682 = arith.mulf %681, %5 : vector<6x128xf32>
    %cst_299 = arith.constant dense<0.000000e+00> : vector<6xf32>
    %683 = vector.multi_reduction <add>, %682, %cst_299 [1] : vector<6x128xf32> to vector<6xf32>
    %684 = vector.shape_cast %683 : vector<6xf32> to vector<1x6xf32>
    %685 = arith.index_cast %c3_i32 : i32 to index
    %c0_300 = arith.constant 0 : index
    %686 = vector.load %arg8[%685, %c0_300] : memref<8x6xf32, #tpu.memory_space<vmem>>, vector<1x6xf32>
    tpu.vector_store %arg8[%685, %c0_300], %684 {strides = array<i32>} : memref<8x6xf32, #tpu.memory_space<vmem>>, vector<1x6xf32>,
    %c4_i32 = arith.constant 4 : i32
    %687 = arith.addi %38, %c4_i32 : i32
    %c2_i32_301 = arith.constant 2 : i32
    %c0_i32_302 = arith.constant 0 : i32
    %688 = arith.cmpi eq, %c2_i32_301, %c0_i32_302 : i32
    %c1_i32_303 = arith.constant 1 : i32
    %689 = arith.select %688, %c1_i32_303, %c2_i32_301 : i32
    %690 = arith.remsi %687, %689 : i32
    %c0_i32_304 = arith.constant 0 : i32
    %691 = arith.cmpi ne, %690, %c0_i32_304 : i32
    %c0_i32_305 = arith.constant 0 : i32
    %692 = arith.cmpi slt, %690, %c0_i32_305 : i32
    %c0_i32_306 = arith.constant 0 : i32
    %693 = arith.cmpi slt, %689, %c0_i32_306 : i32
    %694 = arith.xori %692, %693 : i1
    %695 = arith.andi %694, %691 : i1
    %696 = arith.addi %690, %689 : i32
    %697 = arith.select %695, %696, %690 : i32
    %c1_i32_307 = arith.constant 1 : i32
    %698 = arith.subi %c1_i32_307, %697 : i32
    %c2_i32_308 = arith.constant 2 : i32
    %699 = arith.muli %697, %c2_i32_308 : i32
    %c0_i32_309 = arith.constant 0 : i32
    %700 = arith.addi %699, %c0_i32_309 : i32
    %701 = arith.index_cast %700 : i32 to index
    %c0_310 = arith.constant 0 : index
    %c0_311 = arith.constant 0 : index
    %702 = vector.load %arg9[%701, %c0_310, %c0_311] : memref<4x16x128xf32, #tpu.memory_space<vmem>>, vector<1x16x128xf32>
    %703 = vector.shape_cast %702 : vector<1x16x128xf32> to vector<16x128xf32>
    %c2_i32_312 = arith.constant 2 : i32
    %704 = arith.muli %698, %c2_i32_312 : i32
    %c0_i32_313 = arith.constant 0 : i32
    %705 = arith.addi %704, %c0_i32_313 : i32
    %706 = arith.index_cast %705 : i32 to index
    %c0_314 = arith.constant 0 : index
    %c0_315 = arith.constant 0 : index
    %707 = vector.load %arg9[%706, %c0_314, %c0_315] : memref<4x16x128xf32, #tpu.memory_space<vmem>>, vector<1x16x128xf32>
    %708 = vector.shape_cast %707 : vector<1x16x128xf32> to vector<16x128xf32>
    %c1_i32_316 = arith.constant 1 : i32
    %709 = tpu.dynamic_rotate %703 by %c1_i32_316 dim 0 : vector<16x128xf32>, i32 -> vector<16x128xf32>
    %710 = arith.mulf %11, %709 : vector<16x128xf32>
    %c15_i32_317 = arith.constant 15 : i32
    %711 = tpu.dynamic_rotate %703 by %c15_i32_317 dim 0 : vector<16x128xf32>, i32 -> vector<16x128xf32>
    %712 = arith.mulf %15, %711 : vector<16x128xf32>
    %713 = arith.addf %710, %712 : vector<16x128xf32>
    %c1_i32_318 = arith.constant 1 : i32
    %714 = tpu.dynamic_rotate %703 by %c1_i32_318 dim 1 : vector<16x128xf32>, i32 -> vector<16x128xf32>
    %715 = arith.mulf %19, %714 : vector<16x128xf32>
    %716 = arith.addf %713, %715 : vector<16x128xf32>
    %c127_i32_319 = arith.constant 127 : i32
    %717 = tpu.dynamic_rotate %703 by %c127_i32_319 dim 1 : vector<16x128xf32>, i32 -> vector<16x128xf32>
    %718 = arith.mulf %23, %717 : vector<16x128xf32>
    %719 = arith.addf %716, %718 : vector<16x128xf32>
    %cst_320 = arith.constant 4.000000e+00 : f32
    %720 = vector.broadcast %cst_320 : f32 to vector<16x128xf32>
    %721 = arith.mulf %720, %703 : vector<16x128xf32>
    %722 = arith.subf %719, %721 : vector<16x128xf32>
    %cst_321 = arith.constant 2.000000e+00 : f32
    %723 = vector.broadcast %cst_321 : f32 to vector<16x128xf32>
    %724 = arith.mulf %723, %703 : vector<16x128xf32>
    %725 = arith.subf %724, %708 : vector<16x128xf32>
    %726 = arith.mulf %3, %722 : vector<16x128xf32>
    %727 = arith.addf %725, %726 : vector<16x128xf32>
    %c2_i32_322 = arith.constant 2 : i32
    %728 = arith.muli %698, %c2_i32_322 : i32
    %c0_i32_323 = arith.constant 0 : i32
    %729 = arith.addi %728, %c0_i32_323 : i32
    %730 = arith.index_cast %729 : i32 to index
    %c0_324 = arith.constant 0 : index
    %c0_325 = arith.constant 0 : index
    %731 = vector.load %arg9[%730, %c0_324, %c0_325] : memref<4x16x128xf32, #tpu.memory_space<vmem>>, vector<1x16x128xf32>
    %732 = vector.shape_cast %731 : vector<1x16x128xf32> to vector<16x128xf32>
    %733 = vector.shape_cast %727 : vector<16x128xf32> to vector<1x16x128xf32>
    tpu.vector_store %arg9[%730, %c0_324, %c0_325], %733 {strides = array<i32>} : memref<4x16x128xf32, #tpu.memory_space<vmem>>, vector<1x16x128xf32>,
    %734 = arith.index_cast %c4_i32 : i32 to index
    %c0_326 = arith.constant 0 : index
    %735 = vector.load %arg4[%734, %c0_326] : memref<8x2xf32, #tpu.memory_space<vmem>>, vector<1x1xf32>
    %c2_i32_327 = arith.constant 2 : i32
    %736 = arith.muli %698, %c2_i32_327 : i32
    %c0_i32_328 = arith.constant 0 : i32
    %737 = arith.addi %736, %c0_i32_328 : i32
    %738 = arith.index_cast %737 : i32 to index
    %739 = arith.index_cast %24 : i32 to index
    %c0_329 = arith.constant 0 : index
    %740 = vector.load %arg9[%738, %739, %c0_329] : memref<4x16x128xf32, #tpu.memory_space<vmem>>, vector<1x1x128xf32>
    %741 = vector.shape_cast %740 : vector<1x1x128xf32> to vector<1x128xf32>
    %742 = vector.extract_strided_slice %4 {offsets = [0, 0], sizes = [1, 128], strides = [1, 1]} : vector<2x128xf32> to vector<1x128xf32>
    %743 = vector.broadcast %735 : vector<1x1xf32> to vector<1x128xf32>
    %744 = arith.mulf %743, %742 : vector<1x128xf32>
    %745 = arith.addf %741, %744 : vector<1x128xf32>
    %c2_i32_330 = arith.constant 2 : i32
    %746 = arith.muli %698, %c2_i32_330 : i32
    %c0_i32_331 = arith.constant 0 : i32
    %747 = arith.addi %746, %c0_i32_331 : i32
    %748 = arith.index_cast %747 : i32 to index
    %749 = arith.index_cast %24 : i32 to index
    %c0_332 = arith.constant 0 : index
    %750 = vector.load %arg9[%748, %749, %c0_332] : memref<4x16x128xf32, #tpu.memory_space<vmem>>, vector<1x1x128xf32>
    %751 = vector.shape_cast %750 : vector<1x1x128xf32> to vector<1x128xf32>
    %752 = vector.shape_cast %745 : vector<1x128xf32> to vector<1x1x128xf32>
    tpu.vector_store %arg9[%748, %749, %c0_332], %752 {strides = array<i32>} : memref<4x16x128xf32, #tpu.memory_space<vmem>>, vector<1x1x128xf32>,
    %c2_i32_333 = arith.constant 2 : i32
    %753 = arith.muli %697, %c2_i32_333 : i32
    %c1_i32_334 = arith.constant 1 : i32
    %754 = arith.addi %753, %c1_i32_334 : i32
    %755 = arith.index_cast %754 : i32 to index
    %c0_335 = arith.constant 0 : index
    %c0_336 = arith.constant 0 : index
    %756 = vector.load %arg9[%755, %c0_335, %c0_336] : memref<4x16x128xf32, #tpu.memory_space<vmem>>, vector<1x16x128xf32>
    %757 = vector.shape_cast %756 : vector<1x16x128xf32> to vector<16x128xf32>
    %c2_i32_337 = arith.constant 2 : i32
    %758 = arith.muli %698, %c2_i32_337 : i32
    %c1_i32_338 = arith.constant 1 : i32
    %759 = arith.addi %758, %c1_i32_338 : i32
    %760 = arith.index_cast %759 : i32 to index
    %c0_339 = arith.constant 0 : index
    %c0_340 = arith.constant 0 : index
    %761 = vector.load %arg9[%760, %c0_339, %c0_340] : memref<4x16x128xf32, #tpu.memory_space<vmem>>, vector<1x16x128xf32>
    %762 = vector.shape_cast %761 : vector<1x16x128xf32> to vector<16x128xf32>
    %c1_i32_341 = arith.constant 1 : i32
    %763 = tpu.dynamic_rotate %757 by %c1_i32_341 dim 0 : vector<16x128xf32>, i32 -> vector<16x128xf32>
    %764 = arith.mulf %11, %763 : vector<16x128xf32>
    %c15_i32_342 = arith.constant 15 : i32
    %765 = tpu.dynamic_rotate %757 by %c15_i32_342 dim 0 : vector<16x128xf32>, i32 -> vector<16x128xf32>
    %766 = arith.mulf %15, %765 : vector<16x128xf32>
    %767 = arith.addf %764, %766 : vector<16x128xf32>
    %c1_i32_343 = arith.constant 1 : i32
    %768 = tpu.dynamic_rotate %757 by %c1_i32_343 dim 1 : vector<16x128xf32>, i32 -> vector<16x128xf32>
    %769 = arith.mulf %19, %768 : vector<16x128xf32>
    %770 = arith.addf %767, %769 : vector<16x128xf32>
    %c127_i32_344 = arith.constant 127 : i32
    %771 = tpu.dynamic_rotate %757 by %c127_i32_344 dim 1 : vector<16x128xf32>, i32 -> vector<16x128xf32>
    %772 = arith.mulf %23, %771 : vector<16x128xf32>
    %773 = arith.addf %770, %772 : vector<16x128xf32>
    %cst_345 = arith.constant 4.000000e+00 : f32
    %774 = vector.broadcast %cst_345 : f32 to vector<16x128xf32>
    %775 = arith.mulf %774, %757 : vector<16x128xf32>
    %776 = arith.subf %773, %775 : vector<16x128xf32>
    %cst_346 = arith.constant 2.000000e+00 : f32
    %777 = vector.broadcast %cst_346 : f32 to vector<16x128xf32>
    %778 = arith.mulf %777, %757 : vector<16x128xf32>
    %779 = arith.subf %778, %762 : vector<16x128xf32>
    %780 = arith.mulf %3, %776 : vector<16x128xf32>
    %781 = arith.addf %779, %780 : vector<16x128xf32>
    %c2_i32_347 = arith.constant 2 : i32
    %782 = arith.muli %698, %c2_i32_347 : i32
    %c1_i32_348 = arith.constant 1 : i32
    %783 = arith.addi %782, %c1_i32_348 : i32
    %784 = arith.index_cast %783 : i32 to index
    %c0_349 = arith.constant 0 : index
    %c0_350 = arith.constant 0 : index
    %785 = vector.load %arg9[%784, %c0_349, %c0_350] : memref<4x16x128xf32, #tpu.memory_space<vmem>>, vector<1x16x128xf32>
    %786 = vector.shape_cast %785 : vector<1x16x128xf32> to vector<16x128xf32>
    %787 = vector.shape_cast %781 : vector<16x128xf32> to vector<1x16x128xf32>
    tpu.vector_store %arg9[%784, %c0_349, %c0_350], %787 {strides = array<i32>} : memref<4x16x128xf32, #tpu.memory_space<vmem>>, vector<1x16x128xf32>,
    %788 = arith.index_cast %c4_i32 : i32 to index
    %c1_351 = arith.constant 1 : index
    %789 = vector.load %arg4[%788, %c1_351] : memref<8x2xf32, #tpu.memory_space<vmem>>, vector<1x1xf32>
    %c2_i32_352 = arith.constant 2 : i32
    %790 = arith.muli %698, %c2_i32_352 : i32
    %c1_i32_353 = arith.constant 1 : i32
    %791 = arith.addi %790, %c1_i32_353 : i32
    %792 = arith.index_cast %791 : i32 to index
    %793 = arith.index_cast %25 : i32 to index
    %c0_354 = arith.constant 0 : index
    %794 = vector.load %arg9[%792, %793, %c0_354] : memref<4x16x128xf32, #tpu.memory_space<vmem>>, vector<1x1x128xf32>
    %795 = vector.shape_cast %794 : vector<1x1x128xf32> to vector<1x128xf32>
    %796 = vector.extract_strided_slice %4 {offsets = [1, 0], sizes = [1, 128], strides = [1, 1]} : vector<2x128xf32> to vector<1x128xf32>
    %797 = vector.broadcast %789 : vector<1x1xf32> to vector<1x128xf32>
    %798 = arith.mulf %797, %796 : vector<1x128xf32>
    %799 = arith.addf %795, %798 : vector<1x128xf32>
    %c2_i32_355 = arith.constant 2 : i32
    %800 = arith.muli %698, %c2_i32_355 : i32
    %c1_i32_356 = arith.constant 1 : i32
    %801 = arith.addi %800, %c1_i32_356 : i32
    %802 = arith.index_cast %801 : i32 to index
    %803 = arith.index_cast %25 : i32 to index
    %c0_357 = arith.constant 0 : index
    %804 = vector.load %arg9[%802, %803, %c0_357] : memref<4x16x128xf32, #tpu.memory_space<vmem>>, vector<1x1x128xf32>
    %805 = vector.shape_cast %804 : vector<1x1x128xf32> to vector<1x128xf32>
    %806 = vector.shape_cast %799 : vector<1x128xf32> to vector<1x1x128xf32>
    tpu.vector_store %arg9[%802, %803, %c0_357], %806 {strides = array<i32>} : memref<4x16x128xf32, #tpu.memory_space<vmem>>, vector<1x1x128xf32>,
    %c2_i32_358 = arith.constant 2 : i32
    %807 = arith.muli %698, %c2_i32_358 : i32
    %808 = arith.addi %807, %26 : i32
    %809 = arith.index_cast %808 : i32 to index
    %810 = arith.index_cast %32 : i32 to index
    %c0_359 = arith.constant 0 : index
    %811 = vector.load %arg9[%809, %810, %c0_359] : memref<4x16x128xf32, #tpu.memory_space<vmem>>, vector<1x1x128xf32>
    %812 = vector.shape_cast %811 : vector<1x1x128xf32> to vector<1x128xf32>
    %c2_i32_360 = arith.constant 2 : i32
    %813 = arith.muli %698, %c2_i32_360 : i32
    %814 = arith.addi %813, %27 : i32
    %815 = arith.index_cast %814 : i32 to index
    %816 = arith.index_cast %33 : i32 to index
    %c0_361 = arith.constant 0 : index
    %817 = vector.load %arg9[%815, %816, %c0_361] : memref<4x16x128xf32, #tpu.memory_space<vmem>>, vector<1x1x128xf32>
    %818 = vector.shape_cast %817 : vector<1x1x128xf32> to vector<1x128xf32>
    %c2_i32_362 = arith.constant 2 : i32
    %819 = arith.muli %698, %c2_i32_362 : i32
    %820 = arith.addi %819, %28 : i32
    %821 = arith.index_cast %820 : i32 to index
    %822 = arith.index_cast %34 : i32 to index
    %c0_363 = arith.constant 0 : index
    %823 = vector.load %arg9[%821, %822, %c0_363] : memref<4x16x128xf32, #tpu.memory_space<vmem>>, vector<1x1x128xf32>
    %824 = vector.shape_cast %823 : vector<1x1x128xf32> to vector<1x128xf32>
    %c2_i32_364 = arith.constant 2 : i32
    %825 = arith.muli %698, %c2_i32_364 : i32
    %826 = arith.addi %825, %29 : i32
    %827 = arith.index_cast %826 : i32 to index
    %828 = arith.index_cast %35 : i32 to index
    %c0_365 = arith.constant 0 : index
    %829 = vector.load %arg9[%827, %828, %c0_365] : memref<4x16x128xf32, #tpu.memory_space<vmem>>, vector<1x1x128xf32>
    %830 = vector.shape_cast %829 : vector<1x1x128xf32> to vector<1x128xf32>
    %c2_i32_366 = arith.constant 2 : i32
    %831 = arith.muli %698, %c2_i32_366 : i32
    %832 = arith.addi %831, %30 : i32
    %833 = arith.index_cast %832 : i32 to index
    %834 = arith.index_cast %36 : i32 to index
    %c0_367 = arith.constant 0 : index
    %835 = vector.load %arg9[%833, %834, %c0_367] : memref<4x16x128xf32, #tpu.memory_space<vmem>>, vector<1x1x128xf32>
    %836 = vector.shape_cast %835 : vector<1x1x128xf32> to vector<1x128xf32>
    %c2_i32_368 = arith.constant 2 : i32
    %837 = arith.muli %698, %c2_i32_368 : i32
    %838 = arith.addi %837, %31 : i32
    %839 = arith.index_cast %838 : i32 to index
    %840 = arith.index_cast %37 : i32 to index
    %c0_369 = arith.constant 0 : index
    %841 = vector.load %arg9[%839, %840, %c0_369] : memref<4x16x128xf32, #tpu.memory_space<vmem>>, vector<1x1x128xf32>
    %842 = vector.shape_cast %841 : vector<1x1x128xf32> to vector<1x128xf32>
    %843 = tpu.concatenate %812, %818, %824, %830, %836, %842 in 0 : vector<1x128xf32>, vector<1x128xf32>, vector<1x128xf32>, vector<1x128xf32>, vector<1x128xf32>, vector<1x128xf32> -> vector<6x128xf32>
    %844 = arith.mulf %843, %5 : vector<6x128xf32>
    %cst_370 = arith.constant dense<0.000000e+00> : vector<6xf32>
    %845 = vector.multi_reduction <add>, %844, %cst_370 [1] : vector<6x128xf32> to vector<6xf32>
    %846 = vector.shape_cast %845 : vector<6xf32> to vector<1x6xf32>
    %847 = arith.index_cast %c4_i32 : i32 to index
    %c0_371 = arith.constant 0 : index
    %848 = vector.load %arg8[%847, %c0_371] : memref<8x6xf32, #tpu.memory_space<vmem>>, vector<1x6xf32>
    tpu.vector_store %arg8[%847, %c0_371], %846 {strides = array<i32>} : memref<8x6xf32, #tpu.memory_space<vmem>>, vector<1x6xf32>,
    %c5_i32 = arith.constant 5 : i32
    %849 = arith.addi %38, %c5_i32 : i32
    %c2_i32_372 = arith.constant 2 : i32
    %c0_i32_373 = arith.constant 0 : i32
    %850 = arith.cmpi eq, %c2_i32_372, %c0_i32_373 : i32
    %c1_i32_374 = arith.constant 1 : i32
    %851 = arith.select %850, %c1_i32_374, %c2_i32_372 : i32
    %852 = arith.remsi %849, %851 : i32
    %c0_i32_375 = arith.constant 0 : i32
    %853 = arith.cmpi ne, %852, %c0_i32_375 : i32
    %c0_i32_376 = arith.constant 0 : i32
    %854 = arith.cmpi slt, %852, %c0_i32_376 : i32
    %c0_i32_377 = arith.constant 0 : i32
    %855 = arith.cmpi slt, %851, %c0_i32_377 : i32
    %856 = arith.xori %854, %855 : i1
    %857 = arith.andi %856, %853 : i1
    %858 = arith.addi %852, %851 : i32
    %859 = arith.select %857, %858, %852 : i32
    %c1_i32_378 = arith.constant 1 : i32
    %860 = arith.subi %c1_i32_378, %859 : i32
    %c2_i32_379 = arith.constant 2 : i32
    %861 = arith.muli %859, %c2_i32_379 : i32
    %c0_i32_380 = arith.constant 0 : i32
    %862 = arith.addi %861, %c0_i32_380 : i32
    %863 = arith.index_cast %862 : i32 to index
    %c0_381 = arith.constant 0 : index
    %c0_382 = arith.constant 0 : index
    %864 = vector.load %arg9[%863, %c0_381, %c0_382] : memref<4x16x128xf32, #tpu.memory_space<vmem>>, vector<1x16x128xf32>
    %865 = vector.shape_cast %864 : vector<1x16x128xf32> to vector<16x128xf32>
    %c2_i32_383 = arith.constant 2 : i32
    %866 = arith.muli %860, %c2_i32_383 : i32
    %c0_i32_384 = arith.constant 0 : i32
    %867 = arith.addi %866, %c0_i32_384 : i32
    %868 = arith.index_cast %867 : i32 to index
    %c0_385 = arith.constant 0 : index
    %c0_386 = arith.constant 0 : index
    %869 = vector.load %arg9[%868, %c0_385, %c0_386] : memref<4x16x128xf32, #tpu.memory_space<vmem>>, vector<1x16x128xf32>
    %870 = vector.shape_cast %869 : vector<1x16x128xf32> to vector<16x128xf32>
    %c1_i32_387 = arith.constant 1 : i32
    %871 = tpu.dynamic_rotate %865 by %c1_i32_387 dim 0 : vector<16x128xf32>, i32 -> vector<16x128xf32>
    %872 = arith.mulf %11, %871 : vector<16x128xf32>
    %c15_i32_388 = arith.constant 15 : i32
    %873 = tpu.dynamic_rotate %865 by %c15_i32_388 dim 0 : vector<16x128xf32>, i32 -> vector<16x128xf32>
    %874 = arith.mulf %15, %873 : vector<16x128xf32>
    %875 = arith.addf %872, %874 : vector<16x128xf32>
    %c1_i32_389 = arith.constant 1 : i32
    %876 = tpu.dynamic_rotate %865 by %c1_i32_389 dim 1 : vector<16x128xf32>, i32 -> vector<16x128xf32>
    %877 = arith.mulf %19, %876 : vector<16x128xf32>
    %878 = arith.addf %875, %877 : vector<16x128xf32>
    %c127_i32_390 = arith.constant 127 : i32
    %879 = tpu.dynamic_rotate %865 by %c127_i32_390 dim 1 : vector<16x128xf32>, i32 -> vector<16x128xf32>
    %880 = arith.mulf %23, %879 : vector<16x128xf32>
    %881 = arith.addf %878, %880 : vector<16x128xf32>
    %cst_391 = arith.constant 4.000000e+00 : f32
    %882 = vector.broadcast %cst_391 : f32 to vector<16x128xf32>
    %883 = arith.mulf %882, %865 : vector<16x128xf32>
    %884 = arith.subf %881, %883 : vector<16x128xf32>
    %cst_392 = arith.constant 2.000000e+00 : f32
    %885 = vector.broadcast %cst_392 : f32 to vector<16x128xf32>
    %886 = arith.mulf %885, %865 : vector<16x128xf32>
    %887 = arith.subf %886, %870 : vector<16x128xf32>
    %888 = arith.mulf %3, %884 : vector<16x128xf32>
    %889 = arith.addf %887, %888 : vector<16x128xf32>
    %c2_i32_393 = arith.constant 2 : i32
    %890 = arith.muli %860, %c2_i32_393 : i32
    %c0_i32_394 = arith.constant 0 : i32
    %891 = arith.addi %890, %c0_i32_394 : i32
    %892 = arith.index_cast %891 : i32 to index
    %c0_395 = arith.constant 0 : index
    %c0_396 = arith.constant 0 : index
    %893 = vector.load %arg9[%892, %c0_395, %c0_396] : memref<4x16x128xf32, #tpu.memory_space<vmem>>, vector<1x16x128xf32>
    %894 = vector.shape_cast %893 : vector<1x16x128xf32> to vector<16x128xf32>
    %895 = vector.shape_cast %889 : vector<16x128xf32> to vector<1x16x128xf32>
    tpu.vector_store %arg9[%892, %c0_395, %c0_396], %895 {strides = array<i32>} : memref<4x16x128xf32, #tpu.memory_space<vmem>>, vector<1x16x128xf32>,
    %896 = arith.index_cast %c5_i32 : i32 to index
    %c0_397 = arith.constant 0 : index
    %897 = vector.load %arg4[%896, %c0_397] : memref<8x2xf32, #tpu.memory_space<vmem>>, vector<1x1xf32>
    %c2_i32_398 = arith.constant 2 : i32
    %898 = arith.muli %860, %c2_i32_398 : i32
    %c0_i32_399 = arith.constant 0 : i32
    %899 = arith.addi %898, %c0_i32_399 : i32
    %900 = arith.index_cast %899 : i32 to index
    %901 = arith.index_cast %24 : i32 to index
    %c0_400 = arith.constant 0 : index
    %902 = vector.load %arg9[%900, %901, %c0_400] : memref<4x16x128xf32, #tpu.memory_space<vmem>>, vector<1x1x128xf32>
    %903 = vector.shape_cast %902 : vector<1x1x128xf32> to vector<1x128xf32>
    %904 = vector.extract_strided_slice %4 {offsets = [0, 0], sizes = [1, 128], strides = [1, 1]} : vector<2x128xf32> to vector<1x128xf32>
    %905 = vector.broadcast %897 : vector<1x1xf32> to vector<1x128xf32>
    %906 = arith.mulf %905, %904 : vector<1x128xf32>
    %907 = arith.addf %903, %906 : vector<1x128xf32>
    %c2_i32_401 = arith.constant 2 : i32
    %908 = arith.muli %860, %c2_i32_401 : i32
    %c0_i32_402 = arith.constant 0 : i32
    %909 = arith.addi %908, %c0_i32_402 : i32
    %910 = arith.index_cast %909 : i32 to index
    %911 = arith.index_cast %24 : i32 to index
    %c0_403 = arith.constant 0 : index
    %912 = vector.load %arg9[%910, %911, %c0_403] : memref<4x16x128xf32, #tpu.memory_space<vmem>>, vector<1x1x128xf32>
    %913 = vector.shape_cast %912 : vector<1x1x128xf32> to vector<1x128xf32>
    %914 = vector.shape_cast %907 : vector<1x128xf32> to vector<1x1x128xf32>
    tpu.vector_store %arg9[%910, %911, %c0_403], %914 {strides = array<i32>} : memref<4x16x128xf32, #tpu.memory_space<vmem>>, vector<1x1x128xf32>,
    %c2_i32_404 = arith.constant 2 : i32
    %915 = arith.muli %859, %c2_i32_404 : i32
    %c1_i32_405 = arith.constant 1 : i32
    %916 = arith.addi %915, %c1_i32_405 : i32
    %917 = arith.index_cast %916 : i32 to index
    %c0_406 = arith.constant 0 : index
    %c0_407 = arith.constant 0 : index
    %918 = vector.load %arg9[%917, %c0_406, %c0_407] : memref<4x16x128xf32, #tpu.memory_space<vmem>>, vector<1x16x128xf32>
    %919 = vector.shape_cast %918 : vector<1x16x128xf32> to vector<16x128xf32>
    %c2_i32_408 = arith.constant 2 : i32
    %920 = arith.muli %860, %c2_i32_408 : i32
    %c1_i32_409 = arith.constant 1 : i32
    %921 = arith.addi %920, %c1_i32_409 : i32
    %922 = arith.index_cast %921 : i32 to index
    %c0_410 = arith.constant 0 : index
    %c0_411 = arith.constant 0 : index
    %923 = vector.load %arg9[%922, %c0_410, %c0_411] : memref<4x16x128xf32, #tpu.memory_space<vmem>>, vector<1x16x128xf32>
    %924 = vector.shape_cast %923 : vector<1x16x128xf32> to vector<16x128xf32>
    %c1_i32_412 = arith.constant 1 : i32
    %925 = tpu.dynamic_rotate %919 by %c1_i32_412 dim 0 : vector<16x128xf32>, i32 -> vector<16x128xf32>
    %926 = arith.mulf %11, %925 : vector<16x128xf32>
    %c15_i32_413 = arith.constant 15 : i32
    %927 = tpu.dynamic_rotate %919 by %c15_i32_413 dim 0 : vector<16x128xf32>, i32 -> vector<16x128xf32>
    %928 = arith.mulf %15, %927 : vector<16x128xf32>
    %929 = arith.addf %926, %928 : vector<16x128xf32>
    %c1_i32_414 = arith.constant 1 : i32
    %930 = tpu.dynamic_rotate %919 by %c1_i32_414 dim 1 : vector<16x128xf32>, i32 -> vector<16x128xf32>
    %931 = arith.mulf %19, %930 : vector<16x128xf32>
    %932 = arith.addf %929, %931 : vector<16x128xf32>
    %c127_i32_415 = arith.constant 127 : i32
    %933 = tpu.dynamic_rotate %919 by %c127_i32_415 dim 1 : vector<16x128xf32>, i32 -> vector<16x128xf32>
    %934 = arith.mulf %23, %933 : vector<16x128xf32>
    %935 = arith.addf %932, %934 : vector<16x128xf32>
    %cst_416 = arith.constant 4.000000e+00 : f32
    %936 = vector.broadcast %cst_416 : f32 to vector<16x128xf32>
    %937 = arith.mulf %936, %919 : vector<16x128xf32>
    %938 = arith.subf %935, %937 : vector<16x128xf32>
    %cst_417 = arith.constant 2.000000e+00 : f32
    %939 = vector.broadcast %cst_417 : f32 to vector<16x128xf32>
    %940 = arith.mulf %939, %919 : vector<16x128xf32>
    %941 = arith.subf %940, %924 : vector<16x128xf32>
    %942 = arith.mulf %3, %938 : vector<16x128xf32>
    %943 = arith.addf %941, %942 : vector<16x128xf32>
    %c2_i32_418 = arith.constant 2 : i32
    %944 = arith.muli %860, %c2_i32_418 : i32
    %c1_i32_419 = arith.constant 1 : i32
    %945 = arith.addi %944, %c1_i32_419 : i32
    %946 = arith.index_cast %945 : i32 to index
    %c0_420 = arith.constant 0 : index
    %c0_421 = arith.constant 0 : index
    %947 = vector.load %arg9[%946, %c0_420, %c0_421] : memref<4x16x128xf32, #tpu.memory_space<vmem>>, vector<1x16x128xf32>
    %948 = vector.shape_cast %947 : vector<1x16x128xf32> to vector<16x128xf32>
    %949 = vector.shape_cast %943 : vector<16x128xf32> to vector<1x16x128xf32>
    tpu.vector_store %arg9[%946, %c0_420, %c0_421], %949 {strides = array<i32>} : memref<4x16x128xf32, #tpu.memory_space<vmem>>, vector<1x16x128xf32>,
    %950 = arith.index_cast %c5_i32 : i32 to index
    %c1_422 = arith.constant 1 : index
    %951 = vector.load %arg4[%950, %c1_422] : memref<8x2xf32, #tpu.memory_space<vmem>>, vector<1x1xf32>
    %c2_i32_423 = arith.constant 2 : i32
    %952 = arith.muli %860, %c2_i32_423 : i32
    %c1_i32_424 = arith.constant 1 : i32
    %953 = arith.addi %952, %c1_i32_424 : i32
    %954 = arith.index_cast %953 : i32 to index
    %955 = arith.index_cast %25 : i32 to index
    %c0_425 = arith.constant 0 : index
    %956 = vector.load %arg9[%954, %955, %c0_425] : memref<4x16x128xf32, #tpu.memory_space<vmem>>, vector<1x1x128xf32>
    %957 = vector.shape_cast %956 : vector<1x1x128xf32> to vector<1x128xf32>
    %958 = vector.extract_strided_slice %4 {offsets = [1, 0], sizes = [1, 128], strides = [1, 1]} : vector<2x128xf32> to vector<1x128xf32>
    %959 = vector.broadcast %951 : vector<1x1xf32> to vector<1x128xf32>
    %960 = arith.mulf %959, %958 : vector<1x128xf32>
    %961 = arith.addf %957, %960 : vector<1x128xf32>
    %c2_i32_426 = arith.constant 2 : i32
    %962 = arith.muli %860, %c2_i32_426 : i32
    %c1_i32_427 = arith.constant 1 : i32
    %963 = arith.addi %962, %c1_i32_427 : i32
    %964 = arith.index_cast %963 : i32 to index
    %965 = arith.index_cast %25 : i32 to index
    %c0_428 = arith.constant 0 : index
    %966 = vector.load %arg9[%964, %965, %c0_428] : memref<4x16x128xf32, #tpu.memory_space<vmem>>, vector<1x1x128xf32>
    %967 = vector.shape_cast %966 : vector<1x1x128xf32> to vector<1x128xf32>
    %968 = vector.shape_cast %961 : vector<1x128xf32> to vector<1x1x128xf32>
    tpu.vector_store %arg9[%964, %965, %c0_428], %968 {strides = array<i32>} : memref<4x16x128xf32, #tpu.memory_space<vmem>>, vector<1x1x128xf32>,
    %c2_i32_429 = arith.constant 2 : i32
    %969 = arith.muli %860, %c2_i32_429 : i32
    %970 = arith.addi %969, %26 : i32
    %971 = arith.index_cast %970 : i32 to index
    %972 = arith.index_cast %32 : i32 to index
    %c0_430 = arith.constant 0 : index
    %973 = vector.load %arg9[%971, %972, %c0_430] : memref<4x16x128xf32, #tpu.memory_space<vmem>>, vector<1x1x128xf32>
    %974 = vector.shape_cast %973 : vector<1x1x128xf32> to vector<1x128xf32>
    %c2_i32_431 = arith.constant 2 : i32
    %975 = arith.muli %860, %c2_i32_431 : i32
    %976 = arith.addi %975, %27 : i32
    %977 = arith.index_cast %976 : i32 to index
    %978 = arith.index_cast %33 : i32 to index
    %c0_432 = arith.constant 0 : index
    %979 = vector.load %arg9[%977, %978, %c0_432] : memref<4x16x128xf32, #tpu.memory_space<vmem>>, vector<1x1x128xf32>
    %980 = vector.shape_cast %979 : vector<1x1x128xf32> to vector<1x128xf32>
    %c2_i32_433 = arith.constant 2 : i32
    %981 = arith.muli %860, %c2_i32_433 : i32
    %982 = arith.addi %981, %28 : i32
    %983 = arith.index_cast %982 : i32 to index
    %984 = arith.index_cast %34 : i32 to index
    %c0_434 = arith.constant 0 : index
    %985 = vector.load %arg9[%983, %984, %c0_434] : memref<4x16x128xf32, #tpu.memory_space<vmem>>, vector<1x1x128xf32>
    %986 = vector.shape_cast %985 : vector<1x1x128xf32> to vector<1x128xf32>
    %c2_i32_435 = arith.constant 2 : i32
    %987 = arith.muli %860, %c2_i32_435 : i32
    %988 = arith.addi %987, %29 : i32
    %989 = arith.index_cast %988 : i32 to index
    %990 = arith.index_cast %35 : i32 to index
    %c0_436 = arith.constant 0 : index
    %991 = vector.load %arg9[%989, %990, %c0_436] : memref<4x16x128xf32, #tpu.memory_space<vmem>>, vector<1x1x128xf32>
    %992 = vector.shape_cast %991 : vector<1x1x128xf32> to vector<1x128xf32>
    %c2_i32_437 = arith.constant 2 : i32
    %993 = arith.muli %860, %c2_i32_437 : i32
    %994 = arith.addi %993, %30 : i32
    %995 = arith.index_cast %994 : i32 to index
    %996 = arith.index_cast %36 : i32 to index
    %c0_438 = arith.constant 0 : index
    %997 = vector.load %arg9[%995, %996, %c0_438] : memref<4x16x128xf32, #tpu.memory_space<vmem>>, vector<1x1x128xf32>
    %998 = vector.shape_cast %997 : vector<1x1x128xf32> to vector<1x128xf32>
    %c2_i32_439 = arith.constant 2 : i32
    %999 = arith.muli %860, %c2_i32_439 : i32
    %1000 = arith.addi %999, %31 : i32
    %1001 = arith.index_cast %1000 : i32 to index
    %1002 = arith.index_cast %37 : i32 to index
    %c0_440 = arith.constant 0 : index
    %1003 = vector.load %arg9[%1001, %1002, %c0_440] : memref<4x16x128xf32, #tpu.memory_space<vmem>>, vector<1x1x128xf32>
    %1004 = vector.shape_cast %1003 : vector<1x1x128xf32> to vector<1x128xf32>
    %1005 = tpu.concatenate %974, %980, %986, %992, %998, %1004 in 0 : vector<1x128xf32>, vector<1x128xf32>, vector<1x128xf32>, vector<1x128xf32>, vector<1x128xf32>, vector<1x128xf32> -> vector<6x128xf32>
    %1006 = arith.mulf %1005, %5 : vector<6x128xf32>
    %cst_441 = arith.constant dense<0.000000e+00> : vector<6xf32>
    %1007 = vector.multi_reduction <add>, %1006, %cst_441 [1] : vector<6x128xf32> to vector<6xf32>
    %1008 = vector.shape_cast %1007 : vector<6xf32> to vector<1x6xf32>
    %1009 = arith.index_cast %c5_i32 : i32 to index
    %c0_442 = arith.constant 0 : index
    %1010 = vector.load %arg8[%1009, %c0_442] : memref<8x6xf32, #tpu.memory_space<vmem>>, vector<1x6xf32>
    tpu.vector_store %arg8[%1009, %c0_442], %1008 {strides = array<i32>} : memref<8x6xf32, #tpu.memory_space<vmem>>, vector<1x6xf32>,
    %c6_i32 = arith.constant 6 : i32
    %1011 = arith.addi %38, %c6_i32 : i32
    %c2_i32_443 = arith.constant 2 : i32
    %c0_i32_444 = arith.constant 0 : i32
    %1012 = arith.cmpi eq, %c2_i32_443, %c0_i32_444 : i32
    %c1_i32_445 = arith.constant 1 : i32
    %1013 = arith.select %1012, %c1_i32_445, %c2_i32_443 : i32
    %1014 = arith.remsi %1011, %1013 : i32
    %c0_i32_446 = arith.constant 0 : i32
    %1015 = arith.cmpi ne, %1014, %c0_i32_446 : i32
    %c0_i32_447 = arith.constant 0 : i32
    %1016 = arith.cmpi slt, %1014, %c0_i32_447 : i32
    %c0_i32_448 = arith.constant 0 : i32
    %1017 = arith.cmpi slt, %1013, %c0_i32_448 : i32
    %1018 = arith.xori %1016, %1017 : i1
    %1019 = arith.andi %1018, %1015 : i1
    %1020 = arith.addi %1014, %1013 : i32
    %1021 = arith.select %1019, %1020, %1014 : i32
    %c1_i32_449 = arith.constant 1 : i32
    %1022 = arith.subi %c1_i32_449, %1021 : i32
    %c2_i32_450 = arith.constant 2 : i32
    %1023 = arith.muli %1021, %c2_i32_450 : i32
    %c0_i32_451 = arith.constant 0 : i32
    %1024 = arith.addi %1023, %c0_i32_451 : i32
    %1025 = arith.index_cast %1024 : i32 to index
    %c0_452 = arith.constant 0 : index
    %c0_453 = arith.constant 0 : index
    %1026 = vector.load %arg9[%1025, %c0_452, %c0_453] : memref<4x16x128xf32, #tpu.memory_space<vmem>>, vector<1x16x128xf32>
    %1027 = vector.shape_cast %1026 : vector<1x16x128xf32> to vector<16x128xf32>
    %c2_i32_454 = arith.constant 2 : i32
    %1028 = arith.muli %1022, %c2_i32_454 : i32
    %c0_i32_455 = arith.constant 0 : i32
    %1029 = arith.addi %1028, %c0_i32_455 : i32
    %1030 = arith.index_cast %1029 : i32 to index
    %c0_456 = arith.constant 0 : index
    %c0_457 = arith.constant 0 : index
    %1031 = vector.load %arg9[%1030, %c0_456, %c0_457] : memref<4x16x128xf32, #tpu.memory_space<vmem>>, vector<1x16x128xf32>
    %1032 = vector.shape_cast %1031 : vector<1x16x128xf32> to vector<16x128xf32>
    %c1_i32_458 = arith.constant 1 : i32
    %1033 = tpu.dynamic_rotate %1027 by %c1_i32_458 dim 0 : vector<16x128xf32>, i32 -> vector<16x128xf32>
    %1034 = arith.mulf %11, %1033 : vector<16x128xf32>
    %c15_i32_459 = arith.constant 15 : i32
    %1035 = tpu.dynamic_rotate %1027 by %c15_i32_459 dim 0 : vector<16x128xf32>, i32 -> vector<16x128xf32>
    %1036 = arith.mulf %15, %1035 : vector<16x128xf32>
    %1037 = arith.addf %1034, %1036 : vector<16x128xf32>
    %c1_i32_460 = arith.constant 1 : i32
    %1038 = tpu.dynamic_rotate %1027 by %c1_i32_460 dim 1 : vector<16x128xf32>, i32 -> vector<16x128xf32>
    %1039 = arith.mulf %19, %1038 : vector<16x128xf32>
    %1040 = arith.addf %1037, %1039 : vector<16x128xf32>
    %c127_i32_461 = arith.constant 127 : i32
    %1041 = tpu.dynamic_rotate %1027 by %c127_i32_461 dim 1 : vector<16x128xf32>, i32 -> vector<16x128xf32>
    %1042 = arith.mulf %23, %1041 : vector<16x128xf32>
    %1043 = arith.addf %1040, %1042 : vector<16x128xf32>
    %cst_462 = arith.constant 4.000000e+00 : f32
    %1044 = vector.broadcast %cst_462 : f32 to vector<16x128xf32>
    %1045 = arith.mulf %1044, %1027 : vector<16x128xf32>
    %1046 = arith.subf %1043, %1045 : vector<16x128xf32>
    %cst_463 = arith.constant 2.000000e+00 : f32
    %1047 = vector.broadcast %cst_463 : f32 to vector<16x128xf32>
    %1048 = arith.mulf %1047, %1027 : vector<16x128xf32>
    %1049 = arith.subf %1048, %1032 : vector<16x128xf32>
    %1050 = arith.mulf %3, %1046 : vector<16x128xf32>
    %1051 = arith.addf %1049, %1050 : vector<16x128xf32>
    %c2_i32_464 = arith.constant 2 : i32
    %1052 = arith.muli %1022, %c2_i32_464 : i32
    %c0_i32_465 = arith.constant 0 : i32
    %1053 = arith.addi %1052, %c0_i32_465 : i32
    %1054 = arith.index_cast %1053 : i32 to index
    %c0_466 = arith.constant 0 : index
    %c0_467 = arith.constant 0 : index
    %1055 = vector.load %arg9[%1054, %c0_466, %c0_467] : memref<4x16x128xf32, #tpu.memory_space<vmem>>, vector<1x16x128xf32>
    %1056 = vector.shape_cast %1055 : vector<1x16x128xf32> to vector<16x128xf32>
    %1057 = vector.shape_cast %1051 : vector<16x128xf32> to vector<1x16x128xf32>
    tpu.vector_store %arg9[%1054, %c0_466, %c0_467], %1057 {strides = array<i32>} : memref<4x16x128xf32, #tpu.memory_space<vmem>>, vector<1x16x128xf32>,
    %1058 = arith.index_cast %c6_i32 : i32 to index
    %c0_468 = arith.constant 0 : index
    %1059 = vector.load %arg4[%1058, %c0_468] : memref<8x2xf32, #tpu.memory_space<vmem>>, vector<1x1xf32>
    %c2_i32_469 = arith.constant 2 : i32
    %1060 = arith.muli %1022, %c2_i32_469 : i32
    %c0_i32_470 = arith.constant 0 : i32
    %1061 = arith.addi %1060, %c0_i32_470 : i32
    %1062 = arith.index_cast %1061 : i32 to index
    %1063 = arith.index_cast %24 : i32 to index
    %c0_471 = arith.constant 0 : index
    %1064 = vector.load %arg9[%1062, %1063, %c0_471] : memref<4x16x128xf32, #tpu.memory_space<vmem>>, vector<1x1x128xf32>
    %1065 = vector.shape_cast %1064 : vector<1x1x128xf32> to vector<1x128xf32>
    %1066 = vector.extract_strided_slice %4 {offsets = [0, 0], sizes = [1, 128], strides = [1, 1]} : vector<2x128xf32> to vector<1x128xf32>
    %1067 = vector.broadcast %1059 : vector<1x1xf32> to vector<1x128xf32>
    %1068 = arith.mulf %1067, %1066 : vector<1x128xf32>
    %1069 = arith.addf %1065, %1068 : vector<1x128xf32>
    %c2_i32_472 = arith.constant 2 : i32
    %1070 = arith.muli %1022, %c2_i32_472 : i32
    %c0_i32_473 = arith.constant 0 : i32
    %1071 = arith.addi %1070, %c0_i32_473 : i32
    %1072 = arith.index_cast %1071 : i32 to index
    %1073 = arith.index_cast %24 : i32 to index
    %c0_474 = arith.constant 0 : index
    %1074 = vector.load %arg9[%1072, %1073, %c0_474] : memref<4x16x128xf32, #tpu.memory_space<vmem>>, vector<1x1x128xf32>
    %1075 = vector.shape_cast %1074 : vector<1x1x128xf32> to vector<1x128xf32>
    %1076 = vector.shape_cast %1069 : vector<1x128xf32> to vector<1x1x128xf32>
    tpu.vector_store %arg9[%1072, %1073, %c0_474], %1076 {strides = array<i32>} : memref<4x16x128xf32, #tpu.memory_space<vmem>>, vector<1x1x128xf32>,
    %c2_i32_475 = arith.constant 2 : i32
    %1077 = arith.muli %1021, %c2_i32_475 : i32
    %c1_i32_476 = arith.constant 1 : i32
    %1078 = arith.addi %1077, %c1_i32_476 : i32
    %1079 = arith.index_cast %1078 : i32 to index
    %c0_477 = arith.constant 0 : index
    %c0_478 = arith.constant 0 : index
    %1080 = vector.load %arg9[%1079, %c0_477, %c0_478] : memref<4x16x128xf32, #tpu.memory_space<vmem>>, vector<1x16x128xf32>
    %1081 = vector.shape_cast %1080 : vector<1x16x128xf32> to vector<16x128xf32>
    %c2_i32_479 = arith.constant 2 : i32
    %1082 = arith.muli %1022, %c2_i32_479 : i32
    %c1_i32_480 = arith.constant 1 : i32
    %1083 = arith.addi %1082, %c1_i32_480 : i32
    %1084 = arith.index_cast %1083 : i32 to index
    %c0_481 = arith.constant 0 : index
    %c0_482 = arith.constant 0 : index
    %1085 = vector.load %arg9[%1084, %c0_481, %c0_482] : memref<4x16x128xf32, #tpu.memory_space<vmem>>, vector<1x16x128xf32>
    %1086 = vector.shape_cast %1085 : vector<1x16x128xf32> to vector<16x128xf32>
    %c1_i32_483 = arith.constant 1 : i32
    %1087 = tpu.dynamic_rotate %1081 by %c1_i32_483 dim 0 : vector<16x128xf32>, i32 -> vector<16x128xf32>
    %1088 = arith.mulf %11, %1087 : vector<16x128xf32>
    %c15_i32_484 = arith.constant 15 : i32
    %1089 = tpu.dynamic_rotate %1081 by %c15_i32_484 dim 0 : vector<16x128xf32>, i32 -> vector<16x128xf32>
    %1090 = arith.mulf %15, %1089 : vector<16x128xf32>
    %1091 = arith.addf %1088, %1090 : vector<16x128xf32>
    %c1_i32_485 = arith.constant 1 : i32
    %1092 = tpu.dynamic_rotate %1081 by %c1_i32_485 dim 1 : vector<16x128xf32>, i32 -> vector<16x128xf32>
    %1093 = arith.mulf %19, %1092 : vector<16x128xf32>
    %1094 = arith.addf %1091, %1093 : vector<16x128xf32>
    %c127_i32_486 = arith.constant 127 : i32
    %1095 = tpu.dynamic_rotate %1081 by %c127_i32_486 dim 1 : vector<16x128xf32>, i32 -> vector<16x128xf32>
    %1096 = arith.mulf %23, %1095 : vector<16x128xf32>
    %1097 = arith.addf %1094, %1096 : vector<16x128xf32>
    %cst_487 = arith.constant 4.000000e+00 : f32
    %1098 = vector.broadcast %cst_487 : f32 to vector<16x128xf32>
    %1099 = arith.mulf %1098, %1081 : vector<16x128xf32>
    %1100 = arith.subf %1097, %1099 : vector<16x128xf32>
    %cst_488 = arith.constant 2.000000e+00 : f32
    %1101 = vector.broadcast %cst_488 : f32 to vector<16x128xf32>
    %1102 = arith.mulf %1101, %1081 : vector<16x128xf32>
    %1103 = arith.subf %1102, %1086 : vector<16x128xf32>
    %1104 = arith.mulf %3, %1100 : vector<16x128xf32>
    %1105 = arith.addf %1103, %1104 : vector<16x128xf32>
    %c2_i32_489 = arith.constant 2 : i32
    %1106 = arith.muli %1022, %c2_i32_489 : i32
    %c1_i32_490 = arith.constant 1 : i32
    %1107 = arith.addi %1106, %c1_i32_490 : i32
    %1108 = arith.index_cast %1107 : i32 to index
    %c0_491 = arith.constant 0 : index
    %c0_492 = arith.constant 0 : index
    %1109 = vector.load %arg9[%1108, %c0_491, %c0_492] : memref<4x16x128xf32, #tpu.memory_space<vmem>>, vector<1x16x128xf32>
    %1110 = vector.shape_cast %1109 : vector<1x16x128xf32> to vector<16x128xf32>
    %1111 = vector.shape_cast %1105 : vector<16x128xf32> to vector<1x16x128xf32>
    tpu.vector_store %arg9[%1108, %c0_491, %c0_492], %1111 {strides = array<i32>} : memref<4x16x128xf32, #tpu.memory_space<vmem>>, vector<1x16x128xf32>,
    %1112 = arith.index_cast %c6_i32 : i32 to index
    %c1_493 = arith.constant 1 : index
    %1113 = vector.load %arg4[%1112, %c1_493] : memref<8x2xf32, #tpu.memory_space<vmem>>, vector<1x1xf32>
    %c2_i32_494 = arith.constant 2 : i32
    %1114 = arith.muli %1022, %c2_i32_494 : i32
    %c1_i32_495 = arith.constant 1 : i32
    %1115 = arith.addi %1114, %c1_i32_495 : i32
    %1116 = arith.index_cast %1115 : i32 to index
    %1117 = arith.index_cast %25 : i32 to index
    %c0_496 = arith.constant 0 : index
    %1118 = vector.load %arg9[%1116, %1117, %c0_496] : memref<4x16x128xf32, #tpu.memory_space<vmem>>, vector<1x1x128xf32>
    %1119 = vector.shape_cast %1118 : vector<1x1x128xf32> to vector<1x128xf32>
    %1120 = vector.extract_strided_slice %4 {offsets = [1, 0], sizes = [1, 128], strides = [1, 1]} : vector<2x128xf32> to vector<1x128xf32>
    %1121 = vector.broadcast %1113 : vector<1x1xf32> to vector<1x128xf32>
    %1122 = arith.mulf %1121, %1120 : vector<1x128xf32>
    %1123 = arith.addf %1119, %1122 : vector<1x128xf32>
    %c2_i32_497 = arith.constant 2 : i32
    %1124 = arith.muli %1022, %c2_i32_497 : i32
    %c1_i32_498 = arith.constant 1 : i32
    %1125 = arith.addi %1124, %c1_i32_498 : i32
    %1126 = arith.index_cast %1125 : i32 to index
    %1127 = arith.index_cast %25 : i32 to index
    %c0_499 = arith.constant 0 : index
    %1128 = vector.load %arg9[%1126, %1127, %c0_499] : memref<4x16x128xf32, #tpu.memory_space<vmem>>, vector<1x1x128xf32>
    %1129 = vector.shape_cast %1128 : vector<1x1x128xf32> to vector<1x128xf32>
    %1130 = vector.shape_cast %1123 : vector<1x128xf32> to vector<1x1x128xf32>
    tpu.vector_store %arg9[%1126, %1127, %c0_499], %1130 {strides = array<i32>} : memref<4x16x128xf32, #tpu.memory_space<vmem>>, vector<1x1x128xf32>,
    %c2_i32_500 = arith.constant 2 : i32
    %1131 = arith.muli %1022, %c2_i32_500 : i32
    %1132 = arith.addi %1131, %26 : i32
    %1133 = arith.index_cast %1132 : i32 to index
    %1134 = arith.index_cast %32 : i32 to index
    %c0_501 = arith.constant 0 : index
    %1135 = vector.load %arg9[%1133, %1134, %c0_501] : memref<4x16x128xf32, #tpu.memory_space<vmem>>, vector<1x1x128xf32>
    %1136 = vector.shape_cast %1135 : vector<1x1x128xf32> to vector<1x128xf32>
    %c2_i32_502 = arith.constant 2 : i32
    %1137 = arith.muli %1022, %c2_i32_502 : i32
    %1138 = arith.addi %1137, %27 : i32
    %1139 = arith.index_cast %1138 : i32 to index
    %1140 = arith.index_cast %33 : i32 to index
    %c0_503 = arith.constant 0 : index
    %1141 = vector.load %arg9[%1139, %1140, %c0_503] : memref<4x16x128xf32, #tpu.memory_space<vmem>>, vector<1x1x128xf32>
    %1142 = vector.shape_cast %1141 : vector<1x1x128xf32> to vector<1x128xf32>
    %c2_i32_504 = arith.constant 2 : i32
    %1143 = arith.muli %1022, %c2_i32_504 : i32
    %1144 = arith.addi %1143, %28 : i32
    %1145 = arith.index_cast %1144 : i32 to index
    %1146 = arith.index_cast %34 : i32 to index
    %c0_505 = arith.constant 0 : index
    %1147 = vector.load %arg9[%1145, %1146, %c0_505] : memref<4x16x128xf32, #tpu.memory_space<vmem>>, vector<1x1x128xf32>
    %1148 = vector.shape_cast %1147 : vector<1x1x128xf32> to vector<1x128xf32>
    %c2_i32_506 = arith.constant 2 : i32
    %1149 = arith.muli %1022, %c2_i32_506 : i32
    %1150 = arith.addi %1149, %29 : i32
    %1151 = arith.index_cast %1150 : i32 to index
    %1152 = arith.index_cast %35 : i32 to index
    %c0_507 = arith.constant 0 : index
    %1153 = vector.load %arg9[%1151, %1152, %c0_507] : memref<4x16x128xf32, #tpu.memory_space<vmem>>, vector<1x1x128xf32>
    %1154 = vector.shape_cast %1153 : vector<1x1x128xf32> to vector<1x128xf32>
    %c2_i32_508 = arith.constant 2 : i32
    %1155 = arith.muli %1022, %c2_i32_508 : i32
    %1156 = arith.addi %1155, %30 : i32
    %1157 = arith.index_cast %1156 : i32 to index
    %1158 = arith.index_cast %36 : i32 to index
    %c0_509 = arith.constant 0 : index
    %1159 = vector.load %arg9[%1157, %1158, %c0_509] : memref<4x16x128xf32, #tpu.memory_space<vmem>>, vector<1x1x128xf32>
    %1160 = vector.shape_cast %1159 : vector<1x1x128xf32> to vector<1x128xf32>
    %c2_i32_510 = arith.constant 2 : i32
    %1161 = arith.muli %1022, %c2_i32_510 : i32
    %1162 = arith.addi %1161, %31 : i32
    %1163 = arith.index_cast %1162 : i32 to index
    %1164 = arith.index_cast %37 : i32 to index
    %c0_511 = arith.constant 0 : index
    %1165 = vector.load %arg9[%1163, %1164, %c0_511] : memref<4x16x128xf32, #tpu.memory_space<vmem>>, vector<1x1x128xf32>
    %1166 = vector.shape_cast %1165 : vector<1x1x128xf32> to vector<1x128xf32>
    %1167 = tpu.concatenate %1136, %1142, %1148, %1154, %1160, %1166 in 0 : vector<1x128xf32>, vector<1x128xf32>, vector<1x128xf32>, vector<1x128xf32>, vector<1x128xf32>, vector<1x128xf32> -> vector<6x128xf32>
    %1168 = arith.mulf %1167, %5 : vector<6x128xf32>
    %cst_512 = arith.constant dense<0.000000e+00> : vector<6xf32>
    %1169 = vector.multi_reduction <add>, %1168, %cst_512 [1] : vector<6x128xf32> to vector<6xf32>
    %1170 = vector.shape_cast %1169 : vector<6xf32> to vector<1x6xf32>
    %1171 = arith.index_cast %c6_i32 : i32 to index
    %c0_513 = arith.constant 0 : index
    %1172 = vector.load %arg8[%1171, %c0_513] : memref<8x6xf32, #tpu.memory_space<vmem>>, vector<1x6xf32>
    tpu.vector_store %arg8[%1171, %c0_513], %1170 {strides = array<i32>} : memref<8x6xf32, #tpu.memory_space<vmem>>, vector<1x6xf32>,
    %c7_i32 = arith.constant 7 : i32
    %1173 = arith.addi %38, %c7_i32 : i32
    %c2_i32_514 = arith.constant 2 : i32
    %c0_i32_515 = arith.constant 0 : i32
    %1174 = arith.cmpi eq, %c2_i32_514, %c0_i32_515 : i32
    %c1_i32_516 = arith.constant 1 : i32
    %1175 = arith.select %1174, %c1_i32_516, %c2_i32_514 : i32
    %1176 = arith.remsi %1173, %1175 : i32
    %c0_i32_517 = arith.constant 0 : i32
    %1177 = arith.cmpi ne, %1176, %c0_i32_517 : i32
    %c0_i32_518 = arith.constant 0 : i32
    %1178 = arith.cmpi slt, %1176, %c0_i32_518 : i32
    %c0_i32_519 = arith.constant 0 : i32
    %1179 = arith.cmpi slt, %1175, %c0_i32_519 : i32
    %1180 = arith.xori %1178, %1179 : i1
    %1181 = arith.andi %1180, %1177 : i1
    %1182 = arith.addi %1176, %1175 : i32
    %1183 = arith.select %1181, %1182, %1176 : i32
    %c1_i32_520 = arith.constant 1 : i32
    %1184 = arith.subi %c1_i32_520, %1183 : i32
    %c2_i32_521 = arith.constant 2 : i32
    %1185 = arith.muli %1183, %c2_i32_521 : i32
    %c0_i32_522 = arith.constant 0 : i32
    %1186 = arith.addi %1185, %c0_i32_522 : i32
    %1187 = arith.index_cast %1186 : i32 to index
    %c0_523 = arith.constant 0 : index
    %c0_524 = arith.constant 0 : index
    %1188 = vector.load %arg9[%1187, %c0_523, %c0_524] : memref<4x16x128xf32, #tpu.memory_space<vmem>>, vector<1x16x128xf32>
    %1189 = vector.shape_cast %1188 : vector<1x16x128xf32> to vector<16x128xf32>
    %c2_i32_525 = arith.constant 2 : i32
    %1190 = arith.muli %1184, %c2_i32_525 : i32
    %c0_i32_526 = arith.constant 0 : i32
    %1191 = arith.addi %1190, %c0_i32_526 : i32
    %1192 = arith.index_cast %1191 : i32 to index
    %c0_527 = arith.constant 0 : index
    %c0_528 = arith.constant 0 : index
    %1193 = vector.load %arg9[%1192, %c0_527, %c0_528] : memref<4x16x128xf32, #tpu.memory_space<vmem>>, vector<1x16x128xf32>
    %1194 = vector.shape_cast %1193 : vector<1x16x128xf32> to vector<16x128xf32>
    %c1_i32_529 = arith.constant 1 : i32
    %1195 = tpu.dynamic_rotate %1189 by %c1_i32_529 dim 0 : vector<16x128xf32>, i32 -> vector<16x128xf32>
    %1196 = arith.mulf %11, %1195 : vector<16x128xf32>
    %c15_i32_530 = arith.constant 15 : i32
    %1197 = tpu.dynamic_rotate %1189 by %c15_i32_530 dim 0 : vector<16x128xf32>, i32 -> vector<16x128xf32>
    %1198 = arith.mulf %15, %1197 : vector<16x128xf32>
    %1199 = arith.addf %1196, %1198 : vector<16x128xf32>
    %c1_i32_531 = arith.constant 1 : i32
    %1200 = tpu.dynamic_rotate %1189 by %c1_i32_531 dim 1 : vector<16x128xf32>, i32 -> vector<16x128xf32>
    %1201 = arith.mulf %19, %1200 : vector<16x128xf32>
    %1202 = arith.addf %1199, %1201 : vector<16x128xf32>
    %c127_i32_532 = arith.constant 127 : i32
    %1203 = tpu.dynamic_rotate %1189 by %c127_i32_532 dim 1 : vector<16x128xf32>, i32 -> vector<16x128xf32>
    %1204 = arith.mulf %23, %1203 : vector<16x128xf32>
    %1205 = arith.addf %1202, %1204 : vector<16x128xf32>
    %cst_533 = arith.constant 4.000000e+00 : f32
    %1206 = vector.broadcast %cst_533 : f32 to vector<16x128xf32>
    %1207 = arith.mulf %1206, %1189 : vector<16x128xf32>
    %1208 = arith.subf %1205, %1207 : vector<16x128xf32>
    %cst_534 = arith.constant 2.000000e+00 : f32
    %1209 = vector.broadcast %cst_534 : f32 to vector<16x128xf32>
    %1210 = arith.mulf %1209, %1189 : vector<16x128xf32>
    %1211 = arith.subf %1210, %1194 : vector<16x128xf32>
    %1212 = arith.mulf %3, %1208 : vector<16x128xf32>
    %1213 = arith.addf %1211, %1212 : vector<16x128xf32>
    %c2_i32_535 = arith.constant 2 : i32
    %1214 = arith.muli %1184, %c2_i32_535 : i32
    %c0_i32_536 = arith.constant 0 : i32
    %1215 = arith.addi %1214, %c0_i32_536 : i32
    %1216 = arith.index_cast %1215 : i32 to index
    %c0_537 = arith.constant 0 : index
    %c0_538 = arith.constant 0 : index
    %1217 = vector.load %arg9[%1216, %c0_537, %c0_538] : memref<4x16x128xf32, #tpu.memory_space<vmem>>, vector<1x16x128xf32>
    %1218 = vector.shape_cast %1217 : vector<1x16x128xf32> to vector<16x128xf32>
    %1219 = vector.shape_cast %1213 : vector<16x128xf32> to vector<1x16x128xf32>
    tpu.vector_store %arg9[%1216, %c0_537, %c0_538], %1219 {strides = array<i32>} : memref<4x16x128xf32, #tpu.memory_space<vmem>>, vector<1x16x128xf32>,
    %1220 = arith.index_cast %c7_i32 : i32 to index
    %c0_539 = arith.constant 0 : index
    %1221 = vector.load %arg4[%1220, %c0_539] : memref<8x2xf32, #tpu.memory_space<vmem>>, vector<1x1xf32>
    %c2_i32_540 = arith.constant 2 : i32
    %1222 = arith.muli %1184, %c2_i32_540 : i32
    %c0_i32_541 = arith.constant 0 : i32
    %1223 = arith.addi %1222, %c0_i32_541 : i32
    %1224 = arith.index_cast %1223 : i32 to index
    %1225 = arith.index_cast %24 : i32 to index
    %c0_542 = arith.constant 0 : index
    %1226 = vector.load %arg9[%1224, %1225, %c0_542] : memref<4x16x128xf32, #tpu.memory_space<vmem>>, vector<1x1x128xf32>
    %1227 = vector.shape_cast %1226 : vector<1x1x128xf32> to vector<1x128xf32>
    %1228 = vector.extract_strided_slice %4 {offsets = [0, 0], sizes = [1, 128], strides = [1, 1]} : vector<2x128xf32> to vector<1x128xf32>
    %1229 = vector.broadcast %1221 : vector<1x1xf32> to vector<1x128xf32>
    %1230 = arith.mulf %1229, %1228 : vector<1x128xf32>
    %1231 = arith.addf %1227, %1230 : vector<1x128xf32>
    %c2_i32_543 = arith.constant 2 : i32
    %1232 = arith.muli %1184, %c2_i32_543 : i32
    %c0_i32_544 = arith.constant 0 : i32
    %1233 = arith.addi %1232, %c0_i32_544 : i32
    %1234 = arith.index_cast %1233 : i32 to index
    %1235 = arith.index_cast %24 : i32 to index
    %c0_545 = arith.constant 0 : index
    %1236 = vector.load %arg9[%1234, %1235, %c0_545] : memref<4x16x128xf32, #tpu.memory_space<vmem>>, vector<1x1x128xf32>
    %1237 = vector.shape_cast %1236 : vector<1x1x128xf32> to vector<1x128xf32>
    %1238 = vector.shape_cast %1231 : vector<1x128xf32> to vector<1x1x128xf32>
    tpu.vector_store %arg9[%1234, %1235, %c0_545], %1238 {strides = array<i32>} : memref<4x16x128xf32, #tpu.memory_space<vmem>>, vector<1x1x128xf32>,
    %c2_i32_546 = arith.constant 2 : i32
    %1239 = arith.muli %1183, %c2_i32_546 : i32
    %c1_i32_547 = arith.constant 1 : i32
    %1240 = arith.addi %1239, %c1_i32_547 : i32
    %1241 = arith.index_cast %1240 : i32 to index
    %c0_548 = arith.constant 0 : index
    %c0_549 = arith.constant 0 : index
    %1242 = vector.load %arg9[%1241, %c0_548, %c0_549] : memref<4x16x128xf32, #tpu.memory_space<vmem>>, vector<1x16x128xf32>
    %1243 = vector.shape_cast %1242 : vector<1x16x128xf32> to vector<16x128xf32>
    %c2_i32_550 = arith.constant 2 : i32
    %1244 = arith.muli %1184, %c2_i32_550 : i32
    %c1_i32_551 = arith.constant 1 : i32
    %1245 = arith.addi %1244, %c1_i32_551 : i32
    %1246 = arith.index_cast %1245 : i32 to index
    %c0_552 = arith.constant 0 : index
    %c0_553 = arith.constant 0 : index
    %1247 = vector.load %arg9[%1246, %c0_552, %c0_553] : memref<4x16x128xf32, #tpu.memory_space<vmem>>, vector<1x16x128xf32>
    %1248 = vector.shape_cast %1247 : vector<1x16x128xf32> to vector<16x128xf32>
    %c1_i32_554 = arith.constant 1 : i32
    %1249 = tpu.dynamic_rotate %1243 by %c1_i32_554 dim 0 : vector<16x128xf32>, i32 -> vector<16x128xf32>
    %1250 = arith.mulf %11, %1249 : vector<16x128xf32>
    %c15_i32_555 = arith.constant 15 : i32
    %1251 = tpu.dynamic_rotate %1243 by %c15_i32_555 dim 0 : vector<16x128xf32>, i32 -> vector<16x128xf32>
    %1252 = arith.mulf %15, %1251 : vector<16x128xf32>
    %1253 = arith.addf %1250, %1252 : vector<16x128xf32>
    %c1_i32_556 = arith.constant 1 : i32
    %1254 = tpu.dynamic_rotate %1243 by %c1_i32_556 dim 1 : vector<16x128xf32>, i32 -> vector<16x128xf32>
    %1255 = arith.mulf %19, %1254 : vector<16x128xf32>
    %1256 = arith.addf %1253, %1255 : vector<16x128xf32>
    %c127_i32_557 = arith.constant 127 : i32
    %1257 = tpu.dynamic_rotate %1243 by %c127_i32_557 dim 1 : vector<16x128xf32>, i32 -> vector<16x128xf32>
    %1258 = arith.mulf %23, %1257 : vector<16x128xf32>
    %1259 = arith.addf %1256, %1258 : vector<16x128xf32>
    %cst_558 = arith.constant 4.000000e+00 : f32
    %1260 = vector.broadcast %cst_558 : f32 to vector<16x128xf32>
    %1261 = arith.mulf %1260, %1243 : vector<16x128xf32>
    %1262 = arith.subf %1259, %1261 : vector<16x128xf32>
    %cst_559 = arith.constant 2.000000e+00 : f32
    %1263 = vector.broadcast %cst_559 : f32 to vector<16x128xf32>
    %1264 = arith.mulf %1263, %1243 : vector<16x128xf32>
    %1265 = arith.subf %1264, %1248 : vector<16x128xf32>
    %1266 = arith.mulf %3, %1262 : vector<16x128xf32>
    %1267 = arith.addf %1265, %1266 : vector<16x128xf32>
    %c2_i32_560 = arith.constant 2 : i32
    %1268 = arith.muli %1184, %c2_i32_560 : i32
    %c1_i32_561 = arith.constant 1 : i32
    %1269 = arith.addi %1268, %c1_i32_561 : i32
    %1270 = arith.index_cast %1269 : i32 to index
    %c0_562 = arith.constant 0 : index
    %c0_563 = arith.constant 0 : index
    %1271 = vector.load %arg9[%1270, %c0_562, %c0_563] : memref<4x16x128xf32, #tpu.memory_space<vmem>>, vector<1x16x128xf32>
    %1272 = vector.shape_cast %1271 : vector<1x16x128xf32> to vector<16x128xf32>
    %1273 = vector.shape_cast %1267 : vector<16x128xf32> to vector<1x16x128xf32>
    tpu.vector_store %arg9[%1270, %c0_562, %c0_563], %1273 {strides = array<i32>} : memref<4x16x128xf32, #tpu.memory_space<vmem>>, vector<1x16x128xf32>,
    %1274 = arith.index_cast %c7_i32 : i32 to index
    %c1_564 = arith.constant 1 : index
    %1275 = vector.load %arg4[%1274, %c1_564] : memref<8x2xf32, #tpu.memory_space<vmem>>, vector<1x1xf32>
    %c2_i32_565 = arith.constant 2 : i32
    %1276 = arith.muli %1184, %c2_i32_565 : i32
    %c1_i32_566 = arith.constant 1 : i32
    %1277 = arith.addi %1276, %c1_i32_566 : i32
    %1278 = arith.index_cast %1277 : i32 to index
    %1279 = arith.index_cast %25 : i32 to index
    %c0_567 = arith.constant 0 : index
    %1280 = vector.load %arg9[%1278, %1279, %c0_567] : memref<4x16x128xf32, #tpu.memory_space<vmem>>, vector<1x1x128xf32>
    %1281 = vector.shape_cast %1280 : vector<1x1x128xf32> to vector<1x128xf32>
    %1282 = vector.extract_strided_slice %4 {offsets = [1, 0], sizes = [1, 128], strides = [1, 1]} : vector<2x128xf32> to vector<1x128xf32>
    %1283 = vector.broadcast %1275 : vector<1x1xf32> to vector<1x128xf32>
    %1284 = arith.mulf %1283, %1282 : vector<1x128xf32>
    %1285 = arith.addf %1281, %1284 : vector<1x128xf32>
    %c2_i32_568 = arith.constant 2 : i32
    %1286 = arith.muli %1184, %c2_i32_568 : i32
    %c1_i32_569 = arith.constant 1 : i32
    %1287 = arith.addi %1286, %c1_i32_569 : i32
    %1288 = arith.index_cast %1287 : i32 to index
    %1289 = arith.index_cast %25 : i32 to index
    %c0_570 = arith.constant 0 : index
    %1290 = vector.load %arg9[%1288, %1289, %c0_570] : memref<4x16x128xf32, #tpu.memory_space<vmem>>, vector<1x1x128xf32>
    %1291 = vector.shape_cast %1290 : vector<1x1x128xf32> to vector<1x128xf32>
    %1292 = vector.shape_cast %1285 : vector<1x128xf32> to vector<1x1x128xf32>
    tpu.vector_store %arg9[%1288, %1289, %c0_570], %1292 {strides = array<i32>} : memref<4x16x128xf32, #tpu.memory_space<vmem>>, vector<1x1x128xf32>,
    %c2_i32_571 = arith.constant 2 : i32
    %1293 = arith.muli %1184, %c2_i32_571 : i32
    %1294 = arith.addi %1293, %26 : i32
    %1295 = arith.index_cast %1294 : i32 to index
    %1296 = arith.index_cast %32 : i32 to index
    %c0_572 = arith.constant 0 : index
    %1297 = vector.load %arg9[%1295, %1296, %c0_572] : memref<4x16x128xf32, #tpu.memory_space<vmem>>, vector<1x1x128xf32>
    %1298 = vector.shape_cast %1297 : vector<1x1x128xf32> to vector<1x128xf32>
    %c2_i32_573 = arith.constant 2 : i32
    %1299 = arith.muli %1184, %c2_i32_573 : i32
    %1300 = arith.addi %1299, %27 : i32
    %1301 = arith.index_cast %1300 : i32 to index
    %1302 = arith.index_cast %33 : i32 to index
    %c0_574 = arith.constant 0 : index
    %1303 = vector.load %arg9[%1301, %1302, %c0_574] : memref<4x16x128xf32, #tpu.memory_space<vmem>>, vector<1x1x128xf32>
    %1304 = vector.shape_cast %1303 : vector<1x1x128xf32> to vector<1x128xf32>
    %c2_i32_575 = arith.constant 2 : i32
    %1305 = arith.muli %1184, %c2_i32_575 : i32
    %1306 = arith.addi %1305, %28 : i32
    %1307 = arith.index_cast %1306 : i32 to index
    %1308 = arith.index_cast %34 : i32 to index
    %c0_576 = arith.constant 0 : index
    %1309 = vector.load %arg9[%1307, %1308, %c0_576] : memref<4x16x128xf32, #tpu.memory_space<vmem>>, vector<1x1x128xf32>
    %1310 = vector.shape_cast %1309 : vector<1x1x128xf32> to vector<1x128xf32>
    %c2_i32_577 = arith.constant 2 : i32
    %1311 = arith.muli %1184, %c2_i32_577 : i32
    %1312 = arith.addi %1311, %29 : i32
    %1313 = arith.index_cast %1312 : i32 to index
    %1314 = arith.index_cast %35 : i32 to index
    %c0_578 = arith.constant 0 : index
    %1315 = vector.load %arg9[%1313, %1314, %c0_578] : memref<4x16x128xf32, #tpu.memory_space<vmem>>, vector<1x1x128xf32>
    %1316 = vector.shape_cast %1315 : vector<1x1x128xf32> to vector<1x128xf32>
    %c2_i32_579 = arith.constant 2 : i32
    %1317 = arith.muli %1184, %c2_i32_579 : i32
    %1318 = arith.addi %1317, %30 : i32
    %1319 = arith.index_cast %1318 : i32 to index
    %1320 = arith.index_cast %36 : i32 to index
    %c0_580 = arith.constant 0 : index
    %1321 = vector.load %arg9[%1319, %1320, %c0_580] : memref<4x16x128xf32, #tpu.memory_space<vmem>>, vector<1x1x128xf32>
    %1322 = vector.shape_cast %1321 : vector<1x1x128xf32> to vector<1x128xf32>
    %c2_i32_581 = arith.constant 2 : i32
    %1323 = arith.muli %1184, %c2_i32_581 : i32
    %1324 = arith.addi %1323, %31 : i32
    %1325 = arith.index_cast %1324 : i32 to index
    %1326 = arith.index_cast %37 : i32 to index
    %c0_582 = arith.constant 0 : index
    %1327 = vector.load %arg9[%1325, %1326, %c0_582] : memref<4x16x128xf32, #tpu.memory_space<vmem>>, vector<1x1x128xf32>
    %1328 = vector.shape_cast %1327 : vector<1x1x128xf32> to vector<1x128xf32>
    %1329 = tpu.concatenate %1298, %1304, %1310, %1316, %1322, %1328 in 0 : vector<1x128xf32>, vector<1x128xf32>, vector<1x128xf32>, vector<1x128xf32>, vector<1x128xf32>, vector<1x128xf32> -> vector<6x128xf32>
    %1330 = arith.mulf %1329, %5 : vector<6x128xf32>
    %cst_583 = arith.constant dense<0.000000e+00> : vector<6xf32>
    %1331 = vector.multi_reduction <add>, %1330, %cst_583 [1] : vector<6x128xf32> to vector<6xf32>
    %1332 = vector.shape_cast %1331 : vector<6xf32> to vector<1x6xf32>
    %1333 = arith.index_cast %c7_i32 : i32 to index
    %c0_584 = arith.constant 0 : index
    %1334 = vector.load %arg8[%1333, %c0_584] : memref<8x6xf32, #tpu.memory_space<vmem>>, vector<1x6xf32>
    tpu.vector_store %arg8[%1333, %c0_584], %1332 {strides = array<i32>} : memref<8x6xf32, #tpu.memory_space<vmem>>, vector<1x6xf32>,
    %c8_i32_585 = arith.constant 8 : i32
    return
  }
  func.func @transform_0(%arg0: i32, %arg1: memref<2xi32, #tpu.memory_space<smem>>, %arg2: memref<6xi32, #tpu.memory_space<smem>>, %arg3: memref<6xi32, #tpu.memory_space<smem>>) -> (i32, i32) {
    %c0_i32 = arith.constant 0 : i32
    %c0_i32_0 = arith.constant 0 : i32
    return %arg0, %c0_i32 : i32, i32
  }
  func.func @transform_1(%arg0: i32, %arg1: memref<2xi32, #tpu.memory_space<smem>>, %arg2: memref<6xi32, #tpu.memory_space<smem>>, %arg3: memref<6xi32, #tpu.memory_space<smem>>) -> (i32, i32) {
    %c0_i32 = arith.constant 0 : i32
    %c0_i32_0 = arith.constant 0 : i32
    %c0_i32_1 = arith.constant 0 : i32
    return %c0_i32, %c0_i32_0 : i32, i32
  }
  func.func @transform_2(%arg0: i32, %arg1: memref<2xi32, #tpu.memory_space<smem>>, %arg2: memref<6xi32, #tpu.memory_space<smem>>, %arg3: memref<6xi32, #tpu.memory_space<smem>>) -> (i32, i32) {
    %c0_i32 = arith.constant 0 : i32
    %c0_i32_0 = arith.constant 0 : i32
    %c0_i32_1 = arith.constant 0 : i32
    return %c0_i32, %c0_i32_0 : i32, i32
  }
  func.func @transform_3(%arg0: i32, %arg1: memref<2xi32, #tpu.memory_space<smem>>, %arg2: memref<6xi32, #tpu.memory_space<smem>>, %arg3: memref<6xi32, #tpu.memory_space<smem>>) -> (i32, i32) {
    %c0_i32 = arith.constant 0 : i32
    %c0_i32_0 = arith.constant 0 : i32
    %c0_i32_1 = arith.constant 0 : i32
    return %c0_i32, %c0_i32_0 : i32, i32
  }
  func.func @transform_4(%arg0: i32, %arg1: memref<2xi32, #tpu.memory_space<smem>>, %arg2: memref<6xi32, #tpu.memory_space<smem>>, %arg3: memref<6xi32, #tpu.memory_space<smem>>) -> (i32, i32) {
    %c0_i32 = arith.constant 0 : i32
    %c0_i32_0 = arith.constant 0 : i32
    return %arg0, %c0_i32 : i32, i32
  }
}

</mosaic_0001>

<llo_original>
// kernel: tpu_custom_call.1
$region0: #{tpu_custom_call.1}
  #allocation0 [shape = 'u32[]', space=smem, size = 0x4, offset = 0x4, fixed_abs, tag = 'smem constant byte address 0x4 - core index']
  #allocation1 [shape = 'u32[144,128]{1,0:T(1,128)}', space=vmem, size = 0x12000, scoped, tag = 'internal scratch']
  #allocation2 [shape = 'f32[4,16,128]{2,1,0:T(8,128)}', space=vmem, size = 0x8000, scoped, tag = 'scratch operand']
  #allocation3 [shape = 's32[1]{0}', space=sflag, size = 0x4, scoped, tag = 'scoped memory for tpu_custom_call.1']
  #allocation4 [shape = 'u8[512]{0}', space=smem, size = 0x200, scoped, tag = 'prefetched SMEM operand 0']
  #allocation5 [shape = 'u8[512]{0}', space=smem, size = 0x200, scoped, tag = 'prefetched SMEM operand 1']
  #allocation6 [shape = 'u8[512]{0}', space=smem, size = 0x200, scoped, tag = 'prefetched SMEM operand 2']
  %s0 = inlined_call_operand.vmem [shape: s32[2], index: 0, kind: input, shape index: {}]
  %s1 = inlined_call_operand.vmem [shape: s32[6], index: 1, kind: input, shape index: {}]
  %s2 = inlined_call_operand.vmem [shape: s32[6], index: 2, kind: input, shape index: {}]
  %s3 = inlined_call_operand.vmem [shape: f32[16,2], index: 3, kind: input, shape index: {}]
  %s4 = inlined_call_operand.vmem [shape: f32[16,128], index: 4, kind: input, shape index: {}]
  %s5 = inlined_call_operand.vmem [shape: f32[2,128], index: 5, kind: input, shape index: {}]
  %s6 = inlined_call_operand.vmem [shape: f32[6,128], index: 6, kind: input, shape index: {}]
  %s7 = inlined_call_operand.vmem [shape: f32[16,6], index: 7, kind: output, shape index: {}]
  %s8 = sld [smem:[#allocation0]]
  $region53: #{tpu_custom_call.1} parent=0
    _
  %s10 = ssub.s32 1, %s8
  %s11 = scalar_select 0, %s10, %s8
  %s12 = sshll.u32 %s0, 4
  %s13 = int_to_ptr.vmem [resolvable:$true] %s12
  %15 = dma.vmem_to_smem %s13, 16, [#allocation4], [#allocation3]
  %s16 = sshll.u32 %s1, 4
  %s17 = int_to_ptr.vmem [resolvable:$true] %s16
  %19 = dma.vmem_to_smem %s17, 16, [#allocation5], [#allocation3]
  %s20 = sshll.u32 %s2, 4
  %s21 = int_to_ptr.vmem [resolvable:$true] %s20
  %23 = dma.vmem_to_smem %s21, 16, [#allocation6], [#allocation3]
  %24 = dma.done [#allocation3], 48
  %25 = sfence
  loop: start=0, step=1, limit=4
  $region2: #{tpu_custom_call.1} parent=0 // loop_pre_header
    _
  $region3: #{tpu_custom_call.1} parent=0 // loop_header
    %s27 = sphi 0, %s31
    %p28 = scmp.ge.s32.totalorder %s27, 4
    %s37 = sphi 0, %s39
    %s40 = sphi 0, %s37
    %s41 = sphi 0, %s40
    %s57 = sphi 0, %s41
    %s61 = sphi 0, %s61
    %s63 = sphi 0, %s61
    %s64 = sphi 0, %s63
    %s78 = sphi 0, %s64
    %s82 = sphi 0, %s82
    %s84 = sphi 0, %s82
    %s85 = sphi 0, %s84
    %s99 = sphi 0, %s85
    %s103 = sphi 0, %s103
    %s105 = sphi 0, %s103
    %s106 = sphi 0, %s105
    %s120 = sphi 0, %s106
    %s126 = sphi 0, %s128
    %s129 = sphi 0, %s126
    %s130 = sphi 0, %s129
    %s146 = sphi 0, %s130
  $region4: #{tpu_custom_call.1} parent=0 // loop_header_branch
    %30 = sbr.rel (%p28) target = $region8
  $region5: #{tpu_custom_call.1} parent=0 // loop_body
    %s32 = ssub.s32 %s27, 1
    %s33 = ssub.s32 %s27, 2
    %s34 = sadd.s32 %s27, 1
    %s35 = ssub.s32 %s27, %s34
    %p36 = scmp.eq.s32.totalorder %s35, 0
    %s38 = sadd.s32 %s37, 1
    %s39 = scalar_select %p36, %s37, %s38
    %p42 = pneg %p36
    %p43 = scmp.eq.s32.totalorder %s27, 1
    %p44 = por %p42, %p43
    %p45 = scmp.ne.s32.totalorder %s37, %s40
    %p46 = scmp.eq.s32.totalorder %s27, 0
    %p47 = por %p45, %p46
    %p48 = scmp.ne.s32.totalorder %s37, %s40
    %p49 = scmp.eq.s32.totalorder %s32, 1
    %p50 = por %p48, %p49
    %p51 = scmp.ne.s32.totalorder %s40, %s41
    %p52 = scmp.eq.s32.totalorder %s32, 0
    %p53 = por %p51, %p52
    %p54 = scmp.ne.s32.totalorder %s40, %s41
    %p55 = scmp.eq.s32.totalorder %s33, 1
    %p56 = por %p54, %p55
    %p58 = scmp.ne.s32.totalorder %s41, %s57
    %p59 = scmp.eq.s32.totalorder %s33, 0
    %p60 = por %p58, %p59
    %s62 = sadd.s32 %s61, 1
    %p65 = scmp.eq.s32.totalorder %s27, 1
    %p66 = scmp.ne.s32.totalorder %s61, %s63
    %p67 = scmp.eq.s32.totalorder %s27, 0
    %p68 = por %p66, %p67
    %p69 = scmp.ne.s32.totalorder %s61, %s63
    %p70 = scmp.eq.s32.totalorder %s32, 1
    %p71 = por %p69, %p70
    %p72 = scmp.ne.s32.totalorder %s63, %s64
    %p73 = scmp.eq.s32.totalorder %s32, 0
    %p74 = por %p72, %p73
    %p75 = scmp.ne.s32.totalorder %s63, %s64
    %p76 = scmp.eq.s32.totalorder %s33, 1
    %p77 = por %p75, %p76
    %p79 = scmp.ne.s32.totalorder %s64, %s78
    %p80 = scmp.eq.s32.totalorder %s33, 0
    %p81 = por %p79, %p80
    %s83 = sadd.s32 %s82, 1
    %p86 = scmp.eq.s32.totalorder %s27, 1
    %p87 = scmp.ne.s32.totalorder %s82, %s84
    %p88 = scmp.eq.s32.totalorder %s27, 0
    %p89 = por %p87, %p88
    %p90 = scmp.ne.s32.totalorder %s82, %s84
    %p91 = scmp.eq.s32.totalorder %s32, 1
    %p92 = por %p90, %p91
    %p93 = scmp.ne.s32.totalorder %s84, %s85
    %p94 = scmp.eq.s32.totalorder %s32, 0
    %p95 = por %p93, %p94
    %p96 = scmp.ne.s32.totalorder %s84, %s85
    %p97 = scmp.eq.s32.totalorder %s33, 1
    %p98 = por %p96, %p97
    %p100 = scmp.ne.s32.totalorder %s85, %s99
    %p101 = scmp.eq.s32.totalorder %s33, 0
    %p102 = por %p100, %p101
    %s104 = sadd.s32 %s103, 1
    %p107 = scmp.eq.s32.totalorder %s27, 1
    %p108 = scmp.ne.s32.totalorder %s103, %s105
    %p109 = scmp.eq.s32.totalorder %s27, 0
    %p110 = por %p108, %p109
    %p111 = scmp.ne.s32.totalorder %s103, %s105
    %p112 = scmp.eq.s32.totalorder %s32, 1
    %p113 = por %p111, %p112
    %p114 = scmp.ne.s32.totalorder %s105, %s106
    %p115 = scmp.eq.s32.totalorder %s32, 0
    %p116 = por %p114, %p115
    %p117 = scmp.ne.s32.totalorder %s105, %s106
    %p118 = scmp.eq.s32.totalorder %s33, 1
    %p119 = por %p117, %p118
    %p121 = scmp.ne.s32.totalorder %s106, %s120
    %p122 = scmp.eq.s32.totalorder %s33, 0
    %p123 = por %p121, %p122
    %s124 = ssub.s32 %s27, %s34
    %p125 = scmp.eq.s32.totalorder %s124, 0
    %s127 = sadd.s32 %s126, 1
    %s128 = scalar_select %p125, %s126, %s127
    %p131 = pneg %p125
    %p132 = scmp.eq.s32.totalorder %s27, 1
    %p133 = por %p131, %p132
    %p134 = scmp.ne.s32.totalorder %s126, %s129
    %p135 = scmp.eq.s32.totalorder %s27, 0
    %p136 = por %p134, %p135
    %p137 = scmp.ne.s32.totalorder %s126, %s129
    %p138 = scmp.eq.s32.totalorder %s32, 1
    %p139 = por %p137, %p138
    %p140 = scmp.ne.s32.totalorder %s129, %s130
    %p141 = scmp.eq.s32.totalorder %s32, 0
    %p142 = por %p140, %p141
    %p143 = scmp.ne.s32.totalorder %s129, %s130
    %p144 = scmp.eq.s32.totalorder %s33, 1
    %p145 = por %p143, %p144
    %p147 = scmp.ne.s32.totalorder %s130, %s146
    %p148 = scmp.eq.s32.totalorder %s33, 0
    %p149 = por %p147, %p148
    %p150 = scmp.le.s32.totalorder 1, %s27
    %p151 = scmp.lt.s32.totalorder %s27, 3
    %p152 = pnand %p150, %p151
    %p153 = pneg %p152
    // Predicated region
    $region9: #{tpu_custom_call.1} parent=5 // pred_check
      _
    $region10: #{tpu_custom_call.1} parent=5 // pred_check_branch
      %155 = sbr.rel (%p152) target = $region12
    $region11: #{tpu_custom_call.1} parent=5 // pred_region
      %s156 = ssub.s32 %s27, 1
      // Predicated region
      $region13: #{tpu_custom_call.1} parent=11 // pred_check
        %p157 = pneg %p74
      $region14: #{tpu_custom_call.1} parent=11 // pred_check_branch
        %159 = sbr.rel (%p157) target = $region16
      $region15: #{tpu_custom_call.1} parent=11 // pred_region
        _
      $region16: #{tpu_custom_call.1} parent=11 // pred_fallthru
        _
      // Predicated region
      $region17: #{tpu_custom_call.1} parent=11 // pred_check
        %p160 = pneg %p95
      $region18: #{tpu_custom_call.1} parent=11 // pred_check_branch
        %162 = sbr.rel (%p160) target = $region20
      $region19: #{tpu_custom_call.1} parent=11 // pred_region
        _
      $region20: #{tpu_custom_call.1} parent=11 // pred_fallthru
        _
      // Predicated region
      $region21: #{tpu_custom_call.1} parent=11 // pred_check
        %p163 = pneg %p116
      $region22: #{tpu_custom_call.1} parent=11 // pred_check_branch
        %165 = sbr.rel (%p163) target = $region24
      $region23: #{tpu_custom_call.1} parent=11 // pred_region
        _
      $region24: #{tpu_custom_call.1} parent=11 // pred_fallthru
        _
    $region12: #{tpu_custom_call.1} parent=5 // pred_fallthru
      _
    %p166 = scmp.lt.s32.totalorder %s27, 2
    // Predicated region
    $region25: #{tpu_custom_call.1} parent=5 // pred_check
      %p167 = pneg %p166
    $region26: #{tpu_custom_call.1} parent=5 // pred_check_branch
      %169 = sbr.rel (%p167) target = $region28
    $region27: #{tpu_custom_call.1} parent=5 // pred_region
      // Predicated region
      $region29: #{tpu_custom_call.1} parent=27 // pred_check
        %p170 = pneg %p47
      $region30: #{tpu_custom_call.1} parent=27 // pred_check_branch
        %172 = sbr.rel (%p170) target = $region32
      $region31: #{tpu_custom_call.1} parent=27 // pred_region
        %p173 = scmp.lt.s32.totalorder %s27, 1
        %s174 = scalar_select %p173, %s27, 1
        %s175 = smul.addr %s174, 8
        %s176 = scalar_lea.vmem %s3, %s175
      $region32: #{tpu_custom_call.1} parent=27 // pred_fallthru
        _
    $region28: #{tpu_custom_call.1} parent=5 // pred_fallthru
      _
    %p177 = scmp.le.s32.totalorder 1, %s27
    %p178 = scmp.lt.s32.totalorder %s27, 3
    %p179 = pnand %p177, %p178
    %p180 = pneg %p179
    // Predicated region
    $region33: #{tpu_custom_call.1} parent=5 // pred_check
      _
    $region34: #{tpu_custom_call.1} parent=5 // pred_check_branch
      %182 = sbr.rel (%p179) target = $region36
    $region35: #{tpu_custom_call.1} parent=5 // pred_region
      %s183 = ssub.s32 %s27, 1
      %p184 = scmp.lt.s32.totalorder %s32, 1
      %s185 = scalar_select %p184, %s32, 1
      %s186 = smul.addr %s185, 8
      %s187 = scalar_lea.vmem %s3, %s186
      %p188 = pneg %p53
      %p189 = pneg %p50
      %p190 = pneg %p74
      %p191 = pneg %p71
      %p192 = pneg %p95
      %p193 = pneg %p92
      %p194 = pneg %p116
      %p195 = pneg %p113
      %p196 = pneg %p142
      %p197 = pneg %p139
      %p198 = scmp.lt.s32.totalorder %s32, 1
      %s199 = scalar_select %p198, %s32, 1
      %s200 = smul.addr %s199, 8
      %s201 = scalar_lea.vmem %s7, %s200
      %p202 = scmp.lt.s32.totalorder %s32, 1
      %s203 = scalar_select %p202, %s32, 1
      %s204 = smul.addr %s203, 8
      %s205 = scalar_lea.vmem %s3, %s204
      %p206 = scmp.lt.s32.totalorder %s32, 1
      %s207 = scalar_select %p206, %s32, 1
      %s208 = smul.addr %s207, 8
      %s209 = scalar_lea.vmem %s7, %s208
      %p210 = scmp.eq.s32.totalorder %s32, 0
      // Predicated region
      $region37: #{tpu_custom_call.1} parent=35 // pred_check
        %p211 = pneg %p210
      $region38: #{tpu_custom_call.1} parent=35 // pred_check_branch
        %213 = sbr.rel (%p211) target = $region40
      $region39: #{tpu_custom_call.1} parent=35 // pred_region
        %214 = vst [vmem:[#allocation2] sm:$0xff] 0.0
        %215 = vst [vmem:[#allocation2 + $0x8] sm:$0xff] 0.0
        %216 = vst [vmem:[#allocation2 + $0x10] sm:$0xff] 0.0
        %217 = vst [vmem:[#allocation2 + $0x18] sm:$0xff] 0.0
        %218 = vst [vmem:[#allocation2 + $0x20] sm:$0xff] 0.0
        %219 = vst [vmem:[#allocation2 + $0x28] sm:$0xff] 0.0
        %220 = vst [vmem:[#allocation2 + $0x30] sm:$0xff] 0.0
        %221 = vst [vmem:[#allocation2 + $0x38] sm:$0xff] 0.0
      $region40: #{tpu_custom_call.1} parent=35 // pred_fallthru
        _
      %v222 = vld [vmem:[%s4] sm:$0xff]
      %v223 = vld [vmem:[%s4 + $0x8] sm:$0xff]
      %v224 = vld [vmem:[%s5] sm:$0x3]
      %v225 = vld [vmem:[%s6] sm:$0x3f]
      %v226 = vlaneseq
      %v227 = vshrl.u32 %v226, 7
      %v228 = vadd.s32 %v227, 8
      %v229 = vlaneseq
      %v230 = vand.u32 %v229, 127
      %vm231 = vcmp.gt.s32.totalorder %v227, 0
      %vm232 = vcmp.gt.s32.totalorder %v228, 0
      %v233 = vsel %vm231, 1, 0
      %v234 = vsel %vm232, 1, 0
      %v235 = vcvt.s32.f32 %v233
      %v236 = vcvt.s32.f32 %v234
      %vm237 = vcmp.lt.s32.totalorder %v227, 15
      %vm238 = vcmp.lt.s32.totalorder %v228, 15
      %v239 = vsel %vm237, 1, 0
      %v240 = vsel %vm238, 1, 0
      %v241 = vcvt.s32.f32 %v239
      %v242 = vcvt.s32.f32 %v240
      %vm243 = vcmp.gt.s32.totalorder %v230, 0
      %v244 = vsel %vm243, 1, 0
      %v245 = vcvt.s32.f32 %v244
      %vm246 = vcmp.lt.s32.totalorder %v230, 127
      %v247 = vsel %vm246, 1, 0
      %v248 = vcvt.s32.f32 %v247
      %s249 = sld [smem:[#allocation4]]
      %s250 = sld [smem:[#allocation4 + $0x1]]
      %s251 = sld [smem:[#allocation5]]
      %s252 = sld [smem:[#allocation5 + $0x1]]
      %s253 = sld [smem:[#allocation5 + $0x2]]
      %s254 = sld [smem:[#allocation5 + $0x3]]
      %s255 = sld [smem:[#allocation5 + $0x4]]
      %s256 = sld [smem:[#allocation5 + $0x5]]
      %s257 = sld [smem:[#allocation6]]
      %s258 = sld [smem:[#allocation6 + $0x1]]
      %s259 = sld [smem:[#allocation6 + $0x2]]
      %s260 = sld [smem:[#allocation6 + $0x3]]
      %s261 = sld [smem:[#allocation6 + $0x4]]
      %s262 = sld [smem:[#allocation6 + $0x5]]
      %s263 = smul.u32 %s32, 8
      %p264 = scmp.lt.s32.totalorder %s263, 0
      %s265 = ssub.s32 0, %s263
      %s266 = scalar_select %p264, %s265, %s263
      %s267 = sand.u32 %s266, 1
      %s268 = ssub.s32 0, %s267
      %s269 = scalar_select %p264, %s268, %s267
      %p270 = scmp.ne.s32.totalorder %s269, 0
      %p271 = scmp.lt.s32.totalorder %s269, 0
      %p272 = pnand %p271, %p270
      %p273 = pneg %p272
      %s274 = sadd.s32 %s269, 2
      %s275 = scalar_select %p273, %s274, %s269
      %s276 = ssub.s32 1, %s275
      %s277 = smul.u32 %s275, 2
      %s278 = smul.u32 %s277, 16
      %s279 = scalar_lea.vmem [#allocation2], %s278
      %v280 = vld [vmem:[%s279] sm:$0xff]
      %v281 = vld [vmem:[%s279 + $0x8] sm:$0xff]
      %s282 = smul.u32 %s276, 2
      %s283 = smul.u32 %s282, 16
      %s284 = scalar_lea.vmem [#allocation2], %s283
      %v285 = vld [vmem:[%s284] sm:$0xff]
      %v286 = vld [vmem:[%s284 + $0x8] sm:$0xff]
      %v287 = vrot.slane %v280, 7
      %v288 = vrot.slane %v281, 7
      %vm289 = vcmp.lt.s32.totalorder %v227, 1
      %v290 = vsel %vm289, %v287, %v288
      %v291 = vsel %vm289, %v288, %v287
      %v292 = vmul.f32 %v235, %v291
      %v293 = vmul.f32 %v236, %v290
      %v294 = vrot.slane %v280, 1
      %v295 = vrot.slane %v281, 1
      %vm296 = vcmp.lt.s32.totalorder %v227, 7
      %v297 = vsel %vm296, %v294, %v295
      %v298 = vsel %vm296, %v295, %v294
      %v299 = vmul.f32 %v241, %v297
      %v300 = vmul.f32 %v242, %v298
      %v301 = vadd.f32 %v292, %v299
      %v302 = vadd.f32 %v293, %v300
      %303 = vrot.lane.b32.xlu0 %v280, 1
      %v304 = vpop.permute.xlu0 %303
      %305 = vrot.lane.b32.xlu0 %v281, 1
      %v306 = vpop.permute.xlu0 %305
      %v307 = vmul.f32 %v245, %v304
      %v308 = vmul.f32 %v245, %v306
      %v309 = vadd.f32 %v301, %v307
      %v310 = vadd.f32 %v302, %v308
      %311 = vrot.lane.b32.xlu0 %v280, 127
      %v312 = vpop.permute.xlu0 %311
      %313 = vrot.lane.b32.xlu0 %v281, 127
      %v314 = vpop.permute.xlu0 %313
      %v315 = vmul.f32 %v248, %v312
      %v316 = vmul.f32 %v248, %v314
      %v317 = vadd.f32 %v309, %v315
      %v318 = vadd.f32 %v310, %v316
      %v319 = vmul.f32 %v280, 4.0
      %v320 = vmul.f32 %v281, 4.0
      %v321 = vsub.f32 %v317, %v319
      %v322 = vsub.f32 %v318, %v320
      %v323 = vmul.f32 %v280, 2.0
      %v324 = vmul.f32 %v281, 2.0
      %v325 = vsub.f32 %v323, %v285
      %v326 = vsub.f32 %v324, %v286
      %v327 = vmul.f32 %v222, %v321
      %v328 = vmul.f32 %v223, %v322
      %v329 = vadd.f32 %v325, %v327
      %v330 = vadd.f32 %v326, %v328
      %331 = vst [vmem:[%s284] sm:$0xff] %v329
      %332 = vst [vmem:[%s284 + $0x8] sm:$0xff] %v330
      %v333 = vld [vmem:[%s205] sm:$0x1]
      %s334 = sadd.s32 %s249, %s283
      %s335 = scalar_lea.vmem [#allocation2], %s334
      %v336 = vld [vmem:[%s335] sm:$0x1]
      %338 = vset.pattern.permute.xlu0 0
      %339 = vperm.xlu0 %338, %v333
      %v340 = vpop.permute.xlu0 %339
      %v342 = vmul.f32 %v340, %v224
      %v343 = vadd.f32 %v336, %v342
      %344 = vst [vmem:[%s335] sm:$0x1] %v343
      %s345 = sadd.s32 %s277, 1
      %s346 = smul.u32 %s345, 16
      %s347 = scalar_lea.vmem [#allocation2], %s346
      %v348 = vld [vmem:[%s347] sm:$0xff]
      %v349 = vld [vmem:[%s347 + $0x8] sm:$0xff]
      %s350 = sadd.s32 %s282, 1
      %s351 = smul.u32 %s350, 16
      %s352 = scalar_lea.vmem [#allocation2], %s351
      %v353 = vld [vmem:[%s352] sm:$0xff]
      %v354 = vld [vmem:[%s352 + $0x8] sm:$0xff]
      %v355 = vrot.slane %v348, 7
      %v356 = vrot.slane %v349, 7
      %v357 = vsel %vm289, %v355, %v356
      %v358 = vsel %vm289, %v356, %v355
      %v359 = vmul.f32 %v235, %v358
      %v360 = vmul.f32 %v236, %v357
      %v361 = vrot.slane %v348, 1
      %v362 = vrot.slane %v349, 1
      %v363 = vsel %vm296, %v361, %v362
      %v364 = vsel %vm296, %v362, %v361
      %v365 = vmul.f32 %v241, %v363
      %v366 = vmul.f32 %v242, %v364
      %v367 = vadd.f32 %v359, %v365
      %v368 = vadd.f32 %v360, %v366
      %369 = vrot.lane.b32.xlu0 %v348, 1
      %v370 = vpop.permute.xlu0 %369
      %371 = vrot.lane.b32.xlu0 %v349, 1
      %v372 = vpop.permute.xlu0 %371
      %v373 = vmul.f32 %v245, %v370
      %v374 = vmul.f32 %v245, %v372
      %v375 = vadd.f32 %v367, %v373
      %v376 = vadd.f32 %v368, %v374
      %377 = vrot.lane.b32.xlu0 %v348, 127
      %v378 = vpop.permute.xlu0 %377
      %379 = vrot.lane.b32.xlu0 %v349, 127
      %v380 = vpop.permute.xlu0 %379
      %v381 = vmul.f32 %v248, %v378
      %v382 = vmul.f32 %v248, %v380
      %v383 = vadd.f32 %v375, %v381
      %v384 = vadd.f32 %v376, %v382
      %v385 = vmul.f32 %v348, 4.0
      %v386 = vmul.f32 %v349, 4.0
      %v387 = vsub.f32 %v383, %v385
      %v388 = vsub.f32 %v384, %v386
      %v389 = vmul.f32 %v348, 2.0
      %v390 = vmul.f32 %v349, 2.0
      %v391 = vsub.f32 %v389, %v353
      %v392 = vsub.f32 %v390, %v354
      %v393 = vmul.f32 %v222, %v387
      %v394 = vmul.f32 %v223, %v388
      %v395 = vadd.f32 %v391, %v393
      %v396 = vadd.f32 %v392, %v394
      %397 = vst [vmem:[%s352] sm:$0xff] %v395
      %398 = vst [vmem:[%s352 + $0x8] sm:$0xff] %v396
      %v399 = vld [vmem:[%s205] sm:$0x1]
      %s400 = sadd.s32 %s250, %s351
      %s401 = scalar_lea.vmem [#allocation2], %s400
      %v402 = vld [vmem:[%s401] sm:$0x1]
      %404 = vset.pattern.permute.xlu0 1
      %405 = vperm.xlu0 %404, %v399
      %v406 = vpop.permute.xlu0 %405
      %v409 = vrot.slane %v224, 1
      %v411 = vmul.f32 %v406, %v409
      %v412 = vadd.f32 %v402, %v411
      %413 = vst [vmem:[%s401] sm:$0x1] %v412
      %s414 = sadd.s32 %s282, %s251
      %s415 = smul.u32 %s414, 16
      %s416 = sadd.s32 %s257, %s415
      %s417 = scalar_lea.vmem [#allocation2], %s416
      %v418 = vld [vmem:[%s417] sm:$0x1]
      %s419 = sadd.s32 %s282, %s252
      %s420 = smul.u32 %s419, 16
      %s421 = sadd.s32 %s258, %s420
      %s422 = scalar_lea.vmem [#allocation2], %s421
      %v423 = vld [vmem:[%s422] sm:$0x1]
      %s424 = sadd.s32 %s282, %s253
      %s425 = smul.u32 %s424, 16
      %s426 = sadd.s32 %s259, %s425
      %s427 = scalar_lea.vmem [#allocation2], %s426
      %v428 = vld [vmem:[%s427] sm:$0x1]
      %s429 = sadd.s32 %s282, %s254
      %s430 = smul.u32 %s429, 16
      %s431 = sadd.s32 %s260, %s430
      %s432 = scalar_lea.vmem [#allocation2], %s431
      %v433 = vld [vmem:[%s432] sm:$0x1]
      %s434 = sadd.s32 %s282, %s255
      %s435 = smul.u32 %s434, 16
      %s436 = sadd.s32 %s261, %s435
      %s437 = scalar_lea.vmem [#allocation2], %s436
      %v438 = vld [vmem:[%s437] sm:$0x1]
      %s439 = sadd.s32 %s282, %s256
      %s440 = smul.u32 %s439, 16
      %s441 = sadd.s32 %s262, %s440
      %s442 = scalar_lea.vmem [#allocation2], %s441
      %v443 = vld [vmem:[%s442] sm:$0x1]
      %v445 = vrot.slane %v423, 7
      %v448 = vrot.slane %v428, 6
      %v451 = vrot.slane %v433, 5
      %v454 = vrot.slane %v438, 4
      %v457 = vrot.slane %v443, 3
      %vm459 = vcmask 1040384
      %v460 = vsel %vm459, %v418, %v445
      %vm461 = vcmask 1041408
      %v462 = vsel %vm461, %v460, %v448
      %vm463 = vcmask 1042432
      %v464 = vsel %vm463, %v462, %v451
      %vm465 = vcmask 1043456
      %v466 = vsel %vm465, %v464, %v454
      %vm467 = vcmask 1044480
      %v468 = vsel %vm467, %v466, %v457
      %v469 = vmul.f32 %v468, %v225
      %vm470 = vcmask 1045504
      %v471 = vsel %vm470, %v469, 0.0
      %472 = vadd.xlane.f32.xlu0 %v471
      %v473 = vpop.xlane.xlu0 %472
      %v475 = vlaneseq
      %v476 = vshrl.u32 %v475, 7
      %v477 = vsub.s32 %v230, %v476
      %v478 = vrot.slane %v473, %v477
      %vm480 = vcmask 40960
      %481 = vst.msk [vmem:[%s209] sm:$0x1] %vm480, %v478
      %s482 = sadd.s32 %s263, 1
      %p483 = scmp.lt.s32.totalorder %s482, 0
      %s484 = ssub.s32 0, %s482
      %s485 = scalar_select %p483, %s484, %s482
      %s486 = sand.u32 %s485, 1
      %s487 = ssub.s32 0, %s486
      %s488 = scalar_select %p483, %s487, %s486
      %p489 = scmp.ne.s32.totalorder %s488, 0
      %p490 = scmp.lt.s32.totalorder %s488, 0
      %p491 = pnand %p490, %p489
      %p492 = pneg %p491
      %s493 = sadd.s32 %s488, 2
      %s494 = scalar_select %p492, %s493, %s488
      %s495 = ssub.s32 1, %s494
      %s496 = smul.u32 %s494, 2
      %s497 = smul.u32 %s496, 16
      %s498 = scalar_lea.vmem [#allocation2], %s497
      %v499 = vld [vmem:[%s498] sm:$0xff]
      %v500 = vld [vmem:[%s498 + $0x8] sm:$0xff]
      %s501 = smul.u32 %s495, 2
      %s502 = smul.u32 %s501, 16
      %s503 = scalar_lea.vmem [#allocation2], %s502
      %v504 = vld [vmem:[%s503] sm:$0xff]
      %v505 = vld [vmem:[%s503 + $0x8] sm:$0xff]
      %v506 = vrot.slane %v499, 7
      %v507 = vrot.slane %v500, 7
      %v508 = vsel %vm289, %v506, %v507
      %v509 = vsel %vm289, %v507, %v506
      %v510 = vmul.f32 %v235, %v509
      %v511 = vmul.f32 %v236, %v508
      %v512 = vrot.slane %v499, 1
      %v513 = vrot.slane %v500, 1
      %v514 = vsel %vm296, %v512, %v513
      %v515 = vsel %vm296, %v513, %v512
      %v516 = vmul.f32 %v241, %v514
      %v517 = vmul.f32 %v242, %v515
      %v518 = vadd.f32 %v510, %v516
      %v519 = vadd.f32 %v511, %v517
      %520 = vrot.lane.b32.xlu0 %v499, 1
      %v521 = vpop.permute.xlu0 %520
      %522 = vrot.lane.b32.xlu0 %v500, 1
      %v523 = vpop.permute.xlu0 %522
      %v524 = vmul.f32 %v245, %v521
      %v525 = vmul.f32 %v245, %v523
      %v526 = vadd.f32 %v518, %v524
      %v527 = vadd.f32 %v519, %v525
      %528 = vrot.lane.b32.xlu0 %v499, 127
      %v529 = vpop.permute.xlu0 %528
      %530 = vrot.lane.b32.xlu0 %v500, 127
      %v531 = vpop.permute.xlu0 %530
      %v532 = vmul.f32 %v248, %v529
      %v533 = vmul.f32 %v248, %v531
      %v534 = vadd.f32 %v526, %v532
      %v535 = vadd.f32 %v527, %v533
      %v536 = vmul.f32 %v499, 4.0
      %v537 = vmul.f32 %v500, 4.0
      %v538 = vsub.f32 %v534, %v536
      %v539 = vsub.f32 %v535, %v537
      %v540 = vmul.f32 %v499, 2.0
      %v541 = vmul.f32 %v500, 2.0
      %v542 = vsub.f32 %v540, %v504
      %v543 = vsub.f32 %v541, %v505
      %v544 = vmul.f32 %v222, %v538
      %v545 = vmul.f32 %v223, %v539
      %v546 = vadd.f32 %v542, %v544
      %v547 = vadd.f32 %v543, %v545
      %548 = vst [vmem:[%s503] sm:$0xff] %v546
      %549 = vst [vmem:[%s503 + $0x8] sm:$0xff] %v547
      %v550 = vld [vmem:[%s205 + $0x1] sm:$0x1]
      %s551 = sadd.s32 %s249, %s502
      %s552 = scalar_lea.vmem [#allocation2], %s551
      %v553 = vld [vmem:[%s552] sm:$0x1]
      %555 = vset.pattern.permute.xlu0 0
      %556 = vperm.xlu0 %555, %v550
      %v557 = vpop.permute.xlu0 %556
      %v559 = vmul.f32 %v557, %v224
      %v560 = vadd.f32 %v553, %v559
      %561 = vst [vmem:[%s552] sm:$0x1] %v560
      %s562 = sadd.s32 %s496, 1
      %s563 = smul.u32 %s562, 16
      %s564 = scalar_lea.vmem [#allocation2], %s563
      %v565 = vld [vmem:[%s564] sm:$0xff]
      %v566 = vld [vmem:[%s564 + $0x8] sm:$0xff]
      %s567 = sadd.s32 %s501, 1
      %s568 = smul.u32 %s567, 16
      %s569 = scalar_lea.vmem [#allocation2], %s568
      %v570 = vld [vmem:[%s569] sm:$0xff]
      %v571 = vld [vmem:[%s569 + $0x8] sm:$0xff]
      %v572 = vrot.slane %v565, 7
      %v573 = vrot.slane %v566, 7
      %v574 = vsel %vm289, %v572, %v573
      %v575 = vsel %vm289, %v573, %v572
      %v576 = vmul.f32 %v235, %v575
      %v577 = vmul.f32 %v236, %v574
      %v578 = vrot.slane %v565, 1
      %v579 = vrot.slane %v566, 1
      %v580 = vsel %vm296, %v578, %v579
      %v581 = vsel %vm296, %v579, %v578
      %v582 = vmul.f32 %v241, %v580
      %v583 = vmul.f32 %v242, %v581
      %v584 = vadd.f32 %v576, %v582
      %v585 = vadd.f32 %v577, %v583
      %586 = vrot.lane.b32.xlu0 %v565, 1
      %v587 = vpop.permute.xlu0 %586
      %588 = vrot.lane.b32.xlu0 %v566, 1
      %v589 = vpop.permute.xlu0 %588
      %v590 = vmul.f32 %v245, %v587
      %v591 = vmul.f32 %v245, %v589
      %v592 = vadd.f32 %v584, %v590
      %v593 = vadd.f32 %v585, %v591
      %594 = vrot.lane.b32.xlu0 %v565, 127
      %v595 = vpop.permute.xlu0 %594
      %596 = vrot.lane.b32.xlu0 %v566, 127
      %v597 = vpop.permute.xlu0 %596
      %v598 = vmul.f32 %v248, %v595
      %v599 = vmul.f32 %v248, %v597
      %v600 = vadd.f32 %v592, %v598
      %v601 = vadd.f32 %v593, %v599
      %v602 = vmul.f32 %v565, 4.0
      %v603 = vmul.f32 %v566, 4.0
      %v604 = vsub.f32 %v600, %v602
      %v605 = vsub.f32 %v601, %v603
      %v606 = vmul.f32 %v565, 2.0
      %v607 = vmul.f32 %v566, 2.0
      %v608 = vsub.f32 %v606, %v570
      %v609 = vsub.f32 %v607, %v571
      %v610 = vmul.f32 %v222, %v604
      %v611 = vmul.f32 %v223, %v605
      %v612 = vadd.f32 %v608, %v610
      %v613 = vadd.f32 %v609, %v611
      %614 = vst [vmem:[%s569] sm:$0xff] %v612
      %615 = vst [vmem:[%s569 + $0x8] sm:$0xff] %v613
      %v616 = vld [vmem:[%s205 + $0x1] sm:$0x1]
      %s617 = sadd.s32 %s250, %s568
      %s618 = scalar_lea.vmem [#allocation2], %s617
      %v619 = vld [vmem:[%s618] sm:$0x1]
      %621 = vset.pattern.permute.xlu0 1
      %622 = vperm.xlu0 %621, %v616
      %v623 = vpop.permute.xlu0 %622
      %v625 = vmul.f32 %v623, %v409
      %v626 = vadd.f32 %v619, %v625
      %627 = vst [vmem:[%s618] sm:$0x1] %v626
      %s628 = sadd.s32 %s501, %s251
      %s629 = smul.u32 %s628, 16
      %s630 = sadd.s32 %s257, %s629
      %s631 = scalar_lea.vmem [#allocation2], %s630
      %v632 = vld [vmem:[%s631] sm:$0x1]
      %s633 = sadd.s32 %s501, %s252
      %s634 = smul.u32 %s633, 16
      %s635 = sadd.s32 %s258, %s634
      %s636 = scalar_lea.vmem [#allocation2], %s635
      %v637 = vld [vmem:[%s636] sm:$0x1]
      %s638 = sadd.s32 %s501, %s253
      %s639 = smul.u32 %s638, 16
      %s640 = sadd.s32 %s259, %s639
      %s641 = scalar_lea.vmem [#allocation2], %s640
      %v642 = vld [vmem:[%s641] sm:$0x1]
      %s643 = sadd.s32 %s501, %s254
      %s644 = smul.u32 %s643, 16
      %s645 = sadd.s32 %s260, %s644
      %s646 = scalar_lea.vmem [#allocation2], %s645
      %v647 = vld [vmem:[%s646] sm:$0x1]
      %s648 = sadd.s32 %s501, %s255
      %s649 = smul.u32 %s648, 16
      %s650 = sadd.s32 %s261, %s649
      %s651 = scalar_lea.vmem [#allocation2], %s650
      %v652 = vld [vmem:[%s651] sm:$0x1]
      %s653 = sadd.s32 %s501, %s256
      %s654 = smul.u32 %s653, 16
      %s655 = sadd.s32 %s262, %s654
      %s656 = scalar_lea.vmem [#allocation2], %s655
      %v657 = vld [vmem:[%s656] sm:$0x1]
      %v659 = vrot.slane %v637, 7
      %v662 = vrot.slane %v642, 6
      %v665 = vrot.slane %v647, 5
      %v668 = vrot.slane %v652, 4
      %v671 = vrot.slane %v657, 3
      %v673 = vsel %vm459, %v632, %v659
      %v674 = vsel %vm461, %v673, %v662
      %v675 = vsel %vm463, %v674, %v665
      %v676 = vsel %vm465, %v675, %v668
      %v677 = vsel %vm467, %v676, %v671
      %v678 = vmul.f32 %v677, %v225
      %v679 = vsel %vm470, %v678, 0.0
      %680 = vadd.xlane.f32.xlu0 %v679
      %v681 = vpop.xlane.xlu0 %680
      %v683 = vlaneseq
      %v684 = vshrl.u32 %v683, 7
      %v685 = vsub.s32 %v230, %v684
      %v686 = vrot.slane %v681, %v685
      %688 = vst.msk [vmem:[%s209 + $0x1] sm:$0x1] %vm480, %v686
      %s689 = sadd.s32 %s263, 2
      %p690 = scmp.lt.s32.totalorder %s689, 0
      %s691 = ssub.s32 0, %s689
      %s692 = scalar_select %p690, %s691, %s689
      %s693 = sand.u32 %s692, 1
      %s694 = ssub.s32 0, %s693
      %s695 = scalar_select %p690, %s694, %s693
      %p696 = scmp.ne.s32.totalorder %s695, 0
      %p697 = scmp.lt.s32.totalorder %s695, 0
      %p698 = pnand %p697, %p696
      %p699 = pneg %p698
      %s700 = sadd.s32 %s695, 2
      %s701 = scalar_select %p699, %s700, %s695
      %s702 = ssub.s32 1, %s701
      %s703 = smul.u32 %s701, 2
      %s704 = smul.u32 %s703, 16
      %s705 = scalar_lea.vmem [#allocation2], %s704
      %v706 = vld [vmem:[%s705] sm:$0xff]
      %v707 = vld [vmem:[%s705 + $0x8] sm:$0xff]
      %s708 = smul.u32 %s702, 2
      %s709 = smul.u32 %s708, 16
      %s710 = scalar_lea.vmem [#allocation2], %s709
      %v711 = vld [vmem:[%s710] sm:$0xff]
      %v712 = vld [vmem:[%s710 + $0x8] sm:$0xff]
      %v713 = vrot.slane %v706, 7
      %v714 = vrot.slane %v707, 7
      %v715 = vsel %vm289, %v713, %v714
      %v716 = vsel %vm289, %v714, %v713
      %v717 = vmul.f32 %v235, %v716
      %v718 = vmul.f32 %v236, %v715
      %v719 = vrot.slane %v706, 1
      %v720 = vrot.slane %v707, 1
      %v721 = vsel %vm296, %v719, %v720
      %v722 = vsel %vm296, %v720, %v719
      %v723 = vmul.f32 %v241, %v721
      %v724 = vmul.f32 %v242, %v722
      %v725 = vadd.f32 %v717, %v723
      %v726 = vadd.f32 %v718, %v724
      %727 = vrot.lane.b32.xlu0 %v706, 1
      %v728 = vpop.permute.xlu0 %727
      %729 = vrot.lane.b32.xlu0 %v707, 1
      %v730 = vpop.permute.xlu0 %729
      %v731 = vmul.f32 %v245, %v728
      %v732 = vmul.f32 %v245, %v730
      %v733 = vadd.f32 %v725, %v731
      %v734 = vadd.f32 %v726, %v732
      %735 = vrot.lane.b32.xlu0 %v706, 127
      %v736 = vpop.permute.xlu0 %735
      %737 = vrot.lane.b32.xlu0 %v707, 127
      %v738 = vpop.permute.xlu0 %737
      %v739 = vmul.f32 %v248, %v736
      %v740 = vmul.f32 %v248, %v738
      %v741 = vadd.f32 %v733, %v739
      %v742 = vadd.f32 %v734, %v740
      %v743 = vmul.f32 %v706, 4.0
      %v744 = vmul.f32 %v707, 4.0
      %v745 = vsub.f32 %v741, %v743
      %v746 = vsub.f32 %v742, %v744
      %v747 = vmul.f32 %v706, 2.0
      %v748 = vmul.f32 %v707, 2.0
      %v749 = vsub.f32 %v747, %v711
      %v750 = vsub.f32 %v748, %v712
      %v751 = vmul.f32 %v222, %v745
      %v752 = vmul.f32 %v223, %v746
      %v753 = vadd.f32 %v749, %v751
      %v754 = vadd.f32 %v750, %v752
      %755 = vst [vmem:[%s710] sm:$0xff] %v753
      %756 = vst [vmem:[%s710 + $0x8] sm:$0xff] %v754
      %v757 = vld [vmem:[%s205 + $0x2] sm:$0x1]
      %s758 = sadd.s32 %s249, %s709
      %s759 = scalar_lea.vmem [#allocation2], %s758
      %v760 = vld [vmem:[%s759] sm:$0x1]
      %762 = vset.pattern.permute.xlu0 0
      %763 = vperm.xlu0 %762, %v757
      %v764 = vpop.permute.xlu0 %763
      %v766 = vmul.f32 %v764, %v224
      %v767 = vadd.f32 %v760, %v766
      %768 = vst [vmem:[%s759] sm:$0x1] %v767
      %s769 = sadd.s32 %s703, 1
      %s770 = smul.u32 %s769, 16
      %s771 = scalar_lea.vmem [#allocation2], %s770
      %v772 = vld [vmem:[%s771] sm:$0xff]
      %v773 = vld [vmem:[%s771 + $0x8] sm:$0xff]
      %s774 = sadd.s32 %s708, 1
      %s775 = smul.u32 %s774, 16
      %s776 = scalar_lea.vmem [#allocation2], %s775
      %v777 = vld [vmem:[%s776] sm:$0xff]
      %v778 = vld [vmem:[%s776 + $0x8] sm:$0xff]
      %v779 = vrot.slane %v772, 7
      %v780 = vrot.slane %v773, 7
      %v781 = vsel %vm289, %v779, %v780
      %v782 = vsel %vm289, %v780, %v779
      %v783 = vmul.f32 %v235, %v782
      %v784 = vmul.f32 %v236, %v781
      %v785 = vrot.slane %v772, 1
      %v786 = vrot.slane %v773, 1
      %v787 = vsel %vm296, %v785, %v786
      %v788 = vsel %vm296, %v786, %v785
      %v789 = vmul.f32 %v241, %v787
      %v790 = vmul.f32 %v242, %v788
      %v791 = vadd.f32 %v783, %v789
      %v792 = vadd.f32 %v784, %v790
      %793 = vrot.lane.b32.xlu0 %v772, 1
      %v794 = vpop.permute.xlu0 %793
      %795 = vrot.lane.b32.xlu0 %v773, 1
      %v796 = vpop.permute.xlu0 %795
      %v797 = vmul.f32 %v245, %v794
      %v798 = vmul.f32 %v245, %v796
      %v799 = vadd.f32 %v791, %v797
      %v800 = vadd.f32 %v792, %v798
      %801 = vrot.lane.b32.xlu0 %v772, 127
      %v802 = vpop.permute.xlu0 %801
      %803 = vrot.lane.b32.xlu0 %v773, 127
      %v804 = vpop.permute.xlu0 %803
      %v805 = vmul.f32 %v248, %v802
      %v806 = vmul.f32 %v248, %v804
      %v807 = vadd.f32 %v799, %v805
      %v808 = vadd.f32 %v800, %v806
      %v809 = vmul.f32 %v772, 4.0
      %v810 = vmul.f32 %v773, 4.0
      %v811 = vsub.f32 %v807, %v809
      %v812 = vsub.f32 %v808, %v810
      %v813 = vmul.f32 %v772, 2.0
      %v814 = vmul.f32 %v773, 2.0
      %v815 = vsub.f32 %v813, %v777
      %v816 = vsub.f32 %v814, %v778
      %v817 = vmul.f32 %v222, %v811
      %v818 = vmul.f32 %v223, %v812
      %v819 = vadd.f32 %v815, %v817
      %v820 = vadd.f32 %v816, %v818
      %821 = vst [vmem:[%s776] sm:$0xff] %v819
      %822 = vst [vmem:[%s776 + $0x8] sm:$0xff] %v820
      %v823 = vld [vmem:[%s205 + $0x2] sm:$0x1]
      %s824 = sadd.s32 %s250, %s775
      %s825 = scalar_lea.vmem [#allocation2], %s824
      %v826 = vld [vmem:[%s825] sm:$0x1]
      %828 = vset.pattern.permute.xlu0 1
      %829 = vperm.xlu0 %828, %v823
      %v830 = vpop.permute.xlu0 %829
      %v832 = vmul.f32 %v830, %v409
      %v833 = vadd.f32 %v826, %v832
      %834 = vst [vmem:[%s825] sm:$0x1] %v833
      %s835 = sadd.s32 %s708, %s251
      %s836 = smul.u32 %s835, 16
      %s837 = sadd.s32 %s257, %s836
      %s838 = scalar_lea.vmem [#allocation2], %s837
      %v839 = vld [vmem:[%s838] sm:$0x1]
      %s840 = sadd.s32 %s708, %s252
      %s841 = smul.u32 %s840, 16
      %s842 = sadd.s32 %s258, %s841
      %s843 = scalar_lea.vmem [#allocation2], %s842
      %v844 = vld [vmem:[%s843] sm:$0x1]
      %s845 = sadd.s32 %s708, %s253
      %s846 = smul.u32 %s845, 16
      %s847 = sadd.s32 %s259, %s846
      %s848 = scalar_lea.vmem [#allocation2], %s847
      %v849 = vld [vmem:[%s848] sm:$0x1]
      %s850 = sadd.s32 %s708, %s254
      %s851 = smul.u32 %s850, 16
      %s852 = sadd.s32 %s260, %s851
      %s853 = scalar_lea.vmem [#allocation2], %s852
      %v854 = vld [vmem:[%s853] sm:$0x1]
      %s855 = sadd.s32 %s708, %s255
      %s856 = smul.u32 %s855, 16
      %s857 = sadd.s32 %s261, %s856
      %s858 = scalar_lea.vmem [#allocation2], %s857
      %v859 = vld [vmem:[%s858] sm:$0x1]
      %s860 = sadd.s32 %s708, %s256
      %s861 = smul.u32 %s860, 16
      %s862 = sadd.s32 %s262, %s861
      %s863 = scalar_lea.vmem [#allocation2], %s862
      %v864 = vld [vmem:[%s863] sm:$0x1]
      %v866 = vrot.slane %v844, 7
      %v869 = vrot.slane %v849, 6
      %v872 = vrot.slane %v854, 5
      %v875 = vrot.slane %v859, 4
      %v878 = vrot.slane %v864, 3
      %v880 = vsel %vm459, %v839, %v866
      %v881 = vsel %vm461, %v880, %v869
      %v882 = vsel %vm463, %v881, %v872
      %v883 = vsel %vm465, %v882, %v875
      %v884 = vsel %vm467, %v883, %v878
      %v885 = vmul.f32 %v884, %v225
      %v886 = vsel %vm470, %v885, 0.0
      %887 = vadd.xlane.f32.xlu0 %v886
      %v888 = vpop.xlane.xlu0 %887
      %v890 = vlaneseq
      %v891 = vshrl.u32 %v890, 7
      %v892 = vsub.s32 %v230, %v891
      %v893 = vrot.slane %v888, %v892
      %895 = vst.msk [vmem:[%s209 + $0x2] sm:$0x1] %vm480, %v893
      %s896 = sadd.s32 %s263, 3
      %p897 = scmp.lt.s32.totalorder %s896, 0
      %s898 = ssub.s32 0, %s896
      %s899 = scalar_select %p897, %s898, %s896
      %s900 = sand.u32 %s899, 1
      %s901 = ssub.s32 0, %s900
      %s902 = scalar_select %p897, %s901, %s900
      %p903 = scmp.ne.s32.totalorder %s902, 0
      %p904 = scmp.lt.s32.totalorder %s902, 0
      %p905 = pnand %p904, %p903
      %p906 = pneg %p905
      %s907 = sadd.s32 %s902, 2
      %s908 = scalar_select %p906, %s907, %s902
      %s909 = ssub.s32 1, %s908
      %s910 = smul.u32 %s908, 2
      %s911 = smul.u32 %s910, 16
      %s912 = scalar_lea.vmem [#allocation2], %s911
      %v913 = vld [vmem:[%s912] sm:$0xff]
      %v914 = vld [vmem:[%s912 + $0x8] sm:$0xff]
      %s915 = smul.u32 %s909, 2
      %s916 = smul.u32 %s915, 16
      %s917 = scalar_lea.vmem [#allocation2], %s916
      %v918 = vld [vmem:[%s917] sm:$0xff]
      %v919 = vld [vmem:[%s917 + $0x8] sm:$0xff]
      %v920 = vrot.slane %v913, 7
      %v921 = vrot.slane %v914, 7
      %v922 = vsel %vm289, %v920, %v921
      %v923 = vsel %vm289, %v921, %v920
      %v924 = vmul.f32 %v235, %v923
      %v925 = vmul.f32 %v236, %v922
      %v926 = vrot.slane %v913, 1
      %v927 = vrot.slane %v914, 1
      %v928 = vsel %vm296, %v926, %v927
      %v929 = vsel %vm296, %v927, %v926
      %v930 = vmul.f32 %v241, %v928
      %v931 = vmul.f32 %v242, %v929
      %v932 = vadd.f32 %v924, %v930
      %v933 = vadd.f32 %v925, %v931
      %934 = vrot.lane.b32.xlu0 %v913, 1
      %v935 = vpop.permute.xlu0 %934
      %936 = vrot.lane.b32.xlu0 %v914, 1
      %v937 = vpop.permute.xlu0 %936
      %v938 = vmul.f32 %v245, %v935
      %v939 = vmul.f32 %v245, %v937
      %v940 = vadd.f32 %v932, %v938
      %v941 = vadd.f32 %v933, %v939
      %942 = vrot.lane.b32.xlu0 %v913, 127
      %v943 = vpop.permute.xlu0 %942
      %944 = vrot.lane.b32.xlu0 %v914, 127
      %v945 = vpop.permute.xlu0 %944
      %v946 = vmul.f32 %v248, %v943
      %v947 = vmul.f32 %v248, %v945
      %v948 = vadd.f32 %v940, %v946
      %v949 = vadd.f32 %v941, %v947
      %v950 = vmul.f32 %v913, 4.0
      %v951 = vmul.f32 %v914, 4.0
      %v952 = vsub.f32 %v948, %v950
      %v953 = vsub.f32 %v949, %v951
      %v954 = vmul.f32 %v913, 2.0
      %v955 = vmul.f32 %v914, 2.0
      %v956 = vsub.f32 %v954, %v918
      %v957 = vsub.f32 %v955, %v919
      %v958 = vmul.f32 %v222, %v952
      %v959 = vmul.f32 %v223, %v953
      %v960 = vadd.f32 %v956, %v958
      %v961 = vadd.f32 %v957, %v959
      %962 = vst [vmem:[%s917] sm:$0xff] %v960
      %963 = vst [vmem:[%s917 + $0x8] sm:$0xff] %v961
      %v964 = vld [vmem:[%s205 + $0x3] sm:$0x1]
      %s965 = sadd.s32 %s249, %s916
      %s966 = scalar_lea.vmem [#allocation2], %s965
      %v967 = vld [vmem:[%s966] sm:$0x1]
      %969 = vset.pattern.permute.xlu0 0
      %970 = vperm.xlu0 %969, %v964
      %v971 = vpop.permute.xlu0 %970
      %v973 = vmul.f32 %v971, %v224
      %v974 = vadd.f32 %v967, %v973
      %975 = vst [vmem:[%s966] sm:$0x1] %v974
      %s976 = sadd.s32 %s910, 1
      %s977 = smul.u32 %s976, 16
      %s978 = scalar_lea.vmem [#allocation2], %s977
      %v979 = vld [vmem:[%s978] sm:$0xff]
      %v980 = vld [vmem:[%s978 + $0x8] sm:$0xff]
      %s981 = sadd.s32 %s915, 1
      %s982 = smul.u32 %s981, 16
      %s983 = scalar_lea.vmem [#allocation2], %s982
      %v984 = vld [vmem:[%s983] sm:$0xff]
      %v985 = vld [vmem:[%s983 + $0x8] sm:$0xff]
      %v986 = vrot.slane %v979, 7
      %v987 = vrot.slane %v980, 7
      %v988 = vsel %vm289, %v986, %v987
      %v989 = vsel %vm289, %v987, %v986
      %v990 = vmul.f32 %v235, %v989
      %v991 = vmul.f32 %v236, %v988
      %v992 = vrot.slane %v979, 1
      %v993 = vrot.slane %v980, 1
      %v994 = vsel %vm296, %v992, %v993
      %v995 = vsel %vm296, %v993, %v992
      %v996 = vmul.f32 %v241, %v994
      %v997 = vmul.f32 %v242, %v995
      %v998 = vadd.f32 %v990, %v996
      %v999 = vadd.f32 %v991, %v997
      %1000 = vrot.lane.b32.xlu0 %v979, 1
      %v1001 = vpop.permute.xlu0 %1000
      %1002 = vrot.lane.b32.xlu0 %v980, 1
      %v1003 = vpop.permute.xlu0 %1002
      %v1004 = vmul.f32 %v245, %v1001
      %v1005 = vmul.f32 %v245, %v1003
      %v1006 = vadd.f32 %v998, %v1004
      %v1007 = vadd.f32 %v999, %v1005
      %1008 = vrot.lane.b32.xlu0 %v979, 127
      %v1009 = vpop.permute.xlu0 %1008
      %1010 = vrot.lane.b32.xlu0 %v980, 127
      %v1011 = vpop.permute.xlu0 %1010
      %v1012 = vmul.f32 %v248, %v1009
      %v1013 = vmul.f32 %v248, %v1011
      %v1014 = vadd.f32 %v1006, %v1012
      %v1015 = vadd.f32 %v1007, %v1013
      %v1016 = vmul.f32 %v979, 4.0
      %v1017 = vmul.f32 %v980, 4.0
      %v1018 = vsub.f32 %v1014, %v1016
      %v1019 = vsub.f32 %v1015, %v1017
      %v1020 = vmul.f32 %v979, 2.0
      %v1021 = vmul.f32 %v980, 2.0
      %v1022 = vsub.f32 %v1020, %v984
      %v1023 = vsub.f32 %v1021, %v985
      %v1024 = vmul.f32 %v222, %v1018
      %v1025 = vmul.f32 %v223, %v1019
      %v1026 = vadd.f32 %v1022, %v1024
      %v1027 = vadd.f32 %v1023, %v1025
      %1028 = vst [vmem:[%s983] sm:$0xff] %v1026
      %1029 = vst [vmem:[%s983 + $0x8] sm:$0xff] %v1027
      %v1030 = vld [vmem:[%s205 + $0x3] sm:$0x1]
      %s1031 = sadd.s32 %s250, %s982
      %s1032 = scalar_lea.vmem [#allocation2], %s1031
      %v1033 = vld [vmem:[%s1032] sm:$0x1]
      %1035 = vset.pattern.permute.xlu0 1
      %1036 = vperm.xlu0 %1035, %v1030
      %v1037 = vpop.permute.xlu0 %1036
      %v1039 = vmul.f32 %v1037, %v409
      %v1040 = vadd.f32 %v1033, %v1039
      %1041 = vst [vmem:[%s1032] sm:$0x1] %v1040
      %s1042 = sadd.s32 %s915, %s251
      %s1043 = smul.u32 %s1042, 16
      %s1044 = sadd.s32 %s257, %s1043
      %s1045 = scalar_lea.vmem [#allocation2], %s1044
      %v1046 = vld [vmem:[%s1045] sm:$0x1]
      %s1047 = sadd.s32 %s915, %s252
      %s1048 = smul.u32 %s1047, 16
      %s1049 = sadd.s32 %s258, %s1048
      %s1050 = scalar_lea.vmem [#allocation2], %s1049
      %v1051 = vld [vmem:[%s1050] sm:$0x1]
      %s1052 = sadd.s32 %s915, %s253
      %s1053 = smul.u32 %s1052, 16
      %s1054 = sadd.s32 %s259, %s1053
      %s1055 = scalar_lea.vmem [#allocation2], %s1054
      %v1056 = vld [vmem:[%s1055] sm:$0x1]
      %s1057 = sadd.s32 %s915, %s254
      %s1058 = smul.u32 %s1057, 16
      %s1059 = sadd.s32 %s260, %s1058
      %s1060 = scalar_lea.vmem [#allocation2], %s1059
      %v1061 = vld [vmem:[%s1060] sm:$0x1]
      %s1062 = sadd.s32 %s915, %s255
      %s1063 = smul.u32 %s1062, 16
      %s1064 = sadd.s32 %s261, %s1063
      %s1065 = scalar_lea.vmem [#allocation2], %s1064
      %v1066 = vld [vmem:[%s1065] sm:$0x1]
      %s1067 = sadd.s32 %s915, %s256
      %s1068 = smul.u32 %s1067, 16
      %s1069 = sadd.s32 %s262, %s1068
      %s1070 = scalar_lea.vmem [#allocation2], %s1069
      %v1071 = vld [vmem:[%s1070] sm:$0x1]
      %v1073 = vrot.slane %v1051, 7
      %v1076 = vrot.slane %v1056, 6
      %v1079 = vrot.slane %v1061, 5
      %v1082 = vrot.slane %v1066, 4
      %v1085 = vrot.slane %v1071, 3
      %v1087 = vsel %vm459, %v1046, %v1073
      %v1088 = vsel %vm461, %v1087, %v1076
      %v1089 = vsel %vm463, %v1088, %v1079
      %v1090 = vsel %vm465, %v1089, %v1082
      %v1091 = vsel %vm467, %v1090, %v1085
      %v1092 = vmul.f32 %v1091, %v225
      %v1093 = vsel %vm470, %v1092, 0.0
      %1094 = vadd.xlane.f32.xlu0 %v1093
      %v1095 = vpop.xlane.xlu0 %1094
      %v1097 = vlaneseq
      %v1098 = vshrl.u32 %v1097, 7
      %v1099 = vsub.s32 %v230, %v1098
      %v1100 = vrot.slane %v1095, %v1099
      %1102 = vst.msk [vmem:[%s209 + $0x3] sm:$0x1] %vm480, %v1100
      %s1103 = sadd.s32 %s263, 4
      %p1104 = scmp.lt.s32.totalorder %s1103, 0
      %s1105 = ssub.s32 0, %s1103
      %s1106 = scalar_select %p1104, %s1105, %s1103
      %s1107 = sand.u32 %s1106, 1
      %s1108 = ssub.s32 0, %s1107
      %s1109 = scalar_select %p1104, %s1108, %s1107
      %p1110 = scmp.ne.s32.totalorder %s1109, 0
      %p1111 = scmp.lt.s32.totalorder %s1109, 0
      %p1112 = pnand %p1111, %p1110
      %p1113 = pneg %p1112
      %s1114 = sadd.s32 %s1109, 2
      %s1115 = scalar_select %p1113, %s1114, %s1109
      %s1116 = ssub.s32 1, %s1115
      %s1117 = smul.u32 %s1115, 2
      %s1118 = smul.u32 %s1117, 16
      %s1119 = scalar_lea.vmem [#allocation2], %s1118
      %v1120 = vld [vmem:[%s1119] sm:$0xff]
      %v1121 = vld [vmem:[%s1119 + $0x8] sm:$0xff]
      %s1122 = smul.u32 %s1116, 2
      %s1123 = smul.u32 %s1122, 16
      %s1124 = scalar_lea.vmem [#allocation2], %s1123
      %v1125 = vld [vmem:[%s1124] sm:$0xff]
      %v1126 = vld [vmem:[%s1124 + $0x8] sm:$0xff]
      %v1127 = vrot.slane %v1120, 7
      %v1128 = vrot.slane %v1121, 7
      %v1129 = vsel %vm289, %v1127, %v1128
      %v1130 = vsel %vm289, %v1128, %v1127
      %v1131 = vmul.f32 %v235, %v1130
      %v1132 = vmul.f32 %v236, %v1129
      %v1133 = vrot.slane %v1120, 1
      %v1134 = vrot.slane %v1121, 1
      %v1135 = vsel %vm296, %v1133, %v1134
      %v1136 = vsel %vm296, %v1134, %v1133
      %v1137 = vmul.f32 %v241, %v1135
      %v1138 = vmul.f32 %v242, %v1136
      %v1139 = vadd.f32 %v1131, %v1137
      %v1140 = vadd.f32 %v1132, %v1138
      %1141 = vrot.lane.b32.xlu0 %v1120, 1
      %v1142 = vpop.permute.xlu0 %1141
      %1143 = vrot.lane.b32.xlu0 %v1121, 1
      %v1144 = vpop.permute.xlu0 %1143
      %v1145 = vmul.f32 %v245, %v1142
      %v1146 = vmul.f32 %v245, %v1144
      %v1147 = vadd.f32 %v1139, %v1145
      %v1148 = vadd.f32 %v1140, %v1146
      %1149 = vrot.lane.b32.xlu0 %v1120, 127
      %v1150 = vpop.permute.xlu0 %1149
      %1151 = vrot.lane.b32.xlu0 %v1121, 127
      %v1152 = vpop.permute.xlu0 %1151
      %v1153 = vmul.f32 %v248, %v1150
      %v1154 = vmul.f32 %v248, %v1152
      %v1155 = vadd.f32 %v1147, %v1153
      %v1156 = vadd.f32 %v1148, %v1154
      %v1157 = vmul.f32 %v1120, 4.0
      %v1158 = vmul.f32 %v1121, 4.0
      %v1159 = vsub.f32 %v1155, %v1157
      %v1160 = vsub.f32 %v1156, %v1158
      %v1161 = vmul.f32 %v1120, 2.0
      %v1162 = vmul.f32 %v1121, 2.0
      %v1163 = vsub.f32 %v1161, %v1125
      %v1164 = vsub.f32 %v1162, %v1126
      %v1165 = vmul.f32 %v222, %v1159
      %v1166 = vmul.f32 %v223, %v1160
      %v1167 = vadd.f32 %v1163, %v1165
      %v1168 = vadd.f32 %v1164, %v1166
      %1169 = vst [vmem:[%s1124] sm:$0xff] %v1167
      %1170 = vst [vmem:[%s1124 + $0x8] sm:$0xff] %v1168
      %v1171 = vld [vmem:[%s205 + $0x4] sm:$0x1]
      %s1172 = sadd.s32 %s249, %s1123
      %s1173 = scalar_lea.vmem [#allocation2], %s1172
      %v1174 = vld [vmem:[%s1173] sm:$0x1]
      %1176 = vset.pattern.permute.xlu0 0
      %1177 = vperm.xlu0 %1176, %v1171
      %v1178 = vpop.permute.xlu0 %1177
      %v1180 = vmul.f32 %v1178, %v224
      %v1181 = vadd.f32 %v1174, %v1180
      %1182 = vst [vmem:[%s1173] sm:$0x1] %v1181
      %s1183 = sadd.s32 %s1117, 1
      %s1184 = smul.u32 %s1183, 16
      %s1185 = scalar_lea.vmem [#allocation2], %s1184
      %v1186 = vld [vmem:[%s1185] sm:$0xff]
      %v1187 = vld [vmem:[%s1185 + $0x8] sm:$0xff]
      %s1188 = sadd.s32 %s1122, 1
      %s1189 = smul.u32 %s1188, 16
      %s1190 = scalar_lea.vmem [#allocation2], %s1189
      %v1191 = vld [vmem:[%s1190] sm:$0xff]
      %v1192 = vld [vmem:[%s1190 + $0x8] sm:$0xff]
      %v1193 = vrot.slane %v1186, 7
      %v1194 = vrot.slane %v1187, 7
      %v1195 = vsel %vm289, %v1193, %v1194
      %v1196 = vsel %vm289, %v1194, %v1193
      %v1197 = vmul.f32 %v235, %v1196
      %v1198 = vmul.f32 %v236, %v1195
      %v1199 = vrot.slane %v1186, 1
      %v1200 = vrot.slane %v1187, 1
      %v1201 = vsel %vm296, %v1199, %v1200
      %v1202 = vsel %vm296, %v1200, %v1199
      %v1203 = vmul.f32 %v241, %v1201
      %v1204 = vmul.f32 %v242, %v1202
      %v1205 = vadd.f32 %v1197, %v1203
      %v1206 = vadd.f32 %v1198, %v1204
      %1207 = vrot.lane.b32.xlu0 %v1186, 1
      %v1208 = vpop.permute.xlu0 %1207
      %1209 = vrot.lane.b32.xlu0 %v1187, 1
      %v1210 = vpop.permute.xlu0 %1209
      %v1211 = vmul.f32 %v245, %v1208
      %v1212 = vmul.f32 %v245, %v1210
      %v1213 = vadd.f32 %v1205, %v1211
      %v1214 = vadd.f32 %v1206, %v1212
      %1215 = vrot.lane.b32.xlu0 %v1186, 127
      %v1216 = vpop.permute.xlu0 %1215
      %1217 = vrot.lane.b32.xlu0 %v1187, 127
      %v1218 = vpop.permute.xlu0 %1217
      %v1219 = vmul.f32 %v248, %v1216
      %v1220 = vmul.f32 %v248, %v1218
      %v1221 = vadd.f32 %v1213, %v1219
      %v1222 = vadd.f32 %v1214, %v1220
      %v1223 = vmul.f32 %v1186, 4.0
      %v1224 = vmul.f32 %v1187, 4.0
      %v1225 = vsub.f32 %v1221, %v1223
      %v1226 = vsub.f32 %v1222, %v1224
      %v1227 = vmul.f32 %v1186, 2.0
      %v1228 = vmul.f32 %v1187, 2.0
      %v1229 = vsub.f32 %v1227, %v1191
      %v1230 = vsub.f32 %v1228, %v1192
      %v1231 = vmul.f32 %v222, %v1225
      %v1232 = vmul.f32 %v223, %v1226
      %v1233 = vadd.f32 %v1229, %v1231
      %v1234 = vadd.f32 %v1230, %v1232
      %1235 = vst [vmem:[%s1190] sm:$0xff] %v1233
      %1236 = vst [vmem:[%s1190 + $0x8] sm:$0xff] %v1234
      %v1237 = vld [vmem:[%s205 + $0x4] sm:$0x1]
      %s1238 = sadd.s32 %s250, %s1189
      %s1239 = scalar_lea.vmem [#allocation2], %s1238
      %v1240 = vld [vmem:[%s1239] sm:$0x1]
      %1242 = vset.pattern.permute.xlu0 1
      %1243 = vperm.xlu0 %1242, %v1237
      %v1244 = vpop.permute.xlu0 %1243
      %v1246 = vmul.f32 %v1244, %v409
      %v1247 = vadd.f32 %v1240, %v1246
      %1248 = vst [vmem:[%s1239] sm:$0x1] %v1247
      %s1249 = sadd.s32 %s1122, %s251
      %s1250 = smul.u32 %s1249, 16
      %s1251 = sadd.s32 %s257, %s1250
      %s1252 = scalar_lea.vmem [#allocation2], %s1251
      %v1253 = vld [vmem:[%s1252] sm:$0x1]
      %s1254 = sadd.s32 %s1122, %s252
      %s1255 = smul.u32 %s1254, 16
      %s1256 = sadd.s32 %s258, %s1255
      %s1257 = scalar_lea.vmem [#allocation2], %s1256
      %v1258 = vld [vmem:[%s1257] sm:$0x1]
      %s1259 = sadd.s32 %s1122, %s253
      %s1260 = smul.u32 %s1259, 16
      %s1261 = sadd.s32 %s259, %s1260
      %s1262 = scalar_lea.vmem [#allocation2], %s1261
      %v1263 = vld [vmem:[%s1262] sm:$0x1]
      %s1264 = sadd.s32 %s1122, %s254
      %s1265 = smul.u32 %s1264, 16
      %s1266 = sadd.s32 %s260, %s1265
      %s1267 = scalar_lea.vmem [#allocation2], %s1266
      %v1268 = vld [vmem:[%s1267] sm:$0x1]
      %s1269 = sadd.s32 %s1122, %s255
      %s1270 = smul.u32 %s1269, 16
      %s1271 = sadd.s32 %s261, %s1270
      %s1272 = scalar_lea.vmem [#allocation2], %s1271
      %v1273 = vld [vmem:[%s1272] sm:$0x1]
      %s1274 = sadd.s32 %s1122, %s256
      %s1275 = smul.u32 %s1274, 16
      %s1276 = sadd.s32 %s262, %s1275
      %s1277 = scalar_lea.vmem [#allocation2], %s1276
      %v1278 = vld [vmem:[%s1277] sm:$0x1]
      %v1280 = vrot.slane %v1258, 7
      %v1283 = vrot.slane %v1263, 6
      %v1286 = vrot.slane %v1268, 5
      %v1289 = vrot.slane %v1273, 4
      %v1292 = vrot.slane %v1278, 3
      %v1294 = vsel %vm459, %v1253, %v1280
      %v1295 = vsel %vm461, %v1294, %v1283
      %v1296 = vsel %vm463, %v1295, %v1286
      %v1297 = vsel %vm465, %v1296, %v1289
      %v1298 = vsel %vm467, %v1297, %v1292
      %v1299 = vmul.f32 %v1298, %v225
      %v1300 = vsel %vm470, %v1299, 0.0
      %1301 = vadd.xlane.f32.xlu0 %v1300
      %v1302 = vpop.xlane.xlu0 %1301
      %v1304 = vlaneseq
      %v1305 = vshrl.u32 %v1304, 7
      %v1306 = vsub.s32 %v230, %v1305
      %v1307 = vrot.slane %v1302, %v1306
      %1309 = vst.msk [vmem:[%s209 + $0x4] sm:$0x1] %vm480, %v1307
      %s1310 = sadd.s32 %s263, 5
      %p1311 = scmp.lt.s32.totalorder %s1310, 0
      %s1312 = ssub.s32 0, %s1310
      %s1313 = scalar_select %p1311, %s1312, %s1310
      %s1314 = sand.u32 %s1313, 1
      %s1315 = ssub.s32 0, %s1314
      %s1316 = scalar_select %p1311, %s1315, %s1314
      %p1317 = scmp.ne.s32.totalorder %s1316, 0
      %p1318 = scmp.lt.s32.totalorder %s1316, 0
      %p1319 = pnand %p1318, %p1317
      %p1320 = pneg %p1319
      %s1321 = sadd.s32 %s1316, 2
      %s1322 = scalar_select %p1320, %s1321, %s1316
      %s1323 = ssub.s32 1, %s1322
      %s1324 = smul.u32 %s1322, 2
      %s1325 = smul.u32 %s1324, 16
      %s1326 = scalar_lea.vmem [#allocation2], %s1325
      %v1327 = vld [vmem:[%s1326] sm:$0xff]
      %v1328 = vld [vmem:[%s1326 + $0x8] sm:$0xff]
      %s1329 = smul.u32 %s1323, 2
      %s1330 = smul.u32 %s1329, 16
      %s1331 = scalar_lea.vmem [#allocation2], %s1330
      %v1332 = vld [vmem:[%s1331] sm:$0xff]
      %v1333 = vld [vmem:[%s1331 + $0x8] sm:$0xff]
      %v1334 = vrot.slane %v1327, 7
      %v1335 = vrot.slane %v1328, 7
      %v1336 = vsel %vm289, %v1334, %v1335
      %v1337 = vsel %vm289, %v1335, %v1334
      %v1338 = vmul.f32 %v235, %v1337
      %v1339 = vmul.f32 %v236, %v1336
      %v1340 = vrot.slane %v1327, 1
      %v1341 = vrot.slane %v1328, 1
      %v1342 = vsel %vm296, %v1340, %v1341
      %v1343 = vsel %vm296, %v1341, %v1340
      %v1344 = vmul.f32 %v241, %v1342
      %v1345 = vmul.f32 %v242, %v1343
      %v1346 = vadd.f32 %v1338, %v1344
      %v1347 = vadd.f32 %v1339, %v1345
      %1348 = vrot.lane.b32.xlu0 %v1327, 1
      %v1349 = vpop.permute.xlu0 %1348
      %1350 = vrot.lane.b32.xlu0 %v1328, 1
      %v1351 = vpop.permute.xlu0 %1350
      %v1352 = vmul.f32 %v245, %v1349
      %v1353 = vmul.f32 %v245, %v1351
      %v1354 = vadd.f32 %v1346, %v1352
      %v1355 = vadd.f32 %v1347, %v1353
      %1356 = vrot.lane.b32.xlu0 %v1327, 127
      %v1357 = vpop.permute.xlu0 %1356
      %1358 = vrot.lane.b32.xlu0 %v1328, 127
      %v1359 = vpop.permute.xlu0 %1358
      %v1360 = vmul.f32 %v248, %v1357
      %v1361 = vmul.f32 %v248, %v1359
      %v1362 = vadd.f32 %v1354, %v1360
      %v1363 = vadd.f32 %v1355, %v1361
      %v1364 = vmul.f32 %v1327, 4.0
      %v1365 = vmul.f32 %v1328, 4.0
      %v1366 = vsub.f32 %v1362, %v1364
      %v1367 = vsub.f32 %v1363, %v1365
      %v1368 = vmul.f32 %v1327, 2.0
      %v1369 = vmul.f32 %v1328, 2.0
      %v1370 = vsub.f32 %v1368, %v1332
      %v1371 = vsub.f32 %v1369, %v1333
      %v1372 = vmul.f32 %v222, %v1366
      %v1373 = vmul.f32 %v223, %v1367
      %v1374 = vadd.f32 %v1370, %v1372
      %v1375 = vadd.f32 %v1371, %v1373
      %1376 = vst [vmem:[%s1331] sm:$0xff] %v1374
      %1377 = vst [vmem:[%s1331 + $0x8] sm:$0xff] %v1375
      %v1378 = vld [vmem:[%s205 + $0x5] sm:$0x1]
      %s1379 = sadd.s32 %s249, %s1330
      %s1380 = scalar_lea.vmem [#allocation2], %s1379
      %v1381 = vld [vmem:[%s1380] sm:$0x1]
      %1383 = vset.pattern.permute.xlu0 0
      %1384 = vperm.xlu0 %1383, %v1378
      %v1385 = vpop.permute.xlu0 %1384
      %v1387 = vmul.f32 %v1385, %v224
      %v1388 = vadd.f32 %v1381, %v1387
      %1389 = vst [vmem:[%s1380] sm:$0x1] %v1388
      %s1390 = sadd.s32 %s1324, 1
      %s1391 = smul.u32 %s1390, 16
      %s1392 = scalar_lea.vmem [#allocation2], %s1391
      %v1393 = vld [vmem:[%s1392] sm:$0xff]
      %v1394 = vld [vmem:[%s1392 + $0x8] sm:$0xff]
      %s1395 = sadd.s32 %s1329, 1
      %s1396 = smul.u32 %s1395, 16
      %s1397 = scalar_lea.vmem [#allocation2], %s1396
      %v1398 = vld [vmem:[%s1397] sm:$0xff]
      %v1399 = vld [vmem:[%s1397 + $0x8] sm:$0xff]
      %v1400 = vrot.slane %v1393, 7
      %v1401 = vrot.slane %v1394, 7
      %v1402 = vsel %vm289, %v1400, %v1401
      %v1403 = vsel %vm289, %v1401, %v1400
      %v1404 = vmul.f32 %v235, %v1403
      %v1405 = vmul.f32 %v236, %v1402
      %v1406 = vrot.slane %v1393, 1
      %v1407 = vrot.slane %v1394, 1
      %v1408 = vsel %vm296, %v1406, %v1407
      %v1409 = vsel %vm296, %v1407, %v1406
      %v1410 = vmul.f32 %v241, %v1408
      %v1411 = vmul.f32 %v242, %v1409
      %v1412 = vadd.f32 %v1404, %v1410
      %v1413 = vadd.f32 %v1405, %v1411
      %1414 = vrot.lane.b32.xlu0 %v1393, 1
      %v1415 = vpop.permute.xlu0 %1414
      %1416 = vrot.lane.b32.xlu0 %v1394, 1
      %v1417 = vpop.permute.xlu0 %1416
      %v1418 = vmul.f32 %v245, %v1415
      %v1419 = vmul.f32 %v245, %v1417
      %v1420 = vadd.f32 %v1412, %v1418
      %v1421 = vadd.f32 %v1413, %v1419
      %1422 = vrot.lane.b32.xlu0 %v1393, 127
      %v1423 = vpop.permute.xlu0 %1422
      %1424 = vrot.lane.b32.xlu0 %v1394, 127
      %v1425 = vpop.permute.xlu0 %1424
      %v1426 = vmul.f32 %v248, %v1423
      %v1427 = vmul.f32 %v248, %v1425
      %v1428 = vadd.f32 %v1420, %v1426
      %v1429 = vadd.f32 %v1421, %v1427
      %v1430 = vmul.f32 %v1393, 4.0
      %v1431 = vmul.f32 %v1394, 4.0
      %v1432 = vsub.f32 %v1428, %v1430
      %v1433 = vsub.f32 %v1429, %v1431
      %v1434 = vmul.f32 %v1393, 2.0
      %v1435 = vmul.f32 %v1394, 2.0
      %v1436 = vsub.f32 %v1434, %v1398
      %v1437 = vsub.f32 %v1435, %v1399
      %v1438 = vmul.f32 %v222, %v1432
      %v1439 = vmul.f32 %v223, %v1433
      %v1440 = vadd.f32 %v1436, %v1438
      %v1441 = vadd.f32 %v1437, %v1439
      %1442 = vst [vmem:[%s1397] sm:$0xff] %v1440
      %1443 = vst [vmem:[%s1397 + $0x8] sm:$0xff] %v1441
      %v1444 = vld [vmem:[%s205 + $0x5] sm:$0x1]
      %s1445 = sadd.s32 %s250, %s1396
      %s1446 = scalar_lea.vmem [#allocation2], %s1445
      %v1447 = vld [vmem:[%s1446] sm:$0x1]
      %1449 = vset.pattern.permute.xlu0 1
      %1450 = vperm.xlu0 %1449, %v1444
      %v1451 = vpop.permute.xlu0 %1450
      %v1453 = vmul.f32 %v1451, %v409
      %v1454 = vadd.f32 %v1447, %v1453
      %1455 = vst [vmem:[%s1446] sm:$0x1] %v1454
      %s1456 = sadd.s32 %s1329, %s251
      %s1457 = smul.u32 %s1456, 16
      %s1458 = sadd.s32 %s257, %s1457
      %s1459 = scalar_lea.vmem [#allocation2], %s1458
      %v1460 = vld [vmem:[%s1459] sm:$0x1]
      %s1461 = sadd.s32 %s1329, %s252
      %s1462 = smul.u32 %s1461, 16
      %s1463 = sadd.s32 %s258, %s1462
      %s1464 = scalar_lea.vmem [#allocation2], %s1463
      %v1465 = vld [vmem:[%s1464] sm:$0x1]
      %s1466 = sadd.s32 %s1329, %s253
      %s1467 = smul.u32 %s1466, 16
      %s1468 = sadd.s32 %s259, %s1467
      %s1469 = scalar_lea.vmem [#allocation2], %s1468
      %v1470 = vld [vmem:[%s1469] sm:$0x1]
      %s1471 = sadd.s32 %s1329, %s254
      %s1472 = smul.u32 %s1471, 16
      %s1473 = sadd.s32 %s260, %s1472
      %s1474 = scalar_lea.vmem [#allocation2], %s1473
      %v1475 = vld [vmem:[%s1474] sm:$0x1]
      %s1476 = sadd.s32 %s1329, %s255
      %s1477 = smul.u32 %s1476, 16
      %s1478 = sadd.s32 %s261, %s1477
      %s1479 = scalar_lea.vmem [#allocation2], %s1478
      %v1480 = vld [vmem:[%s1479] sm:$0x1]
      %s1481 = sadd.s32 %s1329, %s256
      %s1482 = smul.u32 %s1481, 16
      %s1483 = sadd.s32 %s262, %s1482
      %s1484 = scalar_lea.vmem [#allocation2], %s1483
      %v1485 = vld [vmem:[%s1484] sm:$0x1]
      %v1487 = vrot.slane %v1465, 7
      %v1490 = vrot.slane %v1470, 6
      %v1493 = vrot.slane %v1475, 5
      %v1496 = vrot.slane %v1480, 4
      %v1499 = vrot.slane %v1485, 3
      %v1501 = vsel %vm459, %v1460, %v1487
      %v1502 = vsel %vm461, %v1501, %v1490
      %v1503 = vsel %vm463, %v1502, %v1493
      %v1504 = vsel %vm465, %v1503, %v1496
      %v1505 = vsel %vm467, %v1504, %v1499
      %v1506 = vmul.f32 %v1505, %v225
      %v1507 = vsel %vm470, %v1506, 0.0
      %1508 = vadd.xlane.f32.xlu0 %v1507
      %v1509 = vpop.xlane.xlu0 %1508
      %v1511 = vlaneseq
      %v1512 = vshrl.u32 %v1511, 7
      %v1513 = vsub.s32 %v230, %v1512
      %v1514 = vrot.slane %v1509, %v1513
      %1516 = vst.msk [vmem:[%s209 + $0x5] sm:$0x1] %vm480, %v1514
      %s1517 = sadd.s32 %s263, 6
      %p1518 = scmp.lt.s32.totalorder %s1517, 0
      %s1519 = ssub.s32 0, %s1517
      %s1520 = scalar_select %p1518, %s1519, %s1517
      %s1521 = sand.u32 %s1520, 1
      %s1522 = ssub.s32 0, %s1521
      %s1523 = scalar_select %p1518, %s1522, %s1521
      %p1524 = scmp.ne.s32.totalorder %s1523, 0
      %p1525 = scmp.lt.s32.totalorder %s1523, 0
      %p1526 = pnand %p1525, %p1524
      %p1527 = pneg %p1526
      %s1528 = sadd.s32 %s1523, 2
      %s1529 = scalar_select %p1527, %s1528, %s1523
      %s1530 = ssub.s32 1, %s1529
      %s1531 = smul.u32 %s1529, 2
      %s1532 = smul.u32 %s1531, 16
      %s1533 = scalar_lea.vmem [#allocation2], %s1532
      %v1534 = vld [vmem:[%s1533] sm:$0xff]
      %v1535 = vld [vmem:[%s1533 + $0x8] sm:$0xff]
      %s1536 = smul.u32 %s1530, 2
      %s1537 = smul.u32 %s1536, 16
      %s1538 = scalar_lea.vmem [#allocation2], %s1537
      %v1539 = vld [vmem:[%s1538] sm:$0xff]
      %v1540 = vld [vmem:[%s1538 + $0x8] sm:$0xff]
      %v1541 = vrot.slane %v1534, 7
      %v1542 = vrot.slane %v1535, 7
      %v1543 = vsel %vm289, %v1541, %v1542
      %v1544 = vsel %vm289, %v1542, %v1541
      %v1545 = vmul.f32 %v235, %v1544
      %v1546 = vmul.f32 %v236, %v1543
      %v1547 = vrot.slane %v1534, 1
      %v1548 = vrot.slane %v1535, 1
      %v1549 = vsel %vm296, %v1547, %v1548
      %v1550 = vsel %vm296, %v1548, %v1547
      %v1551 = vmul.f32 %v241, %v1549
      %v1552 = vmul.f32 %v242, %v1550
      %v1553 = vadd.f32 %v1545, %v1551
      %v1554 = vadd.f32 %v1546, %v1552
      %1555 = vrot.lane.b32.xlu0 %v1534, 1
      %v1556 = vpop.permute.xlu0 %1555
      %1557 = vrot.lane.b32.xlu0 %v1535, 1
      %v1558 = vpop.permute.xlu0 %1557
      %v1559 = vmul.f32 %v245, %v1556
      %v1560 = vmul.f32 %v245, %v1558
      %v1561 = vadd.f32 %v1553, %v1559
      %v1562 = vadd.f32 %v1554, %v1560
      %1563 = vrot.lane.b32.xlu0 %v1534, 127
      %v1564 = vpop.permute.xlu0 %1563
      %1565 = vrot.lane.b32.xlu0 %v1535, 127
      %v1566 = vpop.permute.xlu0 %1565
      %v1567 = vmul.f32 %v248, %v1564
      %v1568 = vmul.f32 %v248, %v1566
      %v1569 = vadd.f32 %v1561, %v1567
      %v1570 = vadd.f32 %v1562, %v1568
      %v1571 = vmul.f32 %v1534, 4.0
      %v1572 = vmul.f32 %v1535, 4.0
      %v1573 = vsub.f32 %v1569, %v1571
      %v1574 = vsub.f32 %v1570, %v1572
      %v1575 = vmul.f32 %v1534, 2.0
      %v1576 = vmul.f32 %v1535, 2.0
      %v1577 = vsub.f32 %v1575, %v1539
      %v1578 = vsub.f32 %v1576, %v1540
      %v1579 = vmul.f32 %v222, %v1573
      %v1580 = vmul.f32 %v223, %v1574
      %v1581 = vadd.f32 %v1577, %v1579
      %v1582 = vadd.f32 %v1578, %v1580
      %1583 = vst [vmem:[%s1538] sm:$0xff] %v1581
      %1584 = vst [vmem:[%s1538 + $0x8] sm:$0xff] %v1582
      %v1585 = vld [vmem:[%s205 + $0x6] sm:$0x1]
      %s1586 = sadd.s32 %s249, %s1537
      %s1587 = scalar_lea.vmem [#allocation2], %s1586
      %v1588 = vld [vmem:[%s1587] sm:$0x1]
      %1590 = vset.pattern.permute.xlu0 0
      %1591 = vperm.xlu0 %1590, %v1585
      %v1592 = vpop.permute.xlu0 %1591
      %v1594 = vmul.f32 %v1592, %v224
      %v1595 = vadd.f32 %v1588, %v1594
      %1596 = vst [vmem:[%s1587] sm:$0x1] %v1595
      %s1597 = sadd.s32 %s1531, 1
      %s1598 = smul.u32 %s1597, 16
      %s1599 = scalar_lea.vmem [#allocation2], %s1598
      %v1600 = vld [vmem:[%s1599] sm:$0xff]
      %v1601 = vld [vmem:[%s1599 + $0x8] sm:$0xff]
      %s1602 = sadd.s32 %s1536, 1
      %s1603 = smul.u32 %s1602, 16
      %s1604 = scalar_lea.vmem [#allocation2], %s1603
      %v1605 = vld [vmem:[%s1604] sm:$0xff]
      %v1606 = vld [vmem:[%s1604 + $0x8] sm:$0xff]
      %v1607 = vrot.slane %v1600, 7
      %v1608 = vrot.slane %v1601, 7
      %v1609 = vsel %vm289, %v1607, %v1608
      %v1610 = vsel %vm289, %v1608, %v1607
      %v1611 = vmul.f32 %v235, %v1610
      %v1612 = vmul.f32 %v236, %v1609
      %v1613 = vrot.slane %v1600, 1
      %v1614 = vrot.slane %v1601, 1
      %v1615 = vsel %vm296, %v1613, %v1614
      %v1616 = vsel %vm296, %v1614, %v1613
      %v1617 = vmul.f32 %v241, %v1615
      %v1618 = vmul.f32 %v242, %v1616
      %v1619 = vadd.f32 %v1611, %v1617
      %v1620 = vadd.f32 %v1612, %v1618
      %1621 = vrot.lane.b32.xlu0 %v1600, 1
      %v1622 = vpop.permute.xlu0 %1621
      %1623 = vrot.lane.b32.xlu0 %v1601, 1
      %v1624 = vpop.permute.xlu0 %1623
      %v1625 = vmul.f32 %v245, %v1622
      %v1626 = vmul.f32 %v245, %v1624
      %v1627 = vadd.f32 %v1619, %v1625
      %v1628 = vadd.f32 %v1620, %v1626
      %1629 = vrot.lane.b32.xlu0 %v1600, 127
      %v1630 = vpop.permute.xlu0 %1629
      %1631 = vrot.lane.b32.xlu0 %v1601, 127
      %v1632 = vpop.permute.xlu0 %1631
      %v1633 = vmul.f32 %v248, %v1630
      %v1634 = vmul.f32 %v248, %v1632
      %v1635 = vadd.f32 %v1627, %v1633
      %v1636 = vadd.f32 %v1628, %v1634
      %v1637 = vmul.f32 %v1600, 4.0
      %v1638 = vmul.f32 %v1601, 4.0
      %v1639 = vsub.f32 %v1635, %v1637
      %v1640 = vsub.f32 %v1636, %v1638
      %v1641 = vmul.f32 %v1600, 2.0
      %v1642 = vmul.f32 %v1601, 2.0
      %v1643 = vsub.f32 %v1641, %v1605
      %v1644 = vsub.f32 %v1642, %v1606
      %v1645 = vmul.f32 %v222, %v1639
      %v1646 = vmul.f32 %v223, %v1640
      %v1647 = vadd.f32 %v1643, %v1645
      %v1648 = vadd.f32 %v1644, %v1646
      %1649 = vst [vmem:[%s1604] sm:$0xff] %v1647
      %1650 = vst [vmem:[%s1604 + $0x8] sm:$0xff] %v1648
      %v1651 = vld [vmem:[%s205 + $0x6] sm:$0x1]
      %s1652 = sadd.s32 %s250, %s1603
      %s1653 = scalar_lea.vmem [#allocation2], %s1652
      %v1654 = vld [vmem:[%s1653] sm:$0x1]
      %1656 = vset.pattern.permute.xlu0 1
      %1657 = vperm.xlu0 %1656, %v1651
      %v1658 = vpop.permute.xlu0 %1657
      %v1660 = vmul.f32 %v1658, %v409
      %v1661 = vadd.f32 %v1654, %v1660
      %1662 = vst [vmem:[%s1653] sm:$0x1] %v1661
      %s1663 = sadd.s32 %s1536, %s251
      %s1664 = smul.u32 %s1663, 16
      %s1665 = sadd.s32 %s257, %s1664
      %s1666 = scalar_lea.vmem [#allocation2], %s1665
      %v1667 = vld [vmem:[%s1666] sm:$0x1]
      %s1668 = sadd.s32 %s1536, %s252
      %s1669 = smul.u32 %s1668, 16
      %s1670 = sadd.s32 %s258, %s1669
      %s1671 = scalar_lea.vmem [#allocation2], %s1670
      %v1672 = vld [vmem:[%s1671] sm:$0x1]
      %s1673 = sadd.s32 %s1536, %s253
      %s1674 = smul.u32 %s1673, 16
      %s1675 = sadd.s32 %s259, %s1674
      %s1676 = scalar_lea.vmem [#allocation2], %s1675
      %v1677 = vld [vmem:[%s1676] sm:$0x1]
      %s1678 = sadd.s32 %s1536, %s254
      %s1679 = smul.u32 %s1678, 16
      %s1680 = sadd.s32 %s260, %s1679
      %s1681 = scalar_lea.vmem [#allocation2], %s1680
      %v1682 = vld [vmem:[%s1681] sm:$0x1]
      %s1683 = sadd.s32 %s1536, %s255
      %s1684 = smul.u32 %s1683, 16
      %s1685 = sadd.s32 %s261, %s1684
      %s1686 = scalar_lea.vmem [#allocation2], %s1685
      %v1687 = vld [vmem:[%s1686] sm:$0x1]
      %s1688 = sadd.s32 %s1536, %s256
      %s1689 = smul.u32 %s1688, 16
      %s1690 = sadd.s32 %s262, %s1689
      %s1691 = scalar_lea.vmem [#allocation2], %s1690
      %v1692 = vld [vmem:[%s1691] sm:$0x1]
      %v1694 = vrot.slane %v1672, 7
      %v1697 = vrot.slane %v1677, 6
      %v1700 = vrot.slane %v1682, 5
      %v1703 = vrot.slane %v1687, 4
      %v1706 = vrot.slane %v1692, 3
      %v1708 = vsel %vm459, %v1667, %v1694
      %v1709 = vsel %vm461, %v1708, %v1697
      %v1710 = vsel %vm463, %v1709, %v1700
      %v1711 = vsel %vm465, %v1710, %v1703
      %v1712 = vsel %vm467, %v1711, %v1706
      %v1713 = vmul.f32 %v1712, %v225
      %v1714 = vsel %vm470, %v1713, 0.0
      %1715 = vadd.xlane.f32.xlu0 %v1714
      %v1716 = vpop.xlane.xlu0 %1715
      %v1718 = vlaneseq
      %v1719 = vshrl.u32 %v1718, 7
      %v1720 = vsub.s32 %v230, %v1719
      %v1721 = vrot.slane %v1716, %v1720
      %1723 = vst.msk [vmem:[%s209 + $0x6] sm:$0x1] %vm480, %v1721
      %s1724 = sadd.s32 %s263, 7
      %p1725 = scmp.lt.s32.totalorder %s1724, 0
      %s1726 = ssub.s32 0, %s1724
      %s1727 = scalar_select %p1725, %s1726, %s1724
      %s1728 = sand.u32 %s1727, 1
      %s1729 = ssub.s32 0, %s1728
      %s1730 = scalar_select %p1725, %s1729, %s1728
      %p1731 = scmp.ne.s32.totalorder %s1730, 0
      %p1732 = scmp.lt.s32.totalorder %s1730, 0
      %p1733 = pnand %p1732, %p1731
      %p1734 = pneg %p1733
      %s1735 = sadd.s32 %s1730, 2
      %s1736 = scalar_select %p1734, %s1735, %s1730
      %s1737 = ssub.s32 1, %s1736
      %s1738 = smul.u32 %s1736, 2
      %s1739 = smul.u32 %s1738, 16
      %s1740 = scalar_lea.vmem [#allocation2], %s1739
      %v1741 = vld [vmem:[%s1740] sm:$0xff]
      %v1742 = vld [vmem:[%s1740 + $0x8] sm:$0xff]
      %s1743 = smul.u32 %s1737, 2
      %s1744 = smul.u32 %s1743, 16
      %s1745 = scalar_lea.vmem [#allocation2], %s1744
      %v1746 = vld [vmem:[%s1745] sm:$0xff]
      %v1747 = vld [vmem:[%s1745 + $0x8] sm:$0xff]
      %v1748 = vrot.slane %v1741, 7
      %v1749 = vrot.slane %v1742, 7
      %v1750 = vsel %vm289, %v1748, %v1749
      %v1751 = vsel %vm289, %v1749, %v1748
      %v1752 = vmul.f32 %v235, %v1751
      %v1753 = vmul.f32 %v236, %v1750
      %v1754 = vrot.slane %v1741, 1
      %v1755 = vrot.slane %v1742, 1
      %v1756 = vsel %vm296, %v1754, %v1755
      %v1757 = vsel %vm296, %v1755, %v1754
      %v1758 = vmul.f32 %v241, %v1756
      %v1759 = vmul.f32 %v242, %v1757
      %v1760 = vadd.f32 %v1752, %v1758
      %v1761 = vadd.f32 %v1753, %v1759
      %1762 = vrot.lane.b32.xlu0 %v1741, 1
      %v1763 = vpop.permute.xlu0 %1762
      %1764 = vrot.lane.b32.xlu0 %v1742, 1
      %v1765 = vpop.permute.xlu0 %1764
      %v1766 = vmul.f32 %v245, %v1763
      %v1767 = vmul.f32 %v245, %v1765
      %v1768 = vadd.f32 %v1760, %v1766
      %v1769 = vadd.f32 %v1761, %v1767
      %1770 = vrot.lane.b32.xlu0 %v1741, 127
      %v1771 = vpop.permute.xlu0 %1770
      %1772 = vrot.lane.b32.xlu0 %v1742, 127
      %v1773 = vpop.permute.xlu0 %1772
      %v1774 = vmul.f32 %v248, %v1771
      %v1775 = vmul.f32 %v248, %v1773
      %v1776 = vadd.f32 %v1768, %v1774
      %v1777 = vadd.f32 %v1769, %v1775
      %v1778 = vmul.f32 %v1741, 4.0
      %v1779 = vmul.f32 %v1742, 4.0
      %v1780 = vsub.f32 %v1776, %v1778
      %v1781 = vsub.f32 %v1777, %v1779
      %v1782 = vmul.f32 %v1741, 2.0
      %v1783 = vmul.f32 %v1742, 2.0
      %v1784 = vsub.f32 %v1782, %v1746
      %v1785 = vsub.f32 %v1783, %v1747
      %v1786 = vmul.f32 %v222, %v1780
      %v1787 = vmul.f32 %v223, %v1781
      %v1788 = vadd.f32 %v1784, %v1786
      %v1789 = vadd.f32 %v1785, %v1787
      %1790 = vst [vmem:[%s1745] sm:$0xff] %v1788
      %1791 = vst [vmem:[%s1745 + $0x8] sm:$0xff] %v1789
      %v1792 = vld [vmem:[%s205 + $0x7] sm:$0x1]
      %s1793 = sadd.s32 %s249, %s1744
      %s1794 = scalar_lea.vmem [#allocation2], %s1793
      %v1795 = vld [vmem:[%s1794] sm:$0x1]
      %1797 = vset.pattern.permute.xlu0 0
      %1798 = vperm.xlu0 %1797, %v1792
      %v1799 = vpop.permute.xlu0 %1798
      %v1801 = vmul.f32 %v1799, %v224
      %v1802 = vadd.f32 %v1795, %v1801
      %1803 = vst [vmem:[%s1794] sm:$0x1] %v1802
      %s1804 = sadd.s32 %s1738, 1
      %s1805 = smul.u32 %s1804, 16
      %s1806 = scalar_lea.vmem [#allocation2], %s1805
      %v1807 = vld [vmem:[%s1806] sm:$0xff]
      %v1808 = vld [vmem:[%s1806 + $0x8] sm:$0xff]
      %s1809 = sadd.s32 %s1743, 1
      %s1810 = smul.u32 %s1809, 16
      %s1811 = scalar_lea.vmem [#allocation2], %s1810
      %v1812 = vld [vmem:[%s1811] sm:$0xff]
      %v1813 = vld [vmem:[%s1811 + $0x8] sm:$0xff]
      %v1814 = vrot.slane %v1807, 7
      %v1815 = vrot.slane %v1808, 7
      %v1816 = vsel %vm289, %v1814, %v1815
      %v1817 = vsel %vm289, %v1815, %v1814
      %v1818 = vmul.f32 %v235, %v1817
      %v1819 = vmul.f32 %v236, %v1816
      %v1820 = vrot.slane %v1807, 1
      %v1821 = vrot.slane %v1808, 1
      %v1822 = vsel %vm296, %v1820, %v1821
      %v1823 = vsel %vm296, %v1821, %v1820
      %v1824 = vmul.f32 %v241, %v1822
      %v1825 = vmul.f32 %v242, %v1823
      %v1826 = vadd.f32 %v1818, %v1824
      %v1827 = vadd.f32 %v1819, %v1825
      %1828 = vrot.lane.b32.xlu0 %v1807, 1
      %v1829 = vpop.permute.xlu0 %1828
      %1830 = vrot.lane.b32.xlu0 %v1808, 1
      %v1831 = vpop.permute.xlu0 %1830
      %v1832 = vmul.f32 %v245, %v1829
      %v1833 = vmul.f32 %v245, %v1831
      %v1834 = vadd.f32 %v1826, %v1832
      %v1835 = vadd.f32 %v1827, %v1833
      %1836 = vrot.lane.b32.xlu0 %v1807, 127
      %v1837 = vpop.permute.xlu0 %1836
      %1838 = vrot.lane.b32.xlu0 %v1808, 127
      %v1839 = vpop.permute.xlu0 %1838
      %v1840 = vmul.f32 %v248, %v1837
      %v1841 = vmul.f32 %v248, %v1839
      %v1842 = vadd.f32 %v1834, %v1840
      %v1843 = vadd.f32 %v1835, %v1841
      %v1844 = vmul.f32 %v1807, 4.0
      %v1845 = vmul.f32 %v1808, 4.0
      %v1846 = vsub.f32 %v1842, %v1844
      %v1847 = vsub.f32 %v1843, %v1845
      %v1848 = vmul.f32 %v1807, 2.0
      %v1849 = vmul.f32 %v1808, 2.0
      %v1850 = vsub.f32 %v1848, %v1812
      %v1851 = vsub.f32 %v1849, %v1813
      %v1852 = vmul.f32 %v222, %v1846
      %v1853 = vmul.f32 %v223, %v1847
      %v1854 = vadd.f32 %v1850, %v1852
      %v1855 = vadd.f32 %v1851, %v1853
      %1856 = vst [vmem:[%s1811] sm:$0xff] %v1854
      %1857 = vst [vmem:[%s1811 + $0x8] sm:$0xff] %v1855
      %v1858 = vld [vmem:[%s205 + $0x7] sm:$0x1]
      %s1859 = sadd.s32 %s250, %s1810
      %s1860 = scalar_lea.vmem [#allocation2], %s1859
      %v1861 = vld [vmem:[%s1860] sm:$0x1]
      %1863 = vset.pattern.permute.xlu0 1
      %1864 = vperm.xlu0 %1863, %v1858
      %v1865 = vpop.permute.xlu0 %1864
      %v1867 = vmul.f32 %v1865, %v409
      %v1868 = vadd.f32 %v1861, %v1867
      %1869 = vst [vmem:[%s1860] sm:$0x1] %v1868
      %s1870 = sadd.s32 %s1743, %s251
      %s1871 = smul.u32 %s1870, 16
      %s1872 = sadd.s32 %s257, %s1871
      %s1873 = scalar_lea.vmem [#allocation2], %s1872
      %v1874 = vld [vmem:[%s1873] sm:$0x1]
      %s1875 = sadd.s32 %s1743, %s252
      %s1876 = smul.u32 %s1875, 16
      %s1877 = sadd.s32 %s258, %s1876
      %s1878 = scalar_lea.vmem [#allocation2], %s1877
      %v1879 = vld [vmem:[%s1878] sm:$0x1]
      %s1880 = sadd.s32 %s1743, %s253
      %s1881 = smul.u32 %s1880, 16
      %s1882 = sadd.s32 %s259, %s1881
      %s1883 = scalar_lea.vmem [#allocation2], %s1882
      %v1884 = vld [vmem:[%s1883] sm:$0x1]
      %s1885 = sadd.s32 %s1743, %s254
      %s1886 = smul.u32 %s1885, 16
      %s1887 = sadd.s32 %s260, %s1886
      %s1888 = scalar_lea.vmem [#allocation2], %s1887
      %v1889 = vld [vmem:[%s1888] sm:$0x1]
      %s1890 = sadd.s32 %s1743, %s255
      %s1891 = smul.u32 %s1890, 16
      %s1892 = sadd.s32 %s261, %s1891
      %s1893 = scalar_lea.vmem [#allocation2], %s1892
      %v1894 = vld [vmem:[%s1893] sm:$0x1]
      %s1895 = sadd.s32 %s1743, %s256
      %s1896 = smul.u32 %s1895, 16
      %s1897 = sadd.s32 %s262, %s1896
      %s1898 = scalar_lea.vmem [#allocation2], %s1897
      %v1899 = vld [vmem:[%s1898] sm:$0x1]
      %v1901 = vrot.slane %v1879, 7
      %v1904 = vrot.slane %v1884, 6
      %v1907 = vrot.slane %v1889, 5
      %v1910 = vrot.slane %v1894, 4
      %v1913 = vrot.slane %v1899, 3
      %v1915 = vsel %vm459, %v1874, %v1901
      %v1916 = vsel %vm461, %v1915, %v1904
      %v1917 = vsel %vm463, %v1916, %v1907
      %v1918 = vsel %vm465, %v1917, %v1910
      %v1919 = vsel %vm467, %v1918, %v1913
      %v1920 = vmul.f32 %v1919, %v225
      %v1921 = vsel %vm470, %v1920, 0.0
      %1922 = vadd.xlane.f32.xlu0 %v1921
      %v1923 = vpop.xlane.xlu0 %1922
      %v1925 = vlaneseq
      %v1926 = vshrl.u32 %v1925, 7
      %v1927 = vsub.s32 %v230, %v1926
      %v1928 = vrot.slane %v1923, %v1927
      %1930 = vst.msk [vmem:[%s209 + $0x7] sm:$0x1] %vm480, %v1928
      %p1931 = scmp.lt.s32.totalorder %s32, 1
      %s1932 = scalar_select %p1931, %s32, 1
      %s1933 = smul.addr %s1932, 8
      %s1934 = scalar_lea.vmem %s7, %s1933
      // Predicated region
      $region41: #{tpu_custom_call.1} parent=35 // pred_check
        %p1935 = pneg %p139
      $region42: #{tpu_custom_call.1} parent=35 // pred_check_branch
        %1937 = sbr.rel (%p1935) target = $region44
      $region43: #{tpu_custom_call.1} parent=35 // pred_region
        _
      $region44: #{tpu_custom_call.1} parent=35 // pred_fallthru
        _
    $region36: #{tpu_custom_call.1} parent=5 // pred_fallthru
      _
    %p1938 = scmp.le.s32.totalorder 2, %s27
    // Predicated region
    $region45: #{tpu_custom_call.1} parent=5 // pred_check
      %p1939 = pneg %p1938
    $region46: #{tpu_custom_call.1} parent=5 // pred_check_branch
      %1941 = sbr.rel (%p1939) target = $region48
    $region47: #{tpu_custom_call.1} parent=5 // pred_region
      %s1942 = ssub.s32 %s27, 2
      // Predicated region
      $region49: #{tpu_custom_call.1} parent=47 // pred_check
        %p1943 = pneg %p145
      $region50: #{tpu_custom_call.1} parent=47 // pred_check_branch
        %1945 = sbr.rel (%p1943) target = $region52
      $region51: #{tpu_custom_call.1} parent=47 // pred_region
        %p1946 = scmp.lt.s32.totalorder %s33, 1
        %s1947 = scalar_select %p1946, %s33, 1
        %s1948 = smul.addr %s1947, 8
        %s1949 = scalar_lea.vmem %s7, %s1948
      $region52: #{tpu_custom_call.1} parent=47 // pred_fallthru
        _
    $region48: #{tpu_custom_call.1} parent=5 // pred_fallthru
      _
  $region6: #{tpu_custom_call.1} parent=0 // loop_footer
    %s31 = sadd.s32 1, %s27
  $region7: #{tpu_custom_call.1} parent=0 // loop_footer_branch
    %26 = sbr.rel target = $region3
  $region8: #{tpu_custom_call.1} parent=0 // loop_exit
    _

</llo_original>
